<compile_context>
chip_gen: v7x
topology: tpu7x:2x2x1
jax: 0.10.0
libtpu: 0.0.40
codegen_flags: <defaults>
</compile_context>

<pallas_src>
import jax
import jax.numpy as jnp
from jax.experimental import pallas as pl
from jax.experimental.pallas import tpu as pltpu


_EPS = 1e-5
_VMEM_LIMIT = 32 * 1024 * 1024  # explicit scoped-VMEM limit (safe on v5e/v6e/v7x)


# ------------------------------ Pallas kernels ------------------------------

def _make_fused_layer_kernel(groups, oc, count, eps=_EPS):
    """matmul + bias + train-mode BatchNorm(batch stats) + ReLU, one kernel.

    Weight / output columns are ordered (parity_group, channel).  BN stats are
    reduced over all rows and over the `groups` parity column groups that map
    to the same BN channel (groups == 1 for plain convs, 4 for the merged
    sub-pixel ConvTranspose).
    """
    inv_n = 1.0 / float(count)

    def kernel(a_ref, w_ref, b_ref, g_ref, be_ref, o_ref):
        y = (jnp.dot(a_ref[...], w_ref[...],
                     preferred_element_type=jnp.float32) + b_ref[...])
        # per-column sums / sums of squares, then reduce parity groups
        s = jnp.sum(y, axis=0, keepdims=True)            # (1, groups*oc)
        ss = jnp.sum(y * y, axis=0, keepdims=True)
        s_ch, ss_ch = s[:, 0:oc], ss[:, 0:oc]
        for p in range(1, groups):
            s_ch = s_ch + s[:, p * oc:(p + 1) * oc]
            ss_ch = ss_ch + ss[:, p * oc:(p + 1) * oc]
        mean = s_ch * inv_n
        var = jnp.maximum(ss_ch * inv_n - mean * mean, 0.0)  # clamp (bf16 feed)
        scale_ch = g_ref[...] * jax.lax.rsqrt(var + eps)      # (1, oc)
        shift_ch = be_ref[...] - mean * scale_ch
        if groups > 1:
            scale = jnp.concatenate([scale_ch] * groups, axis=1)
            shift = jnp.concatenate([shift_ch] * groups, axis=1)
        else:
            scale, shift = scale_ch, shift_ch
        o_ref[...] = jnp.maximum(y * scale + shift, 0.0).astype(o_ref.dtype)

    return kernel


def _mm_bias_kernel(a_ref, w_ref, b_ref, o_ref):
    o_ref[...] = (jnp.dot(a_ref[...], w_ref[...],
                          preferred_element_type=jnp.float32) + b_ref[...])


def _fc2_kernel(x_ref, w1_ref, b1_ref, w2_ref, b2_ref, o_ref):
    # Two back-to-back Linear layers; the hidden activation never leaves VMEM.
    h = (jnp.dot(x_ref[...], w1_ref[...],
                 preferred_element_type=jnp.float32) + b1_ref[...])
    o_ref[...] = (jnp.dot(h, w2_ref[...],
                          preferred_element_type=jnp.float32) + b2_ref[...])


# ----------------------------- Pallas wrappers -------------------------------

def fused_conv_bn_relu(patches, wmat, bias_cols, gamma, beta, *, groups, count):
    """Single-block fused (conv-as-matmul) + bias + BatchNorm + ReLU layer.

    patches: (M, K) bf16   wmat: (K, groups*OC) bf16
    bias_cols: (groups*OC,) f32 (bias tiled per parity group)
    gamma/beta: (OC,) f32.   Returns bf16 (M, groups*OC).
    """
    M, K = patches.shape
    goc = wmat.shape[1]
    oc = goc // groups
    kernel = _make_fused_layer_kernel(groups, oc, count)
    return pl.pallas_call(
        kernel,
        out_shape=jax.ShapeDtypeStruct((M, goc), jnp.bfloat16),
        grid=(1,),
        in_specs=[pl.BlockSpec((M, K), lambda i: (0, 0)),
                  pl.BlockSpec((K, goc), lambda i: (0, 0)),
                  pl.BlockSpec((1, goc), lambda i: (0, 0)),
                  pl.BlockSpec((1, oc), lambda i: (0, 0)),
                  pl.BlockSpec((1, oc), lambda i: (0, 0))],
        out_specs=pl.BlockSpec((M, goc), lambda i: (0, 0)),
        compiler_params=pltpu.CompilerParams(
            dimension_semantics=("arbitrary",),
            vmem_limit_bytes=_VMEM_LIMIT),
    )(patches.astype(jnp.bfloat16), wmat.astype(jnp.bfloat16),
      bias_cols.reshape(1, goc).astype(jnp.float32),
      gamma.reshape(1, oc).astype(jnp.float32),
      beta.reshape(1, oc).astype(jnp.float32))


def matmul_bias(patches, wmat, bias):
    """Row-tiled matmul + bias (final ConvTranspose, no BN) in f32."""
    M, K = patches.shape
    oc = wmat.shape[1]
    tm = 256 if (M % 256 == 0 and M >= 512) else M   # >=2 parallel steps (v7x)
    nt = M // tm
    return pl.pallas_call(
        _mm_bias_kernel,
        out_shape=jax.ShapeDtypeStruct((M, oc), jnp.float32),
        grid=(nt,),
        in_specs=[pl.BlockSpec((tm, K), lambda i: (i, 0)),
                  pl.BlockSpec((K, oc), lambda i: (0, 0)),
                  pl.BlockSpec((1, oc), lambda i: (0, 0))],
        out_specs=pl.BlockSpec((tm, oc), lambda i: (i, 0)),
        compiler_params=pltpu.CompilerParams(
            dimension_semantics=("parallel",),
            vmem_limit_bytes=_VMEM_LIMIT),
    )(patches.astype(jnp.float32), wmat.astype(jnp.float32),
      bias.reshape(1, oc).astype(jnp.float32))


def fused_linear2(x, w1, b1, w2, b2):
    """(M,K) @ (K,H) + b1 then @ (H,N2) + b2 — one kernel, hidden stays in VMEM."""
    M, K = x.shape
    H = w1.shape[1]
    N2 = w2.shape[1]
    return pl.pallas_call(
        _fc2_kernel,
        out_shape=jax.ShapeDtypeStruct((M, N2), jnp.float32),
        grid=(1,),
        in_specs=[pl.BlockSpec((M, K), lambda i: (0, 0)),
                  pl.BlockSpec((K, H), lambda i: (0, 0)),
                  pl.BlockSpec((1, H), lambda i: (0, 0)),
                  pl.BlockSpec((H, N2), lambda i: (0, 0)),
                  pl.BlockSpec((1, N2), lambda i: (0, 0))],
        out_specs=pl.BlockSpec((M, N2), lambda i: (0, 0)),
        compiler_params=pltpu.CompilerParams(
            dimension_semantics=("arbitrary",),
            vmem_limit_bytes=_VMEM_LIMIT),
    )(x.astype(jnp.float32), w1.astype(jnp.float32),
      b1.reshape(1, H).astype(jnp.float32),
      w2.astype(jnp.float32), b2.reshape(1, N2).astype(jnp.float32))


# ------------------ conv lowering glue (channels-last, bf16) -----------------

def _im2col_nhwc(x, k=4, stride=2, pad=1):
    # x: (N, H, W, C) -> (N*OH*OW, k*k*C), columns ordered (ky, kx, c).
    N, H, W, C = x.shape
    xp = jnp.pad(x, ((0, 0), (pad, pad), (pad, pad), (0, 0)))
    OH = (H + 2 * pad - k) // stride + 1
    OW = (W + 2 * pad - k) // stride + 1
    cols = [xp[:, ky:ky + stride * OH:stride, kx:kx + stride * OW:stride, :]
            for ky in range(k) for kx in range(k)]
    patches = jnp.concatenate(cols, axis=-1)
    return patches.reshape(N * OH * OW, k * k * C), OH, OW


def _deconv_patches(x):
    # 3x3 stride-1 patches of the 1-padded input: (N*H*W, 9*C), cols (dy, dx, c).
    N, H, W, C = x.shape
    xp = jnp.pad(x, ((0, 0), (1, 1), (1, 1), (0, 0)))
    cols = [xp[:, dy:dy + H, dx:dx + W, :] for dy in range(3) for dx in range(3)]
    return jnp.concatenate(cols, axis=-1).reshape(N * H * W, 9 * C)


def _conv_weight_mat(w):
    # torch Conv2d weight (OC, IC, 4, 4) -> (16*IC, OC), rows ordered (ky, kx, ic)
    OC, IC, k, _ = w.shape
    return w.transpose(2, 3, 1, 0).reshape(k * k * IC, OC)


def _deconv_merged_weight(w):
    # torch ConvTranspose2d weight (IC, OC, 4, 4) -> merged (9*IC, 4*OC).
    # Rows ordered (dy, dx, ic) over the 3x3 window; columns (p = 2*ry+rx, oc).
    # Parity (ry, rx) only uses taps at (dy, dx) = (ry+dy2, rx+dx2), dy2,dx2 in
    # {0,1}, with kernel indices ky = 3 - ry - 2*dy2, kx = 3 - rx - 2*dx2.
    IC, OC = w.shape[0], w.shape[1]
    wb = jnp.zeros((3, 3, IC, 4, OC), w.dtype)
    for ry in range(2):
        for rx in range(2):
            p = 2 * ry + rx
            for dy2 in range(2):
                for dx2 in range(2):
                    dy, dx = ry + dy2, rx + dx2
                    ky, kx = 3 - ry - 2 * dy2, 3 - rx - 2 * dx2
                    wb = wb.at[dy, dx, :, p, :].set(w[:, :, ky, kx])
    return wb.reshape(9 * IC, 4 * OC)


# --------------------- one-time parameter preparation ------------------------

def prepare_params(p):
    """Relayout torch-format params into kernel-ready matrices (done once)."""
    kp = {}
    # encoder Conv2d layers
    for i, (wk, bk, gk, bek) in ((1, ("ew1", "eb1", "g1", "be1")),
                                 (2, ("ew2", "eb2", "g2", "be2")),
                                 (3, ("ew3", "eb3", "g3", "be3"))):
        kp[f"cw{i}"] = _conv_weight_mat(p[wk]).astype(jnp.bfloat16)
        kp[f"cb{i}"] = p[bk].astype(jnp.float32)
        kp[f"cg{i}"] = p[gk].astype(jnp.float32)
        kp[f"cbe{i}"] = p[bek].astype(jnp.float32)
    # FC pair: permute torch (c,h,w)-flatten order -> channels-last (h,w,c)
    hid = p["fw"].shape[0]
    kp["fw"] = (p["fw"].reshape(hid, 64, 4, 4).transpose(0, 2, 3, 1)
                .reshape(hid, 64 * 16).T).astype(jnp.float32)        # (1024, hid)
    kp["fb"] = p["fb"].astype(jnp.float32)
    kp["pw"] = (p["pw"].reshape(64, 4, 4, hid).transpose(1, 2, 0, 3)
                .reshape(64 * 16, hid).T).astype(jnp.float32)        # (hid, 1024)
    kp["pb"] = (p["pb"].reshape(64, 4, 4).transpose(1, 2, 0).reshape(-1)
                .astype(jnp.float32))
    # decoder ConvTranspose2d layers (merged sub-pixel weights, tiled bias)
    for i, (wk, bk) in ((1, ("dw1", "db1")), (2, ("dw2", "db2")),
                        (3, ("dw3", "db3"))):
        wm = _deconv_merged_weight(p[wk])
        kp[f"dw{i}"] = wm.astype(jnp.bfloat16 if i < 3 else jnp.float32)
        kp[f"db{i}"] = jnp.tile(p[bk], 4).astype(jnp.float32)
    kp["dg1"], kp["dbe1"] = p["dg1"].astype(jnp.float32), p["dbe1"].astype(jnp.float32)
    kp["dg2"], kp["dbe2"] = p["dg2"].astype(jnp.float32), p["dbe2"].astype(jnp.float32)
    return kp


# -------------------------------- AE forward ---------------------------------

def ae_forward(kp, x):
    N = x.shape[0]
    h = jnp.transpose(x, (0, 2, 3, 1)).astype(jnp.bfloat16)  # NCHW -> NHWC once

    # ---- encoder: 3 x (Conv k4 s2 p1 + BN + ReLU), one fused kernel each ----
    for i in (1, 2, 3):
        patches, OH, OW = _im2col_nhwc(h)
        oc = kp[f"cw{i}"].shape[1]
        y = fused_conv_bn_relu(patches, kp[f"cw{i}"], kp[f"cb{i}"],
                               kp[f"cg{i}"], kp[f"cbe{i}"],
                               groups=1, count=patches.shape[0])
        h = y.reshape(N, OH, OW, oc)

    # ---- fused Linear(1024 -> hidden) + Linear(hidden -> 1024) ----
    flat = h.reshape(N, -1)                                   # (h, w, c) order
    z = fused_linear2(flat, kp["fw"], kp["fb"], kp["pw"], kp["pb"])
    h = z.reshape(N, 4, 4, 64).astype(jnp.bfloat16)

    # ---- decoder: 2 x (ConvT + BN + ReLU) fused, then final ConvT ----
    for i in (1, 2):
        _, H, W, _ = h.shape
        patches = _deconv_patches(h)
        oc = kp[f"dw{i}"].shape[1] // 4
        y = fused_conv_bn_relu(patches, kp[f"dw{i}"], kp[f"db{i}"],
                               kp[f"dg{i}"], kp[f"dbe{i}"],
                               groups=4, count=4 * patches.shape[0])
        # parity de-interleave: (p = 2*ry + rx, oc) columns -> spatial
        h = (y.reshape(N, H, W, 2, 2, oc).transpose(0, 1, 3, 2, 4, 5)
             .reshape(N, 2 * H, 2 * W, oc))

    _, H, W, _ = h.shape
    patches = _deconv_patches(h).astype(jnp.float32)
    y = matmul_bias(patches, kp["dw3"], kp["db3"])            # (M, 4*3) f32
    oc = kp["dw3"].shape[1] // 4
    # parity de-interleave + NHWC -> NCHW collapsed into a single transpose
    out = (y.reshape(N, H, W, 2, 2, oc).transpose(0, 5, 1, 3, 2, 4)
           .reshape(N, oc, 2 * H, 2 * W))
    return out


# ------------------------------ parameter init -------------------------------

def init_params(key, hidden_dim=32):
    ks = jax.random.split(key, 16)

    def nrm(k, shape, s=0.05):
        return s * jax.random.normal(k, shape, jnp.float32)

    ones = lambda c: jnp.ones((c,), jnp.float32)
    zeros = lambda c: jnp.zeros((c,), jnp.float32)
    p = {}
    p["ew1"], p["eb1"] = nrm(ks[0], (16, 3, 4, 4)), nrm(ks[1], (16,))
    p["g1"], p["be1"] = ones(16), zeros(16)
    p["ew2"], p["eb2"] = nrm(ks[2], (32, 16, 4, 4)), nrm(ks[3], (32,))
    p["g2"], p["be2"] = ones(32), zeros(32)
    p["ew3"], p["eb3"] = nrm(ks[4], (64, 32, 4, 4)), nrm(ks[5], (64,))
    p["g3"], p["be3"] = ones(64), zeros(64)
    p["fw"], p["fb"] = nrm(ks[6], (hidden_dim, 64 * 4 * 4)), nrm(ks[7], (hidden_dim,))
    p["pw"], p["pb"] = nrm(ks[8], (64 * 4 * 4, hidden_dim)), nrm(ks[9], (64 * 4 * 4,))
    p["dw1"], p["db1"] = nrm(ks[10], (64, 32, 4, 4)), nrm(ks[11], (32,))
    p["dg1"], p["dbe1"] = ones(32), zeros(32)
    p["dw2"], p["db2"] = nrm(ks[12], (32, 16, 4, 4)), nrm(ks[13], (16,))
    p["dg2"], p["dbe2"] = ones(16), zeros(16)
    p["dw3"], p["db3"] = nrm(ks[14], (16, 3, 4, 4)), nrm(ks[15], (3,))
    return p


if __name__ == "__main__":
    key = jax.random.PRNGKey(0)
    pkey, xkey = jax.random.split(key)
    hidden_dim = 32
    params = init_params(pkey, hidden_dim)
    kp = prepare_params(params)                     # one-time weight relayout
    # Input must be 32x32 so the encoder bottleneck is 64 x 4 x 4 (per module).
    x = jax.random.normal(xkey, (2, 3, 32, 32), jnp.float32)  # NCHW

    fwd = jax.jit(ae_forward)
    out = jax.block_until_ready(fwd(kp, x))
    assert out.shape == (2, 3, 32, 32), out.shape
    assert bool(jnp.all(jnp.isfinite(out)))
    print("KERNEL_OK")
</pallas_src>

<mosaic_0001>
module attributes {stable_mosaic.version = 11 : i64} {
  func.func @kernel(%arg0: i32, %arg1: memref<512x48xbf16, #tpu.memory_space<vmem>>, %arg2: memref<48x16xbf16, #tpu.memory_space<vmem>>, %arg3: memref<1x16xf32, #tpu.memory_space<vmem>>, %arg4: memref<1x16xf32, #tpu.memory_space<vmem>>, %arg5: memref<1x16xf32, #tpu.memory_space<vmem>>, %arg6: memref<512x16xbf16, #tpu.memory_space<vmem>>) attributes {dimension_semantics = [#tpu.dimension_semantics<arbitrary>], iteration_bounds = array<i64: 1>, scalar_prefetch = 0 : i64, scratch_operands = 0 : i64, tpu.core_type = #tpu.core_type<tc>, window_params = [{pipeline_mode = #tpu.pipeline_mode<synchronous>, transform_indices = @transform_0, window_bounds = array<i64: 512, 48>}, {pipeline_mode = #tpu.pipeline_mode<synchronous>, transform_indices = @transform_1, window_bounds = array<i64: 48, 16>}, {pipeline_mode = #tpu.pipeline_mode<synchronous>, transform_indices = @transform_2, window_bounds = array<i64: 1, 16>}, {pipeline_mode = #tpu.pipeline_mode<synchronous>, transform_indices = @transform_3, window_bounds = array<i64: 1, 16>}, {pipeline_mode = #tpu.pipeline_mode<synchronous>, transform_indices = @transform_4, window_bounds = array<i64: 1, 16>}, {pipeline_mode = #tpu.pipeline_mode<synchronous>, transform_indices = @transform_5, window_bounds = array<i64: 512, 16>}]} {
    %c0 = arith.constant 0 : index
    %c0_0 = arith.constant 0 : index
    %0 = vector.load %arg1[%c0, %c0_0] : memref<512x48xbf16, #tpu.memory_space<vmem>>, vector<512x48xbf16>
    %c0_1 = arith.constant 0 : index
    %c0_2 = arith.constant 0 : index
    %1 = vector.load %arg2[%c0_1, %c0_2] : memref<48x16xbf16, #tpu.memory_space<vmem>>, vector<48x16xbf16>
    %cst = arith.constant dense<0.000000e+00> : vector<512x16xf32>
    %2 = tpu.matmul %0, %1, %cst {dimension_numbers = #tpu.dot_dimension_numbers<[1], [0], [0], [1], [0, 0, 1, 1], [], []>} : vector<512x48xbf16>, vector<48x16xbf16>, vector<512x16xf32> -> vector<512x16xf32>
    %c0_3 = arith.constant 0 : index
    %c0_4 = arith.constant 0 : index
    %3 = vector.load %arg3[%c0_3, %c0_4] : memref<1x16xf32, #tpu.memory_space<vmem>>, vector<1x16xf32>
    %4 = vector.broadcast %3 : vector<1x16xf32> to vector<512x16xf32>
    %5 = arith.addf %2, %4 : vector<512x16xf32>
    %cst_5 = arith.constant dense<0.000000e+00> : vector<16xf32>
    %6 = vector.multi_reduction <add>, %5, %cst_5 [0] : vector<512x16xf32> to vector<16xf32>
    %7 = vector.shape_cast %6 : vector<16xf32> to vector<1x16xf32>
    %8 = arith.mulf %5, %5 : vector<512x16xf32>
    %cst_6 = arith.constant dense<0.000000e+00> : vector<16xf32>
    %9 = vector.multi_reduction <add>, %8, %cst_6 [0] : vector<512x16xf32> to vector<16xf32>
    %10 = vector.shape_cast %9 : vector<16xf32> to vector<1x16xf32>
    %cst_7 = arith.constant 0.001953125 : f32
    %11 = vector.broadcast %cst_7 : f32 to vector<1x16xf32>
    %12 = arith.mulf %7, %11 : vector<1x16xf32>
    %cst_8 = arith.constant 0.001953125 : f32
    %13 = vector.broadcast %cst_8 : f32 to vector<1x16xf32>
    %14 = arith.mulf %10, %13 : vector<1x16xf32>
    %15 = arith.mulf %12, %12 : vector<1x16xf32>
    %16 = arith.subf %14, %15 : vector<1x16xf32>
    %cst_9 = arith.constant 0.000000e+00 : f32
    %17 = vector.broadcast %cst_9 : f32 to vector<1x16xf32>
    %18 = arith.maximumf %16, %17 : vector<1x16xf32>
    %c0_10 = arith.constant 0 : index
    %c0_11 = arith.constant 0 : index
    %19 = vector.load %arg4[%c0_10, %c0_11] : memref<1x16xf32, #tpu.memory_space<vmem>>, vector<1x16xf32>
    %cst_12 = arith.constant 9.99999974E-6 : f32
    %20 = vector.broadcast %cst_12 : f32 to vector<1x16xf32>
    %21 = arith.addf %18, %20 : vector<1x16xf32>
    %22 = math.rsqrt %21 : vector<1x16xf32>
    %23 = arith.mulf %19, %22 : vector<1x16xf32>
    %c0_13 = arith.constant 0 : index
    %c0_14 = arith.constant 0 : index
    %24 = vector.load %arg5[%c0_13, %c0_14] : memref<1x16xf32, #tpu.memory_space<vmem>>, vector<1x16xf32>
    %25 = arith.mulf %12, %23 : vector<1x16xf32>
    %26 = arith.subf %24, %25 : vector<1x16xf32>
    %27 = vector.broadcast %23 : vector<1x16xf32> to vector<512x16xf32>
    %28 = arith.mulf %5, %27 : vector<512x16xf32>
    %29 = vector.broadcast %26 : vector<1x16xf32> to vector<512x16xf32>
    %30 = arith.addf %28, %29 : vector<512x16xf32>
    %cst_15 = arith.constant 0.000000e+00 : f32
    %31 = vector.broadcast %cst_15 : f32 to vector<512x16xf32>
    %32 = arith.maximumf %30, %31 : vector<512x16xf32>
    %33 = arith.truncf %32 : vector<512x16xf32> to vector<512x16xbf16>
    %c0_16 = arith.constant 0 : index
    %c0_17 = arith.constant 0 : index
    %34 = vector.load %arg6[%c0_16, %c0_17] : memref<512x16xbf16, #tpu.memory_space<vmem>>, vector<512x16xbf16>
    tpu.vector_store %arg6[%c0_16, %c0_17], %33 {strides = array<i32>} : memref<512x16xbf16, #tpu.memory_space<vmem>>, vector<512x16xbf16>,
    return
  }
  func.func @transform_0(%arg0: i32) -> (i32, i32) {
    %c0_i32 = arith.constant 0 : i32
    %c0_i32_0 = arith.constant 0 : i32
    %c0_i32_1 = arith.constant 0 : i32
    return %c0_i32, %c0_i32_0 : i32, i32
  }
  func.func @transform_1(%arg0: i32) -> (i32, i32) {
    %c0_i32 = arith.constant 0 : i32
    %c0_i32_0 = arith.constant 0 : i32
    %c0_i32_1 = arith.constant 0 : i32
    return %c0_i32, %c0_i32_0 : i32, i32
  }
  func.func @transform_2(%arg0: i32) -> (i32, i32) {
    %c0_i32 = arith.constant 0 : i32
    %c0_i32_0 = arith.constant 0 : i32
    %c0_i32_1 = arith.constant 0 : i32
    return %c0_i32, %c0_i32_0 : i32, i32
  }
  func.func @transform_3(%arg0: i32) -> (i32, i32) {
    %c0_i32 = arith.constant 0 : i32
    %c0_i32_0 = arith.constant 0 : i32
    %c0_i32_1 = arith.constant 0 : i32
    return %c0_i32, %c0_i32_0 : i32, i32
  }
  func.func @transform_4(%arg0: i32) -> (i32, i32) {
    %c0_i32 = arith.constant 0 : i32
    %c0_i32_0 = arith.constant 0 : i32
    %c0_i32_1 = arith.constant 0 : i32
    return %c0_i32, %c0_i32_0 : i32, i32
  }
  func.func @transform_5(%arg0: i32) -> (i32, i32) {
    %c0_i32 = arith.constant 0 : i32
    %c0_i32_0 = arith.constant 0 : i32
    %c0_i32_1 = arith.constant 0 : i32
    return %c0_i32, %c0_i32_0 : i32, i32
  }
}

module attributes {stable_mosaic.version = 11 : i64} {
  func.func @kernel(%arg0: i32, %arg1: memref<128x256xbf16, #tpu.memory_space<vmem>>, %arg2: memref<256x32xbf16, #tpu.memory_space<vmem>>, %arg3: memref<1x32xf32, #tpu.memory_space<vmem>>, %arg4: memref<1x32xf32, #tpu.memory_space<vmem>>, %arg5: memref<1x32xf32, #tpu.memory_space<vmem>>, %arg6: memref<128x32xbf16, #tpu.memory_space<vmem>>) attributes {dimension_semantics = [#tpu.dimension_semantics<arbitrary>], iteration_bounds = array<i64: 1>, scalar_prefetch = 0 : i64, scratch_operands = 0 : i64, tpu.core_type = #tpu.core_type<tc>, window_params = [{pipeline_mode = #tpu.pipeline_mode<synchronous>, transform_indices = @transform_0, window_bounds = array<i64: 128, 256>}, {pipeline_mode = #tpu.pipeline_mode<synchronous>, transform_indices = @transform_1, window_bounds = array<i64: 256, 32>}, {pipeline_mode = #tpu.pipeline_mode<synchronous>, transform_indices = @transform_2, window_bounds = array<i64: 1, 32>}, {pipeline_mode = #tpu.pipeline_mode<synchronous>, transform_indices = @transform_3, window_bounds = array<i64: 1, 32>}, {pipeline_mode = #tpu.pipeline_mode<synchronous>, transform_indices = @transform_4, window_bounds = array<i64: 1, 32>}, {pipeline_mode = #tpu.pipeline_mode<synchronous>, transform_indices = @transform_5, window_bounds = array<i64: 128, 32>}]} {
    %c0 = arith.constant 0 : index
    %c0_0 = arith.constant 0 : index
    %0 = vector.load %arg1[%c0, %c0_0] : memref<128x256xbf16, #tpu.memory_space<vmem>>, vector<128x256xbf16>
    %c0_1 = arith.constant 0 : index
    %c0_2 = arith.constant 0 : index
    %1 = vector.load %arg2[%c0_1, %c0_2] : memref<256x32xbf16, #tpu.memory_space<vmem>>, vector<256x32xbf16>
    %cst = arith.constant dense<0.000000e+00> : vector<128x32xf32>
    %2 = tpu.matmul %0, %1, %cst {dimension_numbers = #tpu.dot_dimension_numbers<[1], [0], [0], [1], [0, 0, 1, 1], [], []>} : vector<128x256xbf16>, vector<256x32xbf16>, vector<128x32xf32> -> vector<128x32xf32>
    %c0_3 = arith.constant 0 : index
    %c0_4 = arith.constant 0 : index
    %3 = vector.load %arg3[%c0_3, %c0_4] : memref<1x32xf32, #tpu.memory_space<vmem>>, vector<1x32xf32>
    %4 = vector.broadcast %3 : vector<1x32xf32> to vector<128x32xf32>
    %5 = arith.addf %2, %4 : vector<128x32xf32>
    %cst_5 = arith.constant dense<0.000000e+00> : vector<32xf32>
    %6 = vector.multi_reduction <add>, %5, %cst_5 [0] : vector<128x32xf32> to vector<32xf32>
    %7 = vector.shape_cast %6 : vector<32xf32> to vector<1x32xf32>
    %8 = arith.mulf %5, %5 : vector<128x32xf32>
    %cst_6 = arith.constant dense<0.000000e+00> : vector<32xf32>
    %9 = vector.multi_reduction <add>, %8, %cst_6 [0] : vector<128x32xf32> to vector<32xf32>
    %10 = vector.shape_cast %9 : vector<32xf32> to vector<1x32xf32>
    %cst_7 = arith.constant 7.812500e-03 : f32
    %11 = vector.broadcast %cst_7 : f32 to vector<1x32xf32>
    %12 = arith.mulf %7, %11 : vector<1x32xf32>
    %cst_8 = arith.constant 7.812500e-03 : f32
    %13 = vector.broadcast %cst_8 : f32 to vector<1x32xf32>
    %14 = arith.mulf %10, %13 : vector<1x32xf32>
    %15 = arith.mulf %12, %12 : vector<1x32xf32>
    %16 = arith.subf %14, %15 : vector<1x32xf32>
    %cst_9 = arith.constant 0.000000e+00 : f32
    %17 = vector.broadcast %cst_9 : f32 to vector<1x32xf32>
    %18 = arith.maximumf %16, %17 : vector<1x32xf32>
    %c0_10 = arith.constant 0 : index
    %c0_11 = arith.constant 0 : index
    %19 = vector.load %arg4[%c0_10, %c0_11] : memref<1x32xf32, #tpu.memory_space<vmem>>, vector<1x32xf32>
    %cst_12 = arith.constant 9.99999974E-6 : f32
    %20 = vector.broadcast %cst_12 : f32 to vector<1x32xf32>
    %21 = arith.addf %18, %20 : vector<1x32xf32>
    %22 = math.rsqrt %21 : vector<1x32xf32>
    %23 = arith.mulf %19, %22 : vector<1x32xf32>
    %c0_13 = arith.constant 0 : index
    %c0_14 = arith.constant 0 : index
    %24 = vector.load %arg5[%c0_13, %c0_14] : memref<1x32xf32, #tpu.memory_space<vmem>>, vector<1x32xf32>
    %25 = arith.mulf %12, %23 : vector<1x32xf32>
    %26 = arith.subf %24, %25 : vector<1x32xf32>
    %27 = vector.broadcast %23 : vector<1x32xf32> to vector<128x32xf32>
    %28 = arith.mulf %5, %27 : vector<128x32xf32>
    %29 = vector.broadcast %26 : vector<1x32xf32> to vector<128x32xf32>
    %30 = arith.addf %28, %29 : vector<128x32xf32>
    %cst_15 = arith.constant 0.000000e+00 : f32
    %31 = vector.broadcast %cst_15 : f32 to vector<128x32xf32>
    %32 = arith.maximumf %30, %31 : vector<128x32xf32>
    %33 = arith.truncf %32 : vector<128x32xf32> to vector<128x32xbf16>
    %c0_16 = arith.constant 0 : index
    %c0_17 = arith.constant 0 : index
    %34 = vector.load %arg6[%c0_16, %c0_17] : memref<128x32xbf16, #tpu.memory_space<vmem>>, vector<128x32xbf16>
    tpu.vector_store %arg6[%c0_16, %c0_17], %33 {strides = array<i32>} : memref<128x32xbf16, #tpu.memory_space<vmem>>, vector<128x32xbf16>,
    return
  }
  func.func @transform_0(%arg0: i32) -> (i32, i32) {
    %c0_i32 = arith.constant 0 : i32
    %c0_i32_0 = arith.constant 0 : i32
    %c0_i32_1 = arith.constant 0 : i32
    return %c0_i32, %c0_i32_0 : i32, i32
  }
  func.func @transform_1(%arg0: i32) -> (i32, i32) {
    %c0_i32 = arith.constant 0 : i32
    %c0_i32_0 = arith.constant 0 : i32
    %c0_i32_1 = arith.constant 0 : i32
    return %c0_i32, %c0_i32_0 : i32, i32
  }
  func.func @transform_2(%arg0: i32) -> (i32, i32) {
    %c0_i32 = arith.constant 0 : i32
    %c0_i32_0 = arith.constant 0 : i32
    %c0_i32_1 = arith.constant 0 : i32
    return %c0_i32, %c0_i32_0 : i32, i32
  }
  func.func @transform_3(%arg0: i32) -> (i32, i32) {
    %c0_i32 = arith.constant 0 : i32
    %c0_i32_0 = arith.constant 0 : i32
    %c0_i32_1 = arith.constant 0 : i32
    return %c0_i32, %c0_i32_0 : i32, i32
  }
  func.func @transform_4(%arg0: i32) -> (i32, i32) {
    %c0_i32 = arith.constant 0 : i32
    %c0_i32_0 = arith.constant 0 : i32
    %c0_i32_1 = arith.constant 0 : i32
    return %c0_i32, %c0_i32_0 : i32, i32
  }
  func.func @transform_5(%arg0: i32) -> (i32, i32) {
    %c0_i32 = arith.constant 0 : i32
    %c0_i32_0 = arith.constant 0 : i32
    %c0_i32_1 = arith.constant 0 : i32
    return %c0_i32, %c0_i32_0 : i32, i32
  }
}

module attributes {stable_mosaic.version = 11 : i64} {
  func.func @kernel(%arg0: i32, %arg1: memref<32x512xbf16, #tpu.memory_space<vmem>>, %arg2: memref<512x64xbf16, #tpu.memory_space<vmem>>, %arg3: memref<1x64xf32, #tpu.memory_space<vmem>>, %arg4: memref<1x64xf32, #tpu.memory_space<vmem>>, %arg5: memref<1x64xf32, #tpu.memory_space<vmem>>, %arg6: memref<32x64xbf16, #tpu.memory_space<vmem>>) attributes {dimension_semantics = [#tpu.dimension_semantics<arbitrary>], iteration_bounds = array<i64: 1>, scalar_prefetch = 0 : i64, scratch_operands = 0 : i64, tpu.core_type = #tpu.core_type<tc>, window_params = [{pipeline_mode = #tpu.pipeline_mode<synchronous>, transform_indices = @transform_0, window_bounds = array<i64: 32, 512>}, {pipeline_mode = #tpu.pipeline_mode<synchronous>, transform_indices = @transform_1, window_bounds = array<i64: 512, 64>}, {pipeline_mode = #tpu.pipeline_mode<synchronous>, transform_indices = @transform_2, window_bounds = array<i64: 1, 64>}, {pipeline_mode = #tpu.pipeline_mode<synchronous>, transform_indices = @transform_3, window_bounds = array<i64: 1, 64>}, {pipeline_mode = #tpu.pipeline_mode<synchronous>, transform_indices = @transform_4, window_bounds = array<i64: 1, 64>}, {pipeline_mode = #tpu.pipeline_mode<synchronous>, transform_indices = @transform_5, window_bounds = array<i64: 32, 64>}]} {
    %c0 = arith.constant 0 : index
    %c0_0 = arith.constant 0 : index
    %0 = vector.load %arg1[%c0, %c0_0] : memref<32x512xbf16, #tpu.memory_space<vmem>>, vector<32x512xbf16>
    %c0_1 = arith.constant 0 : index
    %c0_2 = arith.constant 0 : index
    %1 = vector.load %arg2[%c0_1, %c0_2] : memref<512x64xbf16, #tpu.memory_space<vmem>>, vector<512x64xbf16>
    %cst = arith.constant dense<0.000000e+00> : vector<32x64xf32>
    %2 = tpu.matmul %0, %1, %cst {dimension_numbers = #tpu.dot_dimension_numbers<[1], [0], [0], [1], [0, 0, 1, 1], [], []>} : vector<32x512xbf16>, vector<512x64xbf16>, vector<32x64xf32> -> vector<32x64xf32>
    %c0_3 = arith.constant 0 : index
    %c0_4 = arith.constant 0 : index
    %3 = vector.load %arg3[%c0_3, %c0_4] : memref<1x64xf32, #tpu.memory_space<vmem>>, vector<1x64xf32>
    %4 = vector.broadcast %3 : vector<1x64xf32> to vector<32x64xf32>
    %5 = arith.addf %2, %4 : vector<32x64xf32>
    %cst_5 = arith.constant dense<0.000000e+00> : vector<64xf32>
    %6 = vector.multi_reduction <add>, %5, %cst_5 [0] : vector<32x64xf32> to vector<64xf32>
    %7 = vector.shape_cast %6 : vector<64xf32> to vector<1x64xf32>
    %8 = arith.mulf %5, %5 : vector<32x64xf32>
    %cst_6 = arith.constant dense<0.000000e+00> : vector<64xf32>
    %9 = vector.multi_reduction <add>, %8, %cst_6 [0] : vector<32x64xf32> to vector<64xf32>
    %10 = vector.shape_cast %9 : vector<64xf32> to vector<1x64xf32>
    %cst_7 = arith.constant 3.125000e-02 : f32
    %11 = vector.broadcast %cst_7 : f32 to vector<1x64xf32>
    %12 = arith.mulf %7, %11 : vector<1x64xf32>
    %cst_8 = arith.constant 3.125000e-02 : f32
    %13 = vector.broadcast %cst_8 : f32 to vector<1x64xf32>
    %14 = arith.mulf %10, %13 : vector<1x64xf32>
    %15 = arith.mulf %12, %12 : vector<1x64xf32>
    %16 = arith.subf %14, %15 : vector<1x64xf32>
    %cst_9 = arith.constant 0.000000e+00 : f32
    %17 = vector.broadcast %cst_9 : f32 to vector<1x64xf32>
    %18 = arith.maximumf %16, %17 : vector<1x64xf32>
    %c0_10 = arith.constant 0 : index
    %c0_11 = arith.constant 0 : index
    %19 = vector.load %arg4[%c0_10, %c0_11] : memref<1x64xf32, #tpu.memory_space<vmem>>, vector<1x64xf32>
    %cst_12 = arith.constant 9.99999974E-6 : f32
    %20 = vector.broadcast %cst_12 : f32 to vector<1x64xf32>
    %21 = arith.addf %18, %20 : vector<1x64xf32>
    %22 = math.rsqrt %21 : vector<1x64xf32>
    %23 = arith.mulf %19, %22 : vector<1x64xf32>
    %c0_13 = arith.constant 0 : index
    %c0_14 = arith.constant 0 : index
    %24 = vector.load %arg5[%c0_13, %c0_14] : memref<1x64xf32, #tpu.memory_space<vmem>>, vector<1x64xf32>
    %25 = arith.mulf %12, %23 : vector<1x64xf32>
    %26 = arith.subf %24, %25 : vector<1x64xf32>
    %27 = vector.broadcast %23 : vector<1x64xf32> to vector<32x64xf32>
    %28 = arith.mulf %5, %27 : vector<32x64xf32>
    %29 = vector.broadcast %26 : vector<1x64xf32> to vector<32x64xf32>
    %30 = arith.addf %28, %29 : vector<32x64xf32>
    %cst_15 = arith.constant 0.000000e+00 : f32
    %31 = vector.broadcast %cst_15 : f32 to vector<32x64xf32>
    %32 = arith.maximumf %30, %31 : vector<32x64xf32>
    %33 = arith.truncf %32 : vector<32x64xf32> to vector<32x64xbf16>
    %c0_16 = arith.constant 0 : index
    %c0_17 = arith.constant 0 : index
    %34 = vector.load %arg6[%c0_16, %c0_17] : memref<32x64xbf16, #tpu.memory_space<vmem>>, vector<32x64xbf16>
    tpu.vector_store %arg6[%c0_16, %c0_17], %33 {strides = array<i32>} : memref<32x64xbf16, #tpu.memory_space<vmem>>, vector<32x64xbf16>,
    return
  }
  func.func @transform_0(%arg0: i32) -> (i32, i32) {
    %c0_i32 = arith.constant 0 : i32
    %c0_i32_0 = arith.constant 0 : i32
    %c0_i32_1 = arith.constant 0 : i32
    return %c0_i32, %c0_i32_0 : i32, i32
  }
  func.func @transform_1(%arg0: i32) -> (i32, i32) {
    %c0_i32 = arith.constant 0 : i32
    %c0_i32_0 = arith.constant 0 : i32
    %c0_i32_1 = arith.constant 0 : i32
    return %c0_i32, %c0_i32_0 : i32, i32
  }
  func.func @transform_2(%arg0: i32) -> (i32, i32) {
    %c0_i32 = arith.constant 0 : i32
    %c0_i32_0 = arith.constant 0 : i32
    %c0_i32_1 = arith.constant 0 : i32
    return %c0_i32, %c0_i32_0 : i32, i32
  }
  func.func @transform_3(%arg0: i32) -> (i32, i32) {
    %c0_i32 = arith.constant 0 : i32
    %c0_i32_0 = arith.constant 0 : i32
    %c0_i32_1 = arith.constant 0 : i32
    return %c0_i32, %c0_i32_0 : i32, i32
  }
  func.func @transform_4(%arg0: i32) -> (i32, i32) {
    %c0_i32 = arith.constant 0 : i32
    %c0_i32_0 = arith.constant 0 : i32
    %c0_i32_1 = arith.constant 0 : i32
    return %c0_i32, %c0_i32_0 : i32, i32
  }
  func.func @transform_5(%arg0: i32) -> (i32, i32) {
    %c0_i32 = arith.constant 0 : i32
    %c0_i32_0 = arith.constant 0 : i32
    %c0_i32_1 = arith.constant 0 : i32
    return %c0_i32, %c0_i32_0 : i32, i32
  }
}

module attributes {stable_mosaic.version = 11 : i64} {
  func.func @_fc2_kernel(%arg0: i32, %arg1: memref<2x1024xf32, #tpu.memory_space<vmem>>, %arg2: memref<1024x32xf32, #tpu.memory_space<vmem>>, %arg3: memref<1x32xf32, #tpu.memory_space<vmem>>, %arg4: memref<32x1024xf32, #tpu.memory_space<vmem>>, %arg5: memref<1x1024xf32, #tpu.memory_space<vmem>>, %arg6: memref<2x1024xf32, #tpu.memory_space<vmem>>) attributes {dimension_semantics = [#tpu.dimension_semantics<arbitrary>], iteration_bounds = array<i64: 1>, scalar_prefetch = 0 : i64, scratch_operands = 0 : i64, tpu.core_type = #tpu.core_type<tc>, window_params = [{pipeline_mode = #tpu.pipeline_mode<synchronous>, transform_indices = @transform_0, window_bounds = array<i64: 2, 1024>}, {pipeline_mode = #tpu.pipeline_mode<synchronous>, transform_indices = @transform_1, window_bounds = array<i64: 1024, 32>}, {pipeline_mode = #tpu.pipeline_mode<synchronous>, transform_indices = @transform_2, window_bounds = array<i64: 1, 32>}, {pipeline_mode = #tpu.pipeline_mode<synchronous>, transform_indices = @transform_3, window_bounds = array<i64: 32, 1024>}, {pipeline_mode = #tpu.pipeline_mode<synchronous>, transform_indices = @transform_4, window_bounds = array<i64: 1, 1024>}, {pipeline_mode = #tpu.pipeline_mode<synchronous>, transform_indices = @transform_5, window_bounds = array<i64: 2, 1024>}]} {
    %c0 = arith.constant 0 : index
    %c0_0 = arith.constant 0 : index
    %0 = vector.load %arg1[%c0, %c0_0] : memref<2x1024xf32, #tpu.memory_space<vmem>>, vector<2x1024xf32>
    %c0_1 = arith.constant 0 : index
    %c0_2 = arith.constant 0 : index
    %1 = vector.load %arg2[%c0_1, %c0_2] : memref<1024x32xf32, #tpu.memory_space<vmem>>, vector<1024x32xf32>
    %cst = arith.constant dense<0.000000e+00> : vector<2x32xf32>
    %2 = tpu.matmul %0, %1, %cst {dimension_numbers = #tpu.dot_dimension_numbers<[1], [0], [0], [1], [0, 0, 1, 1], [], []>} : vector<2x1024xf32>, vector<1024x32xf32>, vector<2x32xf32> -> vector<2x32xf32>
    %c0_3 = arith.constant 0 : index
    %c0_4 = arith.constant 0 : index
    %3 = vector.load %arg3[%c0_3, %c0_4] : memref<1x32xf32, #tpu.memory_space<vmem>>, vector<1x32xf32>
    %4 = vector.broadcast %3 : vector<1x32xf32> to vector<2x32xf32>
    %5 = arith.addf %2, %4 : vector<2x32xf32>
    %c0_5 = arith.constant 0 : index
    %c0_6 = arith.constant 0 : index
    %6 = vector.load %arg4[%c0_5, %c0_6] : memref<32x1024xf32, #tpu.memory_space<vmem>>, vector<32x1024xf32>
    %cst_7 = arith.constant dense<0.000000e+00> : vector<2x1024xf32>
    %7 = tpu.matmul %5, %6, %cst_7 {dimension_numbers = #tpu.dot_dimension_numbers<[1], [0], [0], [1], [0, 0, 1, 1], [], []>} : vector<2x32xf32>, vector<32x1024xf32>, vector<2x1024xf32> -> vector<2x1024xf32>
    %c0_8 = arith.constant 0 : index
    %c0_9 = arith.constant 0 : index
    %8 = vector.load %arg5[%c0_8, %c0_9] : memref<1x1024xf32, #tpu.memory_space<vmem>>, vector<1x1024xf32>
    %9 = vector.broadcast %8 : vector<1x1024xf32> to vector<2x1024xf32>
    %10 = arith.addf %7, %9 : vector<2x1024xf32>
    %c0_10 = arith.constant 0 : index
    %c0_11 = arith.constant 0 : index
    %11 = vector.load %arg6[%c0_10, %c0_11] : memref<2x1024xf32, #tpu.memory_space<vmem>>, vector<2x1024xf32>
    tpu.vector_store %arg6[%c0_10, %c0_11], %10 {strides = array<i32>} : memref<2x1024xf32, #tpu.memory_space<vmem>>, vector<2x1024xf32>,
    return
  }
  func.func @transform_0(%arg0: i32) -> (i32, i32) {
    %c0_i32 = arith.constant 0 : i32
    %c0_i32_0 = arith.constant 0 : i32
    %c0_i32_1 = arith.constant 0 : i32
    return %c0_i32, %c0_i32_0 : i32, i32
  }
  func.func @transform_1(%arg0: i32) -> (i32, i32) {
    %c0_i32 = arith.constant 0 : i32
    %c0_i32_0 = arith.constant 0 : i32
    %c0_i32_1 = arith.constant 0 : i32
    return %c0_i32, %c0_i32_0 : i32, i32
  }
  func.func @transform_2(%arg0: i32) -> (i32, i32) {
    %c0_i32 = arith.constant 0 : i32
    %c0_i32_0 = arith.constant 0 : i32
    %c0_i32_1 = arith.constant 0 : i32
    return %c0_i32, %c0_i32_0 : i32, i32
  }
  func.func @transform_3(%arg0: i32) -> (i32, i32) {
    %c0_i32 = arith.constant 0 : i32
    %c0_i32_0 = arith.constant 0 : i32
    %c0_i32_1 = arith.constant 0 : i32
    return %c0_i32, %c0_i32_0 : i32, i32
  }
  func.func @transform_4(%arg0: i32) -> (i32, i32) {
    %c0_i32 = arith.constant 0 : i32
    %c0_i32_0 = arith.constant 0 : i32
    %c0_i32_1 = arith.constant 0 : i32
    return %c0_i32, %c0_i32_0 : i32, i32
  }
  func.func @transform_5(%arg0: i32) -> (i32, i32) {
    %c0_i32 = arith.constant 0 : i32
    %c0_i32_0 = arith.constant 0 : i32
    %c0_i32_1 = arith.constant 0 : i32
    return %c0_i32, %c0_i32_0 : i32, i32
  }
}

module attributes {stable_mosaic.version = 11 : i64} {
  func.func @kernel(%arg0: i32, %arg1: memref<32x576xbf16, #tpu.memory_space<vmem>>, %arg2: memref<576x128xbf16, #tpu.memory_space<vmem>>, %arg3: memref<1x128xf32, #tpu.memory_space<vmem>>, %arg4: memref<1x32xf32, #tpu.memory_space<vmem>>, %arg5: memref<1x32xf32, #tpu.memory_space<vmem>>, %arg6: memref<32x128xbf16, #tpu.memory_space<vmem>>) attributes {dimension_semantics = [#tpu.dimension_semantics<arbitrary>], iteration_bounds = array<i64: 1>, scalar_prefetch = 0 : i64, scratch_operands = 0 : i64, tpu.core_type = #tpu.core_type<tc>, window_params = [{pipeline_mode = #tpu.pipeline_mode<synchronous>, transform_indices = @transform_0, window_bounds = array<i64: 32, 576>}, {pipeline_mode = #tpu.pipeline_mode<synchronous>, transform_indices = @transform_1, window_bounds = array<i64: 576, 128>}, {pipeline_mode = #tpu.pipeline_mode<synchronous>, transform_indices = @transform_2, window_bounds = array<i64: 1, 128>}, {pipeline_mode = #tpu.pipeline_mode<synchronous>, transform_indices = @transform_3, window_bounds = array<i64: 1, 32>}, {pipeline_mode = #tpu.pipeline_mode<synchronous>, transform_indices = @transform_4, window_bounds = array<i64: 1, 32>}, {pipeline_mode = #tpu.pipeline_mode<synchronous>, transform_indices = @transform_5, window_bounds = array<i64: 32, 128>}]} {
    %c0 = arith.constant 0 : index
    %c0_0 = arith.constant 0 : index
    %0 = vector.load %arg1[%c0, %c0_0] : memref<32x576xbf16, #tpu.memory_space<vmem>>, vector<32x576xbf16>
    %c0_1 = arith.constant 0 : index
    %c0_2 = arith.constant 0 : index
    %1 = vector.load %arg2[%c0_1, %c0_2] : memref<576x128xbf16, #tpu.memory_space<vmem>>, vector<576x128xbf16>
    %cst = arith.constant dense<0.000000e+00> : vector<32x128xf32>
    %2 = tpu.matmul %0, %1, %cst {dimension_numbers = #tpu.dot_dimension_numbers<[1], [0], [0], [1], [0, 0, 1, 1], [], []>} : vector<32x576xbf16>, vector<576x128xbf16>, vector<32x128xf32> -> vector<32x128xf32>
    %c0_3 = arith.constant 0 : index
    %c0_4 = arith.constant 0 : index
    %3 = vector.load %arg3[%c0_3, %c0_4] : memref<1x128xf32, #tpu.memory_space<vmem>>, vector<1x128xf32>
    %4 = vector.broadcast %3 : vector<1x128xf32> to vector<32x128xf32>
    %5 = arith.addf %2, %4 : vector<32x128xf32>
    %cst_5 = arith.constant dense<0.000000e+00> : vector<128xf32>
    %6 = vector.multi_reduction <add>, %5, %cst_5 [0] : vector<32x128xf32> to vector<128xf32>
    %7 = vector.shape_cast %6 : vector<128xf32> to vector<1x128xf32>
    %8 = arith.mulf %5, %5 : vector<32x128xf32>
    %cst_6 = arith.constant dense<0.000000e+00> : vector<128xf32>
    %9 = vector.multi_reduction <add>, %8, %cst_6 [0] : vector<32x128xf32> to vector<128xf32>
    %10 = vector.shape_cast %9 : vector<128xf32> to vector<1x128xf32>
    %11 = vector.extract_strided_slice %7 {offsets = [0, 0], sizes = [1, 32], strides = [1, 1]} : vector<1x128xf32> to vector<1x32xf32>
    %12 = vector.extract_strided_slice %10 {offsets = [0, 0], sizes = [1, 32], strides = [1, 1]} : vector<1x128xf32> to vector<1x32xf32>
    %13 = vector.extract_strided_slice %7 {offsets = [0, 32], sizes = [1, 32], strides = [1, 1]} : vector<1x128xf32> to vector<1x32xf32>
    %14 = arith.addf %11, %13 : vector<1x32xf32>
    %15 = vector.extract_strided_slice %10 {offsets = [0, 32], sizes = [1, 32], strides = [1, 1]} : vector<1x128xf32> to vector<1x32xf32>
    %16 = arith.addf %12, %15 : vector<1x32xf32>
    %17 = vector.extract_strided_slice %7 {offsets = [0, 64], sizes = [1, 32], strides = [1, 1]} : vector<1x128xf32> to vector<1x32xf32>
    %18 = arith.addf %14, %17 : vector<1x32xf32>
    %19 = vector.extract_strided_slice %10 {offsets = [0, 64], sizes = [1, 32], strides = [1, 1]} : vector<1x128xf32> to vector<1x32xf32>
    %20 = arith.addf %16, %19 : vector<1x32xf32>
    %21 = vector.extract_strided_slice %7 {offsets = [0, 96], sizes = [1, 32], strides = [1, 1]} : vector<1x128xf32> to vector<1x32xf32>
    %22 = arith.addf %18, %21 : vector<1x32xf32>
    %23 = vector.extract_strided_slice %10 {offsets = [0, 96], sizes = [1, 32], strides = [1, 1]} : vector<1x128xf32> to vector<1x32xf32>
    %24 = arith.addf %20, %23 : vector<1x32xf32>
    %cst_7 = arith.constant 7.812500e-03 : f32
    %25 = vector.broadcast %cst_7 : f32 to vector<1x32xf32>
    %26 = arith.mulf %22, %25 : vector<1x32xf32>
    %cst_8 = arith.constant 7.812500e-03 : f32
    %27 = vector.broadcast %cst_8 : f32 to vector<1x32xf32>
    %28 = arith.mulf %24, %27 : vector<1x32xf32>
    %29 = arith.mulf %26, %26 : vector<1x32xf32>
    %30 = arith.subf %28, %29 : vector<1x32xf32>
    %cst_9 = arith.constant 0.000000e+00 : f32
    %31 = vector.broadcast %cst_9 : f32 to vector<1x32xf32>
    %32 = arith.maximumf %30, %31 : vector<1x32xf32>
    %c0_10 = arith.constant 0 : index
    %c0_11 = arith.constant 0 : index
    %33 = vector.load %arg4[%c0_10, %c0_11] : memref<1x32xf32, #tpu.memory_space<vmem>>, vector<1x32xf32>
    %cst_12 = arith.constant 9.99999974E-6 : f32
    %34 = vector.broadcast %cst_12 : f32 to vector<1x32xf32>
    %35 = arith.addf %32, %34 : vector<1x32xf32>
    %36 = math.rsqrt %35 : vector<1x32xf32>
    %37 = arith.mulf %33, %36 : vector<1x32xf32>
    %c0_13 = arith.constant 0 : index
    %c0_14 = arith.constant 0 : index
    %38 = vector.load %arg5[%c0_13, %c0_14] : memref<1x32xf32, #tpu.memory_space<vmem>>, vector<1x32xf32>
    %39 = arith.mulf %26, %37 : vector<1x32xf32>
    %40 = arith.subf %38, %39 : vector<1x32xf32>
    %41 = tpu.concatenate %37, %37, %37, %37 in 1 : vector<1x32xf32>, vector<1x32xf32>, vector<1x32xf32>, vector<1x32xf32> -> vector<1x128xf32>
    %42 = tpu.concatenate %40, %40, %40, %40 in 1 : vector<1x32xf32>, vector<1x32xf32>, vector<1x32xf32>, vector<1x32xf32> -> vector<1x128xf32>
    %43 = vector.broadcast %41 : vector<1x128xf32> to vector<32x128xf32>
    %44 = arith.mulf %5, %43 : vector<32x128xf32>
    %45 = vector.broadcast %42 : vector<1x128xf32> to vector<32x128xf32>
    %46 = arith.addf %44, %45 : vector<32x128xf32>
    %cst_15 = arith.constant 0.000000e+00 : f32
    %47 = vector.broadcast %cst_15 : f32 to vector<32x128xf32>
    %48 = arith.maximumf %46, %47 : vector<32x128xf32>
    %49 = arith.truncf %48 : vector<32x128xf32> to vector<32x128xbf16>
    %c0_16 = arith.constant 0 : index
    %c0_17 = arith.constant 0 : index
    %50 = vector.load %arg6[%c0_16, %c0_17] : memref<32x128xbf16, #tpu.memory_space<vmem>>, vector<32x128xbf16>
    tpu.vector_store %arg6[%c0_16, %c0_17], %49 {strides = array<i32>} : memref<32x128xbf16, #tpu.memory_space<vmem>>, vector<32x128xbf16>,
    return
  }
  func.func @transform_0(%arg0: i32) -> (i32, i32) {
    %c0_i32 = arith.constant 0 : i32
    %c0_i32_0 = arith.constant 0 : i32
    %c0_i32_1 = arith.constant 0 : i32
    return %c0_i32, %c0_i32_0 : i32, i32
  }
  func.func @transform_1(%arg0: i32) -> (i32, i32) {
    %c0_i32 = arith.constant 0 : i32
    %c0_i32_0 = arith.constant 0 : i32
    %c0_i32_1 = arith.constant 0 : i32
    return %c0_i32, %c0_i32_0 : i32, i32
  }
  func.func @transform_2(%arg0: i32) -> (i32, i32) {
    %c0_i32 = arith.constant 0 : i32
    %c0_i32_0 = arith.constant 0 : i32
    %c0_i32_1 = arith.constant 0 : i32
    return %c0_i32, %c0_i32_0 : i32, i32
  }
  func.func @transform_3(%arg0: i32) -> (i32, i32) {
    %c0_i32 = arith.constant 0 : i32
    %c0_i32_0 = arith.constant 0 : i32
    %c0_i32_1 = arith.constant 0 : i32
    return %c0_i32, %c0_i32_0 : i32, i32
  }
  func.func @transform_4(%arg0: i32) -> (i32, i32) {
    %c0_i32 = arith.constant 0 : i32
    %c0_i32_0 = arith.constant 0 : i32
    %c0_i32_1 = arith.constant 0 : i32
    return %c0_i32, %c0_i32_0 : i32, i32
  }
  func.func @transform_5(%arg0: i32) -> (i32, i32) {
    %c0_i32 = arith.constant 0 : i32
    %c0_i32_0 = arith.constant 0 : i32
    %c0_i32_1 = arith.constant 0 : i32
    return %c0_i32, %c0_i32_0 : i32, i32
  }
}

module attributes {stable_mosaic.version = 11 : i64} {
  func.func @kernel(%arg0: i32, %arg1: memref<128x288xbf16, #tpu.memory_space<vmem>>, %arg2: memref<288x64xbf16, #tpu.memory_space<vmem>>, %arg3: memref<1x64xf32, #tpu.memory_space<vmem>>, %arg4: memref<1x16xf32, #tpu.memory_space<vmem>>, %arg5: memref<1x16xf32, #tpu.memory_space<vmem>>, %arg6: memref<128x64xbf16, #tpu.memory_space<vmem>>) attributes {dimension_semantics = [#tpu.dimension_semantics<arbitrary>], iteration_bounds = array<i64: 1>, scalar_prefetch = 0 : i64, scratch_operands = 0 : i64, tpu.core_type = #tpu.core_type<tc>, window_params = [{pipeline_mode = #tpu.pipeline_mode<synchronous>, transform_indices = @transform_0, window_bounds = array<i64: 128, 288>}, {pipeline_mode = #tpu.pipeline_mode<synchronous>, transform_indices = @transform_1, window_bounds = array<i64: 288, 64>}, {pipeline_mode = #tpu.pipeline_mode<synchronous>, transform_indices = @transform_2, window_bounds = array<i64: 1, 64>}, {pipeline_mode = #tpu.pipeline_mode<synchronous>, transform_indices = @transform_3, window_bounds = array<i64: 1, 16>}, {pipeline_mode = #tpu.pipeline_mode<synchronous>, transform_indices = @transform_4, window_bounds = array<i64: 1, 16>}, {pipeline_mode = #tpu.pipeline_mode<synchronous>, transform_indices = @transform_5, window_bounds = array<i64: 128, 64>}]} {
    %c0 = arith.constant 0 : index
    %c0_0 = arith.constant 0 : index
    %0 = vector.load %arg1[%c0, %c0_0] : memref<128x288xbf16, #tpu.memory_space<vmem>>, vector<128x288xbf16>
    %c0_1 = arith.constant 0 : index
    %c0_2 = arith.constant 0 : index
    %1 = vector.load %arg2[%c0_1, %c0_2] : memref<288x64xbf16, #tpu.memory_space<vmem>>, vector<288x64xbf16>
    %cst = arith.constant dense<0.000000e+00> : vector<128x64xf32>
    %2 = tpu.matmul %0, %1, %cst {dimension_numbers = #tpu.dot_dimension_numbers<[1], [0], [0], [1], [0, 0, 1, 1], [], []>} : vector<128x288xbf16>, vector<288x64xbf16>, vector<128x64xf32> -> vector<128x64xf32>
    %c0_3 = arith.constant 0 : index
    %c0_4 = arith.constant 0 : index
    %3 = vector.load %arg3[%c0_3, %c0_4] : memref<1x64xf32, #tpu.memory_space<vmem>>, vector<1x64xf32>
    %4 = vector.broadcast %3 : vector<1x64xf32> to vector<128x64xf32>
    %5 = arith.addf %2, %4 : vector<128x64xf32>
    %cst_5 = arith.constant dense<0.000000e+00> : vector<64xf32>
    %6 = vector.multi_reduction <add>, %5, %cst_5 [0] : vector<128x64xf32> to vector<64xf32>
    %7 = vector.shape_cast %6 : vector<64xf32> to vector<1x64xf32>
    %8 = arith.mulf %5, %5 : vector<128x64xf32>
    %cst_6 = arith.constant dense<0.000000e+00> : vector<64xf32>
    %9 = vector.multi_reduction <add>, %8, %cst_6 [0] : vector<128x64xf32> to vector<64xf32>
    %10 = vector.shape_cast %9 : vector<64xf32> to vector<1x64xf32>
    %11 = vector.extract_strided_slice %7 {offsets = [0, 0], sizes = [1, 16], strides = [1, 1]} : vector<1x64xf32> to vector<1x16xf32>
    %12 = vector.extract_strided_slice %10 {offsets = [0, 0], sizes = [1, 16], strides = [1, 1]} : vector<1x64xf32> to vector<1x16xf32>
    %13 = vector.extract_strided_slice %7 {offsets = [0, 16], sizes = [1, 16], strides = [1, 1]} : vector<1x64xf32> to vector<1x16xf32>
    %14 = arith.addf %11, %13 : vector<1x16xf32>
    %15 = vector.extract_strided_slice %10 {offsets = [0, 16], sizes = [1, 16], strides = [1, 1]} : vector<1x64xf32> to vector<1x16xf32>
    %16 = arith.addf %12, %15 : vector<1x16xf32>
    %17 = vector.extract_strided_slice %7 {offsets = [0, 32], sizes = [1, 16], strides = [1, 1]} : vector<1x64xf32> to vector<1x16xf32>
    %18 = arith.addf %14, %17 : vector<1x16xf32>
    %19 = vector.extract_strided_slice %10 {offsets = [0, 32], sizes = [1, 16], strides = [1, 1]} : vector<1x64xf32> to vector<1x16xf32>
    %20 = arith.addf %16, %19 : vector<1x16xf32>
    %21 = vector.extract_strided_slice %7 {offsets = [0, 48], sizes = [1, 16], strides = [1, 1]} : vector<1x64xf32> to vector<1x16xf32>
    %22 = arith.addf %18, %21 : vector<1x16xf32>
    %23 = vector.extract_strided_slice %10 {offsets = [0, 48], sizes = [1, 16], strides = [1, 1]} : vector<1x64xf32> to vector<1x16xf32>
    %24 = arith.addf %20, %23 : vector<1x16xf32>
    %cst_7 = arith.constant 0.001953125 : f32
    %25 = vector.broadcast %cst_7 : f32 to vector<1x16xf32>
    %26 = arith.mulf %22, %25 : vector<1x16xf32>
    %cst_8 = arith.constant 0.001953125 : f32
    %27 = vector.broadcast %cst_8 : f32 to vector<1x16xf32>
    %28 = arith.mulf %24, %27 : vector<1x16xf32>
    %29 = arith.mulf %26, %26 : vector<1x16xf32>
    %30 = arith.subf %28, %29 : vector<1x16xf32>
    %cst_9 = arith.constant 0.000000e+00 : f32
    %31 = vector.broadcast %cst_9 : f32 to vector<1x16xf32>
    %32 = arith.maximumf %30, %31 : vector<1x16xf32>
    %c0_10 = arith.constant 0 : index
    %c0_11 = arith.constant 0 : index
    %33 = vector.load %arg4[%c0_10, %c0_11] : memref<1x16xf32, #tpu.memory_space<vmem>>, vector<1x16xf32>
    %cst_12 = arith.constant 9.99999974E-6 : f32
    %34 = vector.broadcast %cst_12 : f32 to vector<1x16xf32>
    %35 = arith.addf %32, %34 : vector<1x16xf32>
    %36 = math.rsqrt %35 : vector<1x16xf32>
    %37 = arith.mulf %33, %36 : vector<1x16xf32>
    %c0_13 = arith.constant 0 : index
    %c0_14 = arith.constant 0 : index
    %38 = vector.load %arg5[%c0_13, %c0_14] : memref<1x16xf32, #tpu.memory_space<vmem>>, vector<1x16xf32>
    %39 = arith.mulf %26, %37 : vector<1x16xf32>
    %40 = arith.subf %38, %39 : vector<1x16xf32>
    %41 = tpu.concatenate %37, %37, %37, %37 in 1 : vector<1x16xf32>, vector<1x16xf32>, vector<1x16xf32>, vector<1x16xf32> -> vector<1x64xf32>
    %42 = tpu.concatenate %40, %40, %40, %40 in 1 : vector<1x16xf32>, vector<1x16xf32>, vector<1x16xf32>, vector<1x16xf32> -> vector<1x64xf32>
    %43 = vector.broadcast %41 : vector<1x64xf32> to vector<128x64xf32>
    %44 = arith.mulf %5, %43 : vector<128x64xf32>
    %45 = vector.broadcast %42 : vector<1x64xf32> to vector<128x64xf32>
    %46 = arith.addf %44, %45 : vector<128x64xf32>
    %cst_15 = arith.constant 0.000000e+00 : f32
    %47 = vector.broadcast %cst_15 : f32 to vector<128x64xf32>
    %48 = arith.maximumf %46, %47 : vector<128x64xf32>
    %49 = arith.truncf %48 : vector<128x64xf32> to vector<128x64xbf16>
    %c0_16 = arith.constant 0 : index
    %c0_17 = arith.constant 0 : index
    %50 = vector.load %arg6[%c0_16, %c0_17] : memref<128x64xbf16, #tpu.memory_space<vmem>>, vector<128x64xbf16>
    tpu.vector_store %arg6[%c0_16, %c0_17], %49 {strides = array<i32>} : memref<128x64xbf16, #tpu.memory_space<vmem>>, vector<128x64xbf16>,
    return
  }
  func.func @transform_0(%arg0: i32) -> (i32, i32) {
    %c0_i32 = arith.constant 0 : i32
    %c0_i32_0 = arith.constant 0 : i32
    %c0_i32_1 = arith.constant 0 : i32
    return %c0_i32, %c0_i32_0 : i32, i32
  }
  func.func @transform_1(%arg0: i32) -> (i32, i32) {
    %c0_i32 = arith.constant 0 : i32
    %c0_i32_0 = arith.constant 0 : i32
    %c0_i32_1 = arith.constant 0 : i32
    return %c0_i32, %c0_i32_0 : i32, i32
  }
  func.func @transform_2(%arg0: i32) -> (i32, i32) {
    %c0_i32 = arith.constant 0 : i32
    %c0_i32_0 = arith.constant 0 : i32
    %c0_i32_1 = arith.constant 0 : i32
    return %c0_i32, %c0_i32_0 : i32, i32
  }
  func.func @transform_3(%arg0: i32) -> (i32, i32) {
    %c0_i32 = arith.constant 0 : i32
    %c0_i32_0 = arith.constant 0 : i32
    %c0_i32_1 = arith.constant 0 : i32
    return %c0_i32, %c0_i32_0 : i32, i32
  }
  func.func @transform_4(%arg0: i32) -> (i32, i32) {
    %c0_i32 = arith.constant 0 : i32
    %c0_i32_0 = arith.constant 0 : i32
    %c0_i32_1 = arith.constant 0 : i32
    return %c0_i32, %c0_i32_0 : i32, i32
  }
  func.func @transform_5(%arg0: i32) -> (i32, i32) {
    %c0_i32 = arith.constant 0 : i32
    %c0_i32_0 = arith.constant 0 : i32
    %c0_i32_1 = arith.constant 0 : i32
    return %c0_i32, %c0_i32_0 : i32, i32
  }
}

module attributes {stable_mosaic.version = 11 : i64} {
  func.func @_mm_bias_kernel(%arg0: i32, %arg1: memref<256x144xf32, #tpu.memory_space<vmem>>, %arg2: memref<144x12xf32, #tpu.memory_space<vmem>>, %arg3: memref<1x12xf32, #tpu.memory_space<vmem>>, %arg4: memref<256x12xf32, #tpu.memory_space<vmem>>) attributes {dimension_semantics = [#tpu.dimension_semantics<parallel>], iteration_bounds = array<i64: 2>, scalar_prefetch = 0 : i64, scratch_operands = 0 : i64, tpu.core_type = #tpu.core_type<tc>, window_params = [{transform_indices = @transform_0, window_bounds = array<i64: 256, 144>}, {pipeline_mode = #tpu.pipeline_mode<synchronous>, transform_indices = @transform_1, window_bounds = array<i64: 144, 12>}, {pipeline_mode = #tpu.pipeline_mode<synchronous>, transform_indices = @transform_2, window_bounds = array<i64: 1, 12>}, {transform_indices = @transform_3, window_bounds = array<i64: 256, 12>}]} {
    %c0 = arith.constant 0 : index
    %c0_0 = arith.constant 0 : index
    %0 = vector.load %arg1[%c0, %c0_0] : memref<256x144xf32, #tpu.memory_space<vmem>>, vector<256x144xf32>
    %c0_1 = arith.constant 0 : index
    %c0_2 = arith.constant 0 : index
    %1 = vector.load %arg2[%c0_1, %c0_2] : memref<144x12xf32, #tpu.memory_space<vmem>>, vector<144x12xf32>
    %cst = arith.constant dense<0.000000e+00> : vector<256x12xf32>
    %2 = tpu.matmul %0, %1, %cst {dimension_numbers = #tpu.dot_dimension_numbers<[1], [0], [0], [1], [0, 0, 1, 1], [], []>} : vector<256x144xf32>, vector<144x12xf32>, vector<256x12xf32> -> vector<256x12xf32>
    %c0_3 = arith.constant 0 : index
    %c0_4 = arith.constant 0 : index
    %3 = vector.load %arg3[%c0_3, %c0_4] : memref<1x12xf32, #tpu.memory_space<vmem>>, vector<1x12xf32>
    %4 = vector.broadcast %3 : vector<1x12xf32> to vector<256x12xf32>
    %5 = arith.addf %2, %4 : vector<256x12xf32>
    %c0_5 = arith.constant 0 : index
    %c0_6 = arith.constant 0 : index
    %6 = vector.load %arg4[%c0_5, %c0_6] : memref<256x12xf32, #tpu.memory_space<vmem>>, vector<256x12xf32>
    tpu.vector_store %arg4[%c0_5, %c0_6], %5 {strides = array<i32>} : memref<256x12xf32, #tpu.memory_space<vmem>>, vector<256x12xf32>,
    return
  }
  func.func @transform_0(%arg0: i32) -> (i32, i32) {
    %c0_i32 = arith.constant 0 : i32
    %c0_i32_0 = arith.constant 0 : i32
    return %arg0, %c0_i32 : i32, i32
  }
  func.func @transform_1(%arg0: i32) -> (i32, i32) {
    %c0_i32 = arith.constant 0 : i32
    %c0_i32_0 = arith.constant 0 : i32
    %c0_i32_1 = arith.constant 0 : i32
    return %c0_i32, %c0_i32_0 : i32, i32
  }
  func.func @transform_2(%arg0: i32) -> (i32, i32) {
    %c0_i32 = arith.constant 0 : i32
    %c0_i32_0 = arith.constant 0 : i32
    %c0_i32_1 = arith.constant 0 : i32
    return %c0_i32, %c0_i32_0 : i32, i32
  }
  func.func @transform_3(%arg0: i32) -> (i32, i32) {
    %c0_i32 = arith.constant 0 : i32
    %c0_i32_0 = arith.constant 0 : i32
    return %arg0, %c0_i32 : i32, i32
  }
}

</mosaic_0001>

<llo_original>
// kernel: ae_forward.7
$region0: #{ae_forward.7}
  #allocation0 [shape = 'u32[]', space=smem, size = 0x4, offset = 0x4, fixed_abs, tag = 'smem constant byte address 0x4 - core index']
  #allocation1 [shape = 'u32[144,128]{1,0:T(1,128)}', space=vmem, size = 0x12000, scoped, tag = 'internal scratch']
  %s0 = inlined_call_operand.vmem [shape: bf16[512,48], index: 0, kind: input, shape index: {}]
  %s1 = inlined_call_operand.vmem [shape: bf16[48,16], index: 1, kind: input, shape index: {}]
  %s2 = inlined_call_operand.vmem [shape: f32[1,16], index: 2, kind: input, shape index: {}]
  %s3 = inlined_call_operand.vmem [shape: f32[1,16], index: 3, kind: input, shape index: {}]
  %s4 = inlined_call_operand.vmem [shape: f32[1,16], index: 4, kind: input, shape index: {}]
  %s5 = inlined_call_operand.vmem [shape: bf16[512,16], index: 5, kind: output, shape index: {}]
  %s6 = sld [smem:[#allocation0]]
  $region30: #{ae_forward.7} parent=0
    _
  %s8 = ssub.s32 1, %s6
  %s9 = scalar_select 0, %s8, %s6
  // Predicated region
  $region2: #{ae_forward.7} parent=0 // pred_check
    _
  $region3: #{ae_forward.7} parent=0 // pred_check_branch
    %11 = sbr.rel (0) target = $region5
  $region4: #{ae_forward.7} parent=0 // pred_region
    _
  $region5: #{ae_forward.7} parent=0 // pred_fallthru
    _
  // Predicated region
  $region6: #{ae_forward.7} parent=0 // pred_check
    _
  $region7: #{ae_forward.7} parent=0 // pred_check_branch
    %13 = sbr.rel (0) target = $region9
  $region8: #{ae_forward.7} parent=0 // pred_region
    _
  $region9: #{ae_forward.7} parent=0 // pred_fallthru
    _
  // Predicated region
  $region10: #{ae_forward.7} parent=0 // pred_check
    _
  $region11: #{ae_forward.7} parent=0 // pred_check_branch
    %15 = sbr.rel (0) target = $region13
  $region12: #{ae_forward.7} parent=0 // pred_region
    _
  $region13: #{ae_forward.7} parent=0 // pred_fallthru
    _
  // Predicated region
  $region14: #{ae_forward.7} parent=0 // pred_check
    _
  $region15: #{ae_forward.7} parent=0 // pred_check_branch
    %17 = sbr.rel (0) target = $region17
  $region16: #{ae_forward.7} parent=0 // pred_region
    _
  $region17: #{ae_forward.7} parent=0 // pred_fallthru
    _
  // Predicated region
  $region18: #{ae_forward.7} parent=0 // pred_check
    _
  $region19: #{ae_forward.7} parent=0 // pred_check_branch
    %19 = sbr.rel (0) target = $region21
  $region20: #{ae_forward.7} parent=0 // pred_region
    _
  $region21: #{ae_forward.7} parent=0 // pred_fallthru
    _
  %v21 = vld [vmem:[%s0] sm:$0xf]
  %v22 = vld [vmem:[%s0 + $0x4] sm:$0xf]
  %v23 = vld [vmem:[%s0 + $0x8] sm:$0xf]
  %v24 = vld [vmem:[%s0 + $0xc] sm:$0xf]
  %v25 = vld [vmem:[%s0 + $0x10] sm:$0xf]
  %v26 = vld [vmem:[%s0 + $0x14] sm:$0xf]
  %v27 = vld [vmem:[%s0 + $0x18] sm:$0xf]
  %v28 = vld [vmem:[%s0 + $0x1c] sm:$0xf]
  %v29 = vld [vmem:[%s0 + $0x20] sm:$0xf]
  %v30 = vld [vmem:[%s0 + $0x24] sm:$0xf]
  %v31 = vld [vmem:[%s0 + $0x28] sm:$0xf]
  %v32 = vld [vmem:[%s0 + $0x2c] sm:$0xf]
  %v33 = vld [vmem:[%s0 + $0x30] sm:$0xf]
  %v34 = vld [vmem:[%s0 + $0x34] sm:$0xf]
  %v35 = vld [vmem:[%s0 + $0x38] sm:$0xf]
  %v36 = vld [vmem:[%s0 + $0x3c] sm:$0xf]
  %v37 = vld [vmem:[%s0 + $0x40] sm:$0xf]
  %v38 = vld [vmem:[%s0 + $0x44] sm:$0xf]
  %v39 = vld [vmem:[%s0 + $0x48] sm:$0xf]
  %v40 = vld [vmem:[%s0 + $0x4c] sm:$0xf]
  %v41 = vld [vmem:[%s0 + $0x50] sm:$0xf]
  %v42 = vld [vmem:[%s0 + $0x54] sm:$0xf]
  %v43 = vld [vmem:[%s0 + $0x58] sm:$0xf]
  %v44 = vld [vmem:[%s0 + $0x5c] sm:$0xf]
  %v45 = vld [vmem:[%s0 + $0x60] sm:$0xf]
  %v46 = vld [vmem:[%s0 + $0x64] sm:$0xf]
  %v47 = vld [vmem:[%s0 + $0x68] sm:$0xf]
  %v48 = vld [vmem:[%s0 + $0x6c] sm:$0xf]
  %v49 = vld [vmem:[%s0 + $0x70] sm:$0xf]
  %v50 = vld [vmem:[%s0 + $0x74] sm:$0xf]
  %v51 = vld [vmem:[%s0 + $0x78] sm:$0xf]
  %v52 = vld [vmem:[%s0 + $0x7c] sm:$0xf]
  %v53 = vld [vmem:[%s0 + $0x80] sm:$0xf]
  %v54 = vld [vmem:[%s0 + $0x84] sm:$0xf]
  %v55 = vld [vmem:[%s0 + $0x88] sm:$0xf]
  %v56 = vld [vmem:[%s0 + $0x8c] sm:$0xf]
  %v57 = vld [vmem:[%s0 + $0x90] sm:$0xf]
  %v58 = vld [vmem:[%s0 + $0x94] sm:$0xf]
  %v59 = vld [vmem:[%s0 + $0x98] sm:$0xf]
  %v60 = vld [vmem:[%s0 + $0x9c] sm:$0xf]
  %v61 = vld [vmem:[%s0 + $0xa0] sm:$0xf]
  %v62 = vld [vmem:[%s0 + $0xa4] sm:$0xf]
  %v63 = vld [vmem:[%s0 + $0xa8] sm:$0xf]
  %v64 = vld [vmem:[%s0 + $0xac] sm:$0xf]
  %v65 = vld [vmem:[%s0 + $0xb0] sm:$0xf]
  %v66 = vld [vmem:[%s0 + $0xb4] sm:$0xf]
  %v67 = vld [vmem:[%s0 + $0xb8] sm:$0xf]
  %v68 = vld [vmem:[%s0 + $0xbc] sm:$0xf]
  %v69 = vld [vmem:[%s0 + $0xc0] sm:$0xf]
  %v70 = vld [vmem:[%s0 + $0xc4] sm:$0xf]
  %v71 = vld [vmem:[%s0 + $0xc8] sm:$0xf]
  %v72 = vld [vmem:[%s0 + $0xcc] sm:$0xf]
  %v73 = vld [vmem:[%s0 + $0xd0] sm:$0xf]
  %v74 = vld [vmem:[%s0 + $0xd4] sm:$0xf]
  %v75 = vld [vmem:[%s0 + $0xd8] sm:$0xf]
  %v76 = vld [vmem:[%s0 + $0xdc] sm:$0xf]
  %v77 = vld [vmem:[%s0 + $0xe0] sm:$0xf]
  %v78 = vld [vmem:[%s0 + $0xe4] sm:$0xf]
  %v79 = vld [vmem:[%s0 + $0xe8] sm:$0xf]
  %v80 = vld [vmem:[%s0 + $0xec] sm:$0xf]
  %v81 = vld [vmem:[%s0 + $0xf0] sm:$0xf]
  %v82 = vld [vmem:[%s0 + $0xf4] sm:$0xf]
  %v83 = vld [vmem:[%s0 + $0xf8] sm:$0xf]
  %v84 = vld [vmem:[%s0 + $0xfc] sm:$0xf]
  %v85 = vld [vmem:[%s1] sm:$0xf]
  %v86 = vld [vmem:[%s1 + $0x4] sm:$0xf]
  %v87 = vld [vmem:[%s1 + $0x8] sm:$0xf]
  %v88 = vld [vmem:[%s1 + $0xc] sm:$0xf]
  %v89 = vld [vmem:[%s1 + $0x10] sm:$0xf]
  %v90 = vld [vmem:[%s1 + $0x14] sm:$0xf]
  %v91 = vld [vmem:[%s2] sm:$0x1]
  %v93 = vlaneseq
  %v94 = vshrl.u32 %v93, 7
  %v95 = vsub.s32 0, %v94
  %v96 = vrot.slane %v91, %v95
  %v162 = vunpack.c.l.b16 %v21
  %v163 = vunpack.c.l.b16 %v22
  %v164 = vunpack.c.l.b16 %v23
  %v165 = vunpack.c.l.b16 %v24
  %v166 = vunpack.c.l.b16 %v25
  %v167 = vunpack.c.l.b16 %v26
  %v168 = vunpack.c.l.b16 %v27
  %v169 = vunpack.c.l.b16 %v28
  %v170 = vunpack.c.l.b16 %v29
  %v171 = vunpack.c.l.b16 %v30
  %v172 = vunpack.c.l.b16 %v31
  %v173 = vunpack.c.l.b16 %v32
  %v174 = vunpack.c.l.b16 %v33
  %v175 = vunpack.c.l.b16 %v34
  %v176 = vunpack.c.l.b16 %v35
  %v177 = vunpack.c.l.b16 %v36
  %v178 = vunpack.c.l.b16 %v37
  %v179 = vunpack.c.l.b16 %v38
  %v180 = vunpack.c.l.b16 %v39
  %v181 = vunpack.c.l.b16 %v40
  %v182 = vunpack.c.l.b16 %v41
  %v183 = vunpack.c.l.b16 %v42
  %v184 = vunpack.c.l.b16 %v43
  %v185 = vunpack.c.l.b16 %v44
  %v186 = vunpack.c.l.b16 %v45
  %v187 = vunpack.c.l.b16 %v46
  %v188 = vunpack.c.l.b16 %v47
  %v189 = vunpack.c.l.b16 %v48
  %v190 = vunpack.c.l.b16 %v49
  %v191 = vunpack.c.l.b16 %v50
  %v192 = vunpack.c.l.b16 %v51
  %v193 = vunpack.c.l.b16 %v52
  %v194 = vunpack.c.l.b16 %v53
  %v195 = vunpack.c.l.b16 %v54
  %v196 = vunpack.c.l.b16 %v55
  %v197 = vunpack.c.l.b16 %v56
  %v198 = vunpack.c.l.b16 %v57
  %v199 = vunpack.c.l.b16 %v58
  %v200 = vunpack.c.l.b16 %v59
  %v201 = vunpack.c.l.b16 %v60
  %v202 = vunpack.c.l.b16 %v61
  %v203 = vunpack.c.l.b16 %v62
  %v204 = vunpack.c.l.b16 %v63
  %v205 = vunpack.c.l.b16 %v64
  %v206 = vunpack.c.l.b16 %v65
  %v207 = vunpack.c.l.b16 %v66
  %v208 = vunpack.c.l.b16 %v67
  %v209 = vunpack.c.l.b16 %v68
  %v210 = vunpack.c.l.b16 %v69
  %v211 = vunpack.c.l.b16 %v70
  %v212 = vunpack.c.l.b16 %v71
  %v213 = vunpack.c.l.b16 %v72
  %v214 = vunpack.c.l.b16 %v73
  %v215 = vunpack.c.l.b16 %v74
  %v216 = vunpack.c.l.b16 %v75
  %v217 = vunpack.c.l.b16 %v76
  %v218 = vunpack.c.l.b16 %v77
  %v219 = vunpack.c.l.b16 %v78
  %v220 = vunpack.c.l.b16 %v79
  %v221 = vunpack.c.l.b16 %v80
  %v222 = vunpack.c.l.b16 %v81
  %v223 = vunpack.c.l.b16 %v82
  %v224 = vunpack.c.l.b16 %v83
  %v225 = vunpack.c.l.b16 %v84
  %v226 = vpack.c.b16 %v163, %v162
  %v227 = vpack.c.b16 %v165, %v164
  %v228 = vpack.c.b16 %v167, %v166
  %v229 = vpack.c.b16 %v169, %v168
  %v230 = vpack.c.b16 %v171, %v170
  %v231 = vpack.c.b16 %v173, %v172
  %v232 = vpack.c.b16 %v175, %v174
  %v233 = vpack.c.b16 %v177, %v176
  %v234 = vpack.c.b16 %v179, %v178
  %v235 = vpack.c.b16 %v181, %v180
  %v236 = vpack.c.b16 %v183, %v182
  %v237 = vpack.c.b16 %v185, %v184
  %v238 = vpack.c.b16 %v187, %v186
  %v239 = vpack.c.b16 %v189, %v188
  %v240 = vpack.c.b16 %v191, %v190
  %v241 = vpack.c.b16 %v193, %v192
  %v242 = vpack.c.b16 %v195, %v194
  %v243 = vpack.c.b16 %v197, %v196
  %v244 = vpack.c.b16 %v199, %v198
  %v245 = vpack.c.b16 %v201, %v200
  %v246 = vpack.c.b16 %v203, %v202
  %v247 = vpack.c.b16 %v205, %v204
  %v248 = vpack.c.b16 %v207, %v206
  %v249 = vpack.c.b16 %v209, %v208
  %v250 = vpack.c.b16 %v211, %v210
  %v251 = vpack.c.b16 %v213, %v212
  %v252 = vpack.c.b16 %v215, %v214
  %v253 = vpack.c.b16 %v217, %v216
  %v254 = vpack.c.b16 %v219, %v218
  %v255 = vpack.c.b16 %v221, %v220
  %v256 = vpack.c.b16 %v223, %v222
  %v257 = vpack.c.b16 %v225, %v224
  %v264 = vunpack.c.l.b16 %v85
  %v265 = vunpack.c.l.b16 %v86
  %v266 = vunpack.c.l.b16 %v87
  %v267 = vunpack.c.l.b16 %v88
  %v268 = vunpack.c.l.b16 %v89
  %v269 = vunpack.c.l.b16 %v90
  %v270 = vpack.c.b16 %v265, %v264
  %v271 = vpack.c.b16 %v267, %v266
  %v272 = vpack.c.b16 %v269, %v268
  %vm276 = vcmask 392192
  %v278 = vsel %vm276, %v226, 0
  %v281 = vsel %vm276, %v227, 0
  %v284 = vsel %vm276, %v228, 0
  %v287 = vsel %vm276, %v229, 0
  %v290 = vsel %vm276, %v230, 0
  %v293 = vsel %vm276, %v231, 0
  %v296 = vsel %vm276, %v232, 0
  %v299 = vsel %vm276, %v233, 0
  %v302 = vsel %vm276, %v234, 0
  %v305 = vsel %vm276, %v235, 0
  %v308 = vsel %vm276, %v236, 0
  %v311 = vsel %vm276, %v237, 0
  %v314 = vsel %vm276, %v238, 0
  %v317 = vsel %vm276, %v239, 0
  %v320 = vsel %vm276, %v240, 0
  %v323 = vsel %vm276, %v241, 0
  %v326 = vsel %vm276, %v242, 0
  %v329 = vsel %vm276, %v243, 0
  %v332 = vsel %vm276, %v244, 0
  %v335 = vsel %vm276, %v245, 0
  %v338 = vsel %vm276, %v246, 0
  %v341 = vsel %vm276, %v247, 0
  %v344 = vsel %vm276, %v248, 0
  %v347 = vsel %vm276, %v249, 0
  %v350 = vsel %vm276, %v250, 0
  %v353 = vsel %vm276, %v251, 0
  %v356 = vsel %vm276, %v252, 0
  %v359 = vsel %vm276, %v253, 0
  %v362 = vsel %vm276, %v254, 0
  %v365 = vsel %vm276, %v255, 0
  %v368 = vsel %vm276, %v256, 0
  %v371 = vsel %vm276, %v257, 0
  %373 = vmatprep.subr.bf16.mxu0 0
  %374 = vmatpush1.bf16.msra.mxu0 %v270
  %375 = vmatprep.subr.bf16.mxu0 0
  %376 = vmatpush1.bf16.msra.mxu0 %v271
  %377 = vmatprep.subr.bf16.mxu0 0
  %378 = vmatpush1.bf16.msra.mxu0 %v272
  %379 = vmatprep.subr.bf16.mxu0 0
  %380 = vmatpush1.bf16.msra.mxu0 0
  %381 = vmatprep.subr.bf16.mxu0 0
  %382 = vmatpush1.bf16.msra.mxu0 0
  %383 = vmatprep.subr.bf16.mxu0 0
  %384 = vmatpush1.bf16.msra.mxu0 0
  %385 = vmatprep.subr.bf16.mxu0 0
  %386 = vmatpush1.bf16.msra.mxu0 0
  %387 = vmatprep.subr.bf16.mxu0 0
  %388 = vmatpush1.bf16.msra.mxu0 0
  %389 = vmatprep.subr.bf16.mxu0 0
  %390 = vmatpush1.bf16.msra.mxu0 0
  %391 = vmatprep.subr.bf16.mxu0 0
  %392 = vmatpush1.bf16.msra.mxu0 0
  %393 = vmatprep.subr.bf16.mxu0 0
  %394 = vmatpush1.bf16.msra.mxu0 0
  %395 = vmatprep.subr.bf16.mxu0 0
  %396 = vmatpush1.bf16.msra.mxu0 0
  %397 = vmatprep.subr.bf16.mxu0 0
  %398 = vmatpush1.bf16.msra.mxu0 0
  %399 = vmatprep.subr.bf16.mxu0 0
  %400 = vmatpush1.bf16.msra.mxu0 0
  %401 = vmatprep.subr.bf16.mxu0 0
  %402 = vmatpush1.bf16.msra.mxu0 0
  %403 = vmatprep.subr.bf16.mxu0 0
  %404 = vmatpush1.bf16.msra.mxu0 0
  %405 = vmatprep.mubr.bf16.mxu0 0
  %406 = vmatmul.mubr.bf16.gmra.mrb[0].mxu0 %v278
  %v407 = vpop.f32.mrb[0].mxu0
  %v408 = vadd.f32 %v96, %v407
  %v409 = vpop.f32.mrb[0].mxu0
  %v410 = vpop.f32.mrb[0].mxu0
  %v411 = vadd.f32 %v96, %v410
  %v412 = vpop.f32.mrb[0].mxu0
  %413 = vmatprep.mubr.bf16.mxu0 0
  %414 = vmatmul.mubr.bf16.gmra.mrb[0].mxu0 %v281
  %v415 = vpop.f32.mrb[0].mxu0
  %v416 = vadd.f32 %v96, %v415
  %v417 = vpop.f32.mrb[0].mxu0
  %v418 = vpop.f32.mrb[0].mxu0
  %v419 = vadd.f32 %v96, %v418
  %v420 = vpop.f32.mrb[0].mxu0
  %421 = vmatprep.mubr.bf16.mxu0 0
  %422 = vmatmul.mubr.bf16.gmra.mrb[0].mxu0 %v284
  %v423 = vpop.f32.mrb[0].mxu0
  %v424 = vadd.f32 %v96, %v423
  %v425 = vpop.f32.mrb[0].mxu0
  %v426 = vpop.f32.mrb[0].mxu0
  %v427 = vadd.f32 %v96, %v426
  %v428 = vpop.f32.mrb[0].mxu0
  %429 = vmatprep.mubr.bf16.mxu0 0
  %430 = vmatmul.mubr.bf16.gmra.mrb[0].mxu0 %v287
  %v431 = vpop.f32.mrb[0].mxu0
  %v432 = vadd.f32 %v96, %v431
  %v433 = vpop.f32.mrb[0].mxu0
  %v434 = vpop.f32.mrb[0].mxu0
  %v435 = vadd.f32 %v96, %v434
  %v436 = vpop.f32.mrb[0].mxu0
  %437 = vmatprep.mubr.bf16.mxu0 0
  %438 = vmatmul.mubr.bf16.gmra.mrb[0].mxu0 %v290
  %v439 = vpop.f32.mrb[0].mxu0
  %v440 = vadd.f32 %v96, %v439
  %v441 = vpop.f32.mrb[0].mxu0
  %v442 = vpop.f32.mrb[0].mxu0
  %v443 = vadd.f32 %v96, %v442
  %v444 = vpop.f32.mrb[0].mxu0
  %445 = vmatprep.mubr.bf16.mxu0 0
  %446 = vmatmul.mubr.bf16.gmra.mrb[0].mxu0 %v293
  %v447 = vpop.f32.mrb[0].mxu0
  %v448 = vadd.f32 %v96, %v447
  %v449 = vpop.f32.mrb[0].mxu0
  %v450 = vpop.f32.mrb[0].mxu0
  %v451 = vadd.f32 %v96, %v450
  %v452 = vpop.f32.mrb[0].mxu0
  %453 = vmatprep.mubr.bf16.mxu0 0
  %454 = vmatmul.mubr.bf16.gmra.mrb[0].mxu0 %v296
  %v455 = vpop.f32.mrb[0].mxu0
  %v456 = vadd.f32 %v96, %v455
  %v457 = vpop.f32.mrb[0].mxu0
  %v458 = vpop.f32.mrb[0].mxu0
  %v459 = vadd.f32 %v96, %v458
  %v460 = vpop.f32.mrb[0].mxu0
  %461 = vmatprep.mubr.bf16.mxu0 0
  %462 = vmatmul.mubr.bf16.gmra.mrb[0].mxu0 %v299
  %v463 = vpop.f32.mrb[0].mxu0
  %v464 = vadd.f32 %v96, %v463
  %v465 = vpop.f32.mrb[0].mxu0
  %v466 = vpop.f32.mrb[0].mxu0
  %v467 = vadd.f32 %v96, %v466
  %v468 = vpop.f32.mrb[0].mxu0
  %469 = vmatprep.mubr.bf16.mxu0 0
  %470 = vmatmul.mubr.bf16.gmra.mrb[0].mxu0 %v302
  %v471 = vpop.f32.mrb[0].mxu0
  %v472 = vadd.f32 %v96, %v471
  %v473 = vpop.f32.mrb[0].mxu0
  %v474 = vpop.f32.mrb[0].mxu0
  %v475 = vadd.f32 %v96, %v474
  %v476 = vpop.f32.mrb[0].mxu0
  %477 = vmatprep.mubr.bf16.mxu0 0
  %478 = vmatmul.mubr.bf16.gmra.mrb[0].mxu0 %v305
  %v479 = vpop.f32.mrb[0].mxu0
  %v480 = vadd.f32 %v96, %v479
  %v481 = vpop.f32.mrb[0].mxu0
  %v482 = vpop.f32.mrb[0].mxu0
  %v483 = vadd.f32 %v96, %v482
  %v484 = vpop.f32.mrb[0].mxu0
  %485 = vmatprep.mubr.bf16.mxu0 0
  %486 = vmatmul.mubr.bf16.gmra.mrb[0].mxu0 %v308
  %v487 = vpop.f32.mrb[0].mxu0
  %v488 = vadd.f32 %v96, %v487
  %v489 = vpop.f32.mrb[0].mxu0
  %v490 = vpop.f32.mrb[0].mxu0
  %v491 = vadd.f32 %v96, %v490
  %v492 = vpop.f32.mrb[0].mxu0
  %493 = vmatprep.mubr.bf16.mxu0 0
  %494 = vmatmul.mubr.bf16.gmra.mrb[0].mxu0 %v311
  %v495 = vpop.f32.mrb[0].mxu0
  %v496 = vadd.f32 %v96, %v495
  %v497 = vpop.f32.mrb[0].mxu0
  %v498 = vpop.f32.mrb[0].mxu0
  %v499 = vadd.f32 %v96, %v498
  %v500 = vpop.f32.mrb[0].mxu0
  %501 = vmatprep.mubr.bf16.mxu0 0
  %502 = vmatmul.mubr.bf16.gmra.mrb[0].mxu0 %v314
  %v503 = vpop.f32.mrb[0].mxu0
  %v504 = vadd.f32 %v96, %v503
  %v505 = vpop.f32.mrb[0].mxu0
  %v506 = vpop.f32.mrb[0].mxu0
  %v507 = vadd.f32 %v96, %v506
  %v508 = vpop.f32.mrb[0].mxu0
  %509 = vmatprep.mubr.bf16.mxu0 0
  %510 = vmatmul.mubr.bf16.gmra.mrb[0].mxu0 %v317
  %v511 = vpop.f32.mrb[0].mxu0
  %v512 = vadd.f32 %v96, %v511
  %v513 = vpop.f32.mrb[0].mxu0
  %v514 = vpop.f32.mrb[0].mxu0
  %v515 = vadd.f32 %v96, %v514
  %v516 = vpop.f32.mrb[0].mxu0
  %517 = vmatprep.mubr.bf16.mxu0 0
  %518 = vmatmul.mubr.bf16.gmra.mrb[0].mxu0 %v320
  %v519 = vpop.f32.mrb[0].mxu0
  %v520 = vadd.f32 %v96, %v519
  %v521 = vpop.f32.mrb[0].mxu0
  %v522 = vpop.f32.mrb[0].mxu0
  %v523 = vadd.f32 %v96, %v522
  %v524 = vpop.f32.mrb[0].mxu0
  %525 = vmatprep.mubr.bf16.mxu0 0
  %526 = vmatmul.mubr.bf16.gmra.mrb[0].mxu0 %v323
  %v527 = vpop.f32.mrb[0].mxu0
  %v528 = vadd.f32 %v96, %v527
  %v529 = vpop.f32.mrb[0].mxu0
  %v530 = vpop.f32.mrb[0].mxu0
  %v531 = vadd.f32 %v96, %v530
  %v532 = vpop.f32.mrb[0].mxu0
  %533 = vmatprep.mubr.bf16.mxu0 0
  %534 = vmatmul.mubr.bf16.gmra.mrb[0].mxu0 %v326
  %v535 = vpop.f32.mrb[0].mxu0
  %v536 = vadd.f32 %v96, %v535
  %v537 = vpop.f32.mrb[0].mxu0
  %v538 = vpop.f32.mrb[0].mxu0
  %v539 = vadd.f32 %v96, %v538
  %v540 = vpop.f32.mrb[0].mxu0
  %541 = vmatprep.mubr.bf16.mxu0 0
  %542 = vmatmul.mubr.bf16.gmra.mrb[0].mxu0 %v329
  %v543 = vpop.f32.mrb[0].mxu0
  %v544 = vadd.f32 %v96, %v543
  %v545 = vpop.f32.mrb[0].mxu0
  %v546 = vpop.f32.mrb[0].mxu0
  %v547 = vadd.f32 %v96, %v546
  %v548 = vpop.f32.mrb[0].mxu0
  %549 = vmatprep.mubr.bf16.mxu0 0
  %550 = vmatmul.mubr.bf16.gmra.mrb[0].mxu0 %v332
  %v551 = vpop.f32.mrb[0].mxu0
  %v552 = vadd.f32 %v96, %v551
  %v553 = vpop.f32.mrb[0].mxu0
  %v554 = vpop.f32.mrb[0].mxu0
  %v555 = vadd.f32 %v96, %v554
  %v556 = vpop.f32.mrb[0].mxu0
  %557 = vmatprep.mubr.bf16.mxu0 0
  %558 = vmatmul.mubr.bf16.gmra.mrb[0].mxu0 %v335
  %v559 = vpop.f32.mrb[0].mxu0
  %v560 = vadd.f32 %v96, %v559
  %v561 = vpop.f32.mrb[0].mxu0
  %v562 = vpop.f32.mrb[0].mxu0
  %v563 = vadd.f32 %v96, %v562
  %v564 = vpop.f32.mrb[0].mxu0
  %565 = vmatprep.mubr.bf16.mxu0 0
  %566 = vmatmul.mubr.bf16.gmra.mrb[0].mxu0 %v338
  %v567 = vpop.f32.mrb[0].mxu0
  %v568 = vadd.f32 %v96, %v567
  %v569 = vpop.f32.mrb[0].mxu0
  %v570 = vpop.f32.mrb[0].mxu0
  %v571 = vadd.f32 %v96, %v570
  %v572 = vpop.f32.mrb[0].mxu0
  %573 = vmatprep.mubr.bf16.mxu0 0
  %574 = vmatmul.mubr.bf16.gmra.mrb[0].mxu0 %v341
  %v575 = vpop.f32.mrb[0].mxu0
  %v576 = vadd.f32 %v96, %v575
  %v577 = vpop.f32.mrb[0].mxu0
  %v578 = vpop.f32.mrb[0].mxu0
  %v579 = vadd.f32 %v96, %v578
  %v580 = vpop.f32.mrb[0].mxu0
  %581 = vmatprep.mubr.bf16.mxu0 0
  %582 = vmatmul.mubr.bf16.gmra.mrb[0].mxu0 %v344
  %v583 = vpop.f32.mrb[0].mxu0
  %v584 = vadd.f32 %v96, %v583
  %v585 = vpop.f32.mrb[0].mxu0
  %v586 = vpop.f32.mrb[0].mxu0
  %v587 = vadd.f32 %v96, %v586
  %v588 = vpop.f32.mrb[0].mxu0
  %589 = vmatprep.mubr.bf16.mxu0 0
  %590 = vmatmul.mubr.bf16.gmra.mrb[0].mxu0 %v347
  %v591 = vpop.f32.mrb[0].mxu0
  %v592 = vadd.f32 %v96, %v591
  %v593 = vpop.f32.mrb[0].mxu0
  %v594 = vpop.f32.mrb[0].mxu0
  %v595 = vadd.f32 %v96, %v594
  %v596 = vpop.f32.mrb[0].mxu0
  %597 = vmatprep.mubr.bf16.mxu0 0
  %598 = vmatmul.mubr.bf16.gmra.mrb[0].mxu0 %v350
  %v599 = vpop.f32.mrb[0].mxu0
  %v600 = vadd.f32 %v96, %v599
  %v601 = vpop.f32.mrb[0].mxu0
  %v602 = vpop.f32.mrb[0].mxu0
  %v603 = vadd.f32 %v96, %v602
  %v604 = vpop.f32.mrb[0].mxu0
  %605 = vmatprep.mubr.bf16.mxu0 0
  %606 = vmatmul.mubr.bf16.gmra.mrb[0].mxu0 %v353
  %v607 = vpop.f32.mrb[0].mxu0
  %v608 = vadd.f32 %v96, %v607
  %v609 = vpop.f32.mrb[0].mxu0
  %v610 = vpop.f32.mrb[0].mxu0
  %v611 = vadd.f32 %v96, %v610
  %v612 = vpop.f32.mrb[0].mxu0
  %613 = vmatprep.mubr.bf16.mxu0 0
  %614 = vmatmul.mubr.bf16.gmra.mrb[0].mxu0 %v356
  %v615 = vpop.f32.mrb[0].mxu0
  %v616 = vadd.f32 %v96, %v615
  %v617 = vpop.f32.mrb[0].mxu0
  %v618 = vpop.f32.mrb[0].mxu0
  %v619 = vadd.f32 %v96, %v618
  %v620 = vpop.f32.mrb[0].mxu0
  %621 = vmatprep.mubr.bf16.mxu0 0
  %622 = vmatmul.mubr.bf16.gmra.mrb[0].mxu0 %v359
  %v623 = vpop.f32.mrb[0].mxu0
  %v624 = vadd.f32 %v96, %v623
  %v625 = vpop.f32.mrb[0].mxu0
  %v626 = vpop.f32.mrb[0].mxu0
  %v627 = vadd.f32 %v96, %v626
  %v628 = vpop.f32.mrb[0].mxu0
  %629 = vmatprep.mubr.bf16.mxu0 0
  %630 = vmatmul.mubr.bf16.gmra.mrb[0].mxu0 %v362
  %v631 = vpop.f32.mrb[0].mxu0
  %v632 = vadd.f32 %v96, %v631
  %v633 = vpop.f32.mrb[0].mxu0
  %v634 = vpop.f32.mrb[0].mxu0
  %v635 = vadd.f32 %v96, %v634
  %v636 = vpop.f32.mrb[0].mxu0
  %637 = vmatprep.mubr.bf16.mxu0 0
  %638 = vmatmul.mubr.bf16.gmra.mrb[0].mxu0 %v365
  %v639 = vpop.f32.mrb[0].mxu0
  %v640 = vadd.f32 %v96, %v639
  %v641 = vpop.f32.mrb[0].mxu0
  %v642 = vpop.f32.mrb[0].mxu0
  %v643 = vadd.f32 %v96, %v642
  %v644 = vpop.f32.mrb[0].mxu0
  %645 = vmatprep.mubr.bf16.mxu0 0
  %646 = vmatmul.mubr.bf16.gmra.mrb[0].mxu0 %v368
  %v647 = vpop.f32.mrb[0].mxu0
  %v648 = vadd.f32 %v96, %v647
  %v649 = vpop.f32.mrb[0].mxu0
  %v650 = vpop.f32.mrb[0].mxu0
  %v651 = vadd.f32 %v96, %v650
  %v652 = vpop.f32.mrb[0].mxu0
  %653 = vmatprep.mubr.bf16.mxu0 0
  %654 = vmatmul.mubr.bf16.gmra.mrb[0].mxu0 %v371
  %v655 = vpop.f32.mrb[0].mxu0
  %v656 = vadd.f32 %v96, %v655
  %v657 = vpop.f32.mrb[0].mxu0
  %v658 = vpop.f32.mrb[0].mxu0
  %v659 = vadd.f32 %v96, %v658
  %v660 = vpop.f32.mrb[0].mxu0
  %661 = vdwg.mxu0
  %vm662 = vcmask 130048
  %v663 = vsel %vm662, %v408, 0.0
  %v664 = vsel %vm662, %v411, 0.0
  %v665 = vadd.f32 %v663, %v664
  %v666 = vsel %vm662, %v416, 0.0
  %v667 = vadd.f32 %v665, %v666
  %v668 = vsel %vm662, %v419, 0.0
  %v669 = vadd.f32 %v667, %v668
  %v670 = vsel %vm662, %v424, 0.0
  %v671 = vadd.f32 %v669, %v670
  %v672 = vsel %vm662, %v427, 0.0
  %v673 = vadd.f32 %v671, %v672
  %v674 = vsel %vm662, %v432, 0.0
  %v675 = vadd.f32 %v673, %v674
  %v676 = vsel %vm662, %v435, 0.0
  %v677 = vadd.f32 %v675, %v676
  %v678 = vsel %vm662, %v440, 0.0
  %v679 = vadd.f32 %v677, %v678
  %v680 = vsel %vm662, %v443, 0.0
  %v681 = vadd.f32 %v679, %v680
  %v682 = vsel %vm662, %v448, 0.0
  %v683 = vadd.f32 %v681, %v682
  %v684 = vsel %vm662, %v451, 0.0
  %v685 = vadd.f32 %v683, %v684
  %v686 = vsel %vm662, %v456, 0.0
  %v687 = vadd.f32 %v685, %v686
  %v688 = vsel %vm662, %v459, 0.0
  %v689 = vadd.f32 %v687, %v688
  %v690 = vsel %vm662, %v464, 0.0
  %v691 = vadd.f32 %v689, %v690
  %v692 = vsel %vm662, %v467, 0.0
  %v693 = vadd.f32 %v691, %v692
  %v694 = vsel %vm662, %v472, 0.0
  %v695 = vadd.f32 %v693, %v694
  %v696 = vsel %vm662, %v475, 0.0
  %v697 = vadd.f32 %v695, %v696
  %v698 = vsel %vm662, %v480, 0.0
  %v699 = vadd.f32 %v697, %v698
  %v700 = vsel %vm662, %v483, 0.0
  %v701 = vadd.f32 %v699, %v700
  %v702 = vsel %vm662, %v488, 0.0
  %v703 = vadd.f32 %v701, %v702
  %v704 = vsel %vm662, %v491, 0.0
  %v705 = vadd.f32 %v703, %v704
  %v706 = vsel %vm662, %v496, 0.0
  %v707 = vadd.f32 %v705, %v706
  %v708 = vsel %vm662, %v499, 0.0
  %v709 = vadd.f32 %v707, %v708
  %v710 = vsel %vm662, %v504, 0.0
  %v711 = vadd.f32 %v709, %v710
  %v712 = vsel %vm662, %v507, 0.0
  %v713 = vadd.f32 %v711, %v712
  %v714 = vsel %vm662, %v512, 0.0
  %v715 = vadd.f32 %v713, %v714
  %v716 = vsel %vm662, %v515, 0.0
  %v717 = vadd.f32 %v715, %v716
  %v718 = vsel %vm662, %v520, 0.0
  %v719 = vadd.f32 %v717, %v718
  %v720 = vsel %vm662, %v523, 0.0
  %v721 = vadd.f32 %v719, %v720
  %v722 = vsel %vm662, %v528, 0.0
  %v723 = vadd.f32 %v721, %v722
  %v724 = vsel %vm662, %v531, 0.0
  %v725 = vadd.f32 %v723, %v724
  %v726 = vsel %vm662, %v536, 0.0
  %v727 = vadd.f32 %v725, %v726
  %v728 = vsel %vm662, %v539, 0.0
  %v729 = vadd.f32 %v727, %v728
  %v730 = vsel %vm662, %v544, 0.0
  %v731 = vadd.f32 %v729, %v730
  %v732 = vsel %vm662, %v547, 0.0
  %v733 = vadd.f32 %v731, %v732
  %v734 = vsel %vm662, %v552, 0.0
  %v735 = vadd.f32 %v733, %v734
  %v736 = vsel %vm662, %v555, 0.0
  %v737 = vadd.f32 %v735, %v736
  %v738 = vsel %vm662, %v560, 0.0
  %v739 = vadd.f32 %v737, %v738
  %v740 = vsel %vm662, %v563, 0.0
  %v741 = vadd.f32 %v739, %v740
  %v742 = vsel %vm662, %v568, 0.0
  %v743 = vadd.f32 %v741, %v742
  %v744 = vsel %vm662, %v571, 0.0
  %v745 = vadd.f32 %v743, %v744
  %v746 = vsel %vm662, %v576, 0.0
  %v747 = vadd.f32 %v745, %v746
  %v748 = vsel %vm662, %v579, 0.0
  %v749 = vadd.f32 %v747, %v748
  %v750 = vsel %vm662, %v584, 0.0
  %v751 = vadd.f32 %v749, %v750
  %v752 = vsel %vm662, %v587, 0.0
  %v753 = vadd.f32 %v751, %v752
  %v754 = vsel %vm662, %v592, 0.0
  %v755 = vadd.f32 %v753, %v754
  %v756 = vsel %vm662, %v595, 0.0
  %v757 = vadd.f32 %v755, %v756
  %v758 = vsel %vm662, %v600, 0.0
  %v759 = vadd.f32 %v757, %v758
  %v760 = vsel %vm662, %v603, 0.0
  %v761 = vadd.f32 %v759, %v760
  %v762 = vsel %vm662, %v608, 0.0
  %v763 = vadd.f32 %v761, %v762
  %v764 = vsel %vm662, %v611, 0.0
  %v765 = vadd.f32 %v763, %v764
  %v766 = vsel %vm662, %v616, 0.0
  %v767 = vadd.f32 %v765, %v766
  %v768 = vsel %vm662, %v619, 0.0
  %v769 = vadd.f32 %v767, %v768
  %v770 = vsel %vm662, %v624, 0.0
  %v771 = vadd.f32 %v769, %v770
  %v772 = vsel %vm662, %v627, 0.0
  %v773 = vadd.f32 %v771, %v772
  %v774 = vsel %vm662, %v632, 0.0
  %v775 = vadd.f32 %v773, %v774
  %v776 = vsel %vm662, %v635, 0.0
  %v777 = vadd.f32 %v775, %v776
  %v778 = vsel %vm662, %v640, 0.0
  %v779 = vadd.f32 %v777, %v778
  %v780 = vsel %vm662, %v643, 0.0
  %v781 = vadd.f32 %v779, %v780
  %v782 = vsel %vm662, %v648, 0.0
  %v783 = vadd.f32 %v781, %v782
  %v784 = vsel %vm662, %v651, 0.0
  %v785 = vadd.f32 %v783, %v784
  %v786 = vsel %vm662, %v656, 0.0
  %v787 = vadd.f32 %v785, %v786
  %v788 = vsel %vm662, %v659, 0.0
  %v789 = vadd.f32 %v787, %v788
  %v790 = vrot.slane %v789, 4
  %v791 = vadd.f32 %v789, %v790
  %v792 = vrot.slane %v791, 2
  %v793 = vadd.f32 %v791, %v792
  %v794 = vrot.slane %v793, 1
  %v795 = vadd.f32 %v793, %v794
  %v796 = vmul.f32 %v408, %v408
  %v797 = vmul.f32 %v411, %v411
  %v798 = vmul.f32 %v416, %v416
  %v799 = vmul.f32 %v419, %v419
  %v800 = vmul.f32 %v424, %v424
  %v801 = vmul.f32 %v427, %v427
  %v802 = vmul.f32 %v432, %v432
  %v803 = vmul.f32 %v435, %v435
  %v804 = vmul.f32 %v440, %v440
  %v805 = vmul.f32 %v443, %v443
  %v806 = vmul.f32 %v448, %v448
  %v807 = vmul.f32 %v451, %v451
  %v808 = vmul.f32 %v456, %v456
  %v809 = vmul.f32 %v459, %v459
  %v810 = vmul.f32 %v464, %v464
  %v811 = vmul.f32 %v467, %v467
  %v812 = vmul.f32 %v472, %v472
  %v813 = vmul.f32 %v475, %v475
  %v814 = vmul.f32 %v480, %v480
  %v815 = vmul.f32 %v483, %v483
  %v816 = vmul.f32 %v488, %v488
  %v817 = vmul.f32 %v491, %v491
  %v818 = vmul.f32 %v496, %v496
  %v819 = vmul.f32 %v499, %v499
  %v820 = vmul.f32 %v504, %v504
  %v821 = vmul.f32 %v507, %v507
  %v822 = vmul.f32 %v512, %v512
  %v823 = vmul.f32 %v515, %v515
  %v824 = vmul.f32 %v520, %v520
  %v825 = vmul.f32 %v523, %v523
  %v826 = vmul.f32 %v528, %v528
  %v827 = vmul.f32 %v531, %v531
  %v828 = vmul.f32 %v536, %v536
  %v829 = vmul.f32 %v539, %v539
  %v830 = vmul.f32 %v544, %v544
  %v831 = vmul.f32 %v547, %v547
  %v832 = vmul.f32 %v552, %v552
  %v833 = vmul.f32 %v555, %v555
  %v834 = vmul.f32 %v560, %v560
  %v835 = vmul.f32 %v563, %v563
  %v836 = vmul.f32 %v568, %v568
  %v837 = vmul.f32 %v571, %v571
  %v838 = vmul.f32 %v576, %v576
  %v839 = vmul.f32 %v579, %v579
  %v840 = vmul.f32 %v584, %v584
  %v841 = vmul.f32 %v587, %v587
  %v842 = vmul.f32 %v592, %v592
  %v843 = vmul.f32 %v595, %v595
  %v844 = vmul.f32 %v600, %v600
  %v845 = vmul.f32 %v603, %v603
  %v846 = vmul.f32 %v608, %v608
  %v847 = vmul.f32 %v611, %v611
  %v848 = vmul.f32 %v616, %v616
  %v849 = vmul.f32 %v619, %v619
  %v850 = vmul.f32 %v624, %v624
  %v851 = vmul.f32 %v627, %v627
  %v852 = vmul.f32 %v632, %v632
  %v853 = vmul.f32 %v635, %v635
  %v854 = vmul.f32 %v640, %v640
  %v855 = vmul.f32 %v643, %v643
  %v856 = vmul.f32 %v648, %v648
  %v857 = vmul.f32 %v651, %v651
  %v858 = vmul.f32 %v656, %v656
  %v859 = vmul.f32 %v659, %v659
  %v860 = vsel %vm662, %v796, 0.0
  %v861 = vsel %vm662, %v797, 0.0
  %v862 = vadd.f32 %v860, %v861
  %v863 = vsel %vm662, %v798, 0.0
  %v864 = vadd.f32 %v862, %v863
  %v865 = vsel %vm662, %v799, 0.0
  %v866 = vadd.f32 %v864, %v865
  %v867 = vsel %vm662, %v800, 0.0
  %v868 = vadd.f32 %v866, %v867
  %v869 = vsel %vm662, %v801, 0.0
  %v870 = vadd.f32 %v868, %v869
  %v871 = vsel %vm662, %v802, 0.0
  %v872 = vadd.f32 %v870, %v871
  %v873 = vsel %vm662, %v803, 0.0
  %v874 = vadd.f32 %v872, %v873
  %v875 = vsel %vm662, %v804, 0.0
  %v876 = vadd.f32 %v874, %v875
  %v877 = vsel %vm662, %v805, 0.0
  %v878 = vadd.f32 %v876, %v877
  %v879 = vsel %vm662, %v806, 0.0
  %v880 = vadd.f32 %v878, %v879
  %v881 = vsel %vm662, %v807, 0.0
  %v882 = vadd.f32 %v880, %v881
  %v883 = vsel %vm662, %v808, 0.0
  %v884 = vadd.f32 %v882, %v883
  %v885 = vsel %vm662, %v809, 0.0
  %v886 = vadd.f32 %v884, %v885
  %v887 = vsel %vm662, %v810, 0.0
  %v888 = vadd.f32 %v886, %v887
  %v889 = vsel %vm662, %v811, 0.0
  %v890 = vadd.f32 %v888, %v889
  %v891 = vsel %vm662, %v812, 0.0
  %v892 = vadd.f32 %v890, %v891
  %v893 = vsel %vm662, %v813, 0.0
  %v894 = vadd.f32 %v892, %v893
  %v895 = vsel %vm662, %v814, 0.0
  %v896 = vadd.f32 %v894, %v895
  %v897 = vsel %vm662, %v815, 0.0
  %v898 = vadd.f32 %v896, %v897
  %v899 = vsel %vm662, %v816, 0.0
  %v900 = vadd.f32 %v898, %v899
  %v901 = vsel %vm662, %v817, 0.0
  %v902 = vadd.f32 %v900, %v901
  %v903 = vsel %vm662, %v818, 0.0
  %v904 = vadd.f32 %v902, %v903
  %v905 = vsel %vm662, %v819, 0.0
  %v906 = vadd.f32 %v904, %v905
  %v907 = vsel %vm662, %v820, 0.0
  %v908 = vadd.f32 %v906, %v907
  %v909 = vsel %vm662, %v821, 0.0
  %v910 = vadd.f32 %v908, %v909
  %v911 = vsel %vm662, %v822, 0.0
  %v912 = vadd.f32 %v910, %v911
  %v913 = vsel %vm662, %v823, 0.0
  %v914 = vadd.f32 %v912, %v913
  %v915 = vsel %vm662, %v824, 0.0
  %v916 = vadd.f32 %v914, %v915
  %v917 = vsel %vm662, %v825, 0.0
  %v918 = vadd.f32 %v916, %v917
  %v919 = vsel %vm662, %v826, 0.0
  %v920 = vadd.f32 %v918, %v919
  %v921 = vsel %vm662, %v827, 0.0
  %v922 = vadd.f32 %v920, %v921
  %v923 = vsel %vm662, %v828, 0.0
  %v924 = vadd.f32 %v922, %v923
  %v925 = vsel %vm662, %v829, 0.0
  %v926 = vadd.f32 %v924, %v925
  %v927 = vsel %vm662, %v830, 0.0
  %v928 = vadd.f32 %v926, %v927
  %v929 = vsel %vm662, %v831, 0.0
  %v930 = vadd.f32 %v928, %v929
  %v931 = vsel %vm662, %v832, 0.0
  %v932 = vadd.f32 %v930, %v931
  %v933 = vsel %vm662, %v833, 0.0
  %v934 = vadd.f32 %v932, %v933
  %v935 = vsel %vm662, %v834, 0.0
  %v936 = vadd.f32 %v934, %v935
  %v937 = vsel %vm662, %v835, 0.0
  %v938 = vadd.f32 %v936, %v937
  %v939 = vsel %vm662, %v836, 0.0
  %v940 = vadd.f32 %v938, %v939
  %v941 = vsel %vm662, %v837, 0.0
  %v942 = vadd.f32 %v940, %v941
  %v943 = vsel %vm662, %v838, 0.0
  %v944 = vadd.f32 %v942, %v943
  %v945 = vsel %vm662, %v839, 0.0
  %v946 = vadd.f32 %v944, %v945
  %v947 = vsel %vm662, %v840, 0.0
  %v948 = vadd.f32 %v946, %v947
  %v949 = vsel %vm662, %v841, 0.0
  %v950 = vadd.f32 %v948, %v949
  %v951 = vsel %vm662, %v842, 0.0
  %v952 = vadd.f32 %v950, %v951
  %v953 = vsel %vm662, %v843, 0.0
  %v954 = vadd.f32 %v952, %v953
  %v955 = vsel %vm662, %v844, 0.0
  %v956 = vadd.f32 %v954, %v955
  %v957 = vsel %vm662, %v845, 0.0
  %v958 = vadd.f32 %v956, %v957
  %v959 = vsel %vm662, %v846, 0.0
  %v960 = vadd.f32 %v958, %v959
  %v961 = vsel %vm662, %v847, 0.0
  %v962 = vadd.f32 %v960, %v961
  %v963 = vsel %vm662, %v848, 0.0
  %v964 = vadd.f32 %v962, %v963
  %v965 = vsel %vm662, %v849, 0.0
  %v966 = vadd.f32 %v964, %v965
  %v967 = vsel %vm662, %v850, 0.0
  %v968 = vadd.f32 %v966, %v967
  %v969 = vsel %vm662, %v851, 0.0
  %v970 = vadd.f32 %v968, %v969
  %v971 = vsel %vm662, %v852, 0.0
  %v972 = vadd.f32 %v970, %v971
  %v973 = vsel %vm662, %v853, 0.0
  %v974 = vadd.f32 %v972, %v973
  %v975 = vsel %vm662, %v854, 0.0
  %v976 = vadd.f32 %v974, %v975
  %v977 = vsel %vm662, %v855, 0.0
  %v978 = vadd.f32 %v976, %v977
  %v979 = vsel %vm662, %v856, 0.0
  %v980 = vadd.f32 %v978, %v979
  %v981 = vsel %vm662, %v857, 0.0
  %v982 = vadd.f32 %v980, %v981
  %v983 = vsel %vm662, %v858, 0.0
  %v984 = vadd.f32 %v982, %v983
  %v985 = vsel %vm662, %v859, 0.0
  %v986 = vadd.f32 %v984, %v985
  %v987 = vrot.slane %v986, 4
  %v988 = vadd.f32 %v986, %v987
  %v989 = vrot.slane %v988, 2
  %v990 = vadd.f32 %v988, %v989
  %v991 = vrot.slane %v990, 1
  %v992 = vadd.f32 %v990, %v991
  %v993 = vmul.f32 %v795, 0.001953125
  %v994 = vmul.f32 %v992, 0.001953125
  %v995 = vmul.f32 %v993, %v993
  %v996 = vsub.f32 %v994, %v995
  %v997 = vmax.f32 %v996, 0.0
  %v998 = vld [vmem:[%s3] sm:$0x1]
  %v999 = vadd.f32 %v997, 1e-05
  %v1000 = vrsqrt.pop %v999
  %v1001 = vmul.f32 %v998, %v1000
  %v1002 = vld [vmem:[%s4] sm:$0x1]
  %v1003 = vmul.f32 %v993, %v1001
  %v1004 = vsub.f32 %v1002, %v1003
  %v1006 = vlaneseq
  %v1007 = vshrl.u32 %v1006, 7
  %v1008 = vsub.s32 0, %v1007
  %v1009 = vrot.slane %v1001, %v1008
  %v1011 = vmul.f32 %v408, %v1009
  %v1012 = vmul.f32 %v411, %v1009
  %v1013 = vmul.f32 %v416, %v1009
  %v1014 = vmul.f32 %v419, %v1009
  %v1015 = vmul.f32 %v424, %v1009
  %v1016 = vmul.f32 %v427, %v1009
  %v1017 = vmul.f32 %v432, %v1009
  %v1018 = vmul.f32 %v435, %v1009
  %v1019 = vmul.f32 %v440, %v1009
  %v1020 = vmul.f32 %v443, %v1009
  %v1021 = vmul.f32 %v448, %v1009
  %v1022 = vmul.f32 %v451, %v1009
  %v1023 = vmul.f32 %v456, %v1009
  %v1024 = vmul.f32 %v459, %v1009
  %v1025 = vmul.f32 %v464, %v1009
  %v1026 = vmul.f32 %v467, %v1009
  %v1027 = vmul.f32 %v472, %v1009
  %v1028 = vmul.f32 %v475, %v1009
  %v1029 = vmul.f32 %v480, %v1009
  %v1030 = vmul.f32 %v483, %v1009
  %v1031 = vmul.f32 %v488, %v1009
  %v1032 = vmul.f32 %v491, %v1009
  %v1033 = vmul.f32 %v496, %v1009
  %v1034 = vmul.f32 %v499, %v1009
  %v1035 = vmul.f32 %v504, %v1009
  %v1036 = vmul.f32 %v507, %v1009
  %v1037 = vmul.f32 %v512, %v1009
  %v1038 = vmul.f32 %v515, %v1009
  %v1039 = vmul.f32 %v520, %v1009
  %v1040 = vmul.f32 %v523, %v1009
  %v1041 = vmul.f32 %v528, %v1009
  %v1042 = vmul.f32 %v531, %v1009
  %v1043 = vmul.f32 %v536, %v1009
  %v1044 = vmul.f32 %v539, %v1009
  %v1045 = vmul.f32 %v544, %v1009
  %v1046 = vmul.f32 %v547, %v1009
  %v1047 = vmul.f32 %v552, %v1009
  %v1048 = vmul.f32 %v555, %v1009
  %v1049 = vmul.f32 %v560, %v1009
  %v1050 = vmul.f32 %v563, %v1009
  %v1051 = vmul.f32 %v568, %v1009
  %v1052 = vmul.f32 %v571, %v1009
  %v1053 = vmul.f32 %v576, %v1009
  %v1054 = vmul.f32 %v579, %v1009
  %v1055 = vmul.f32 %v584, %v1009
  %v1056 = vmul.f32 %v587, %v1009
  %v1057 = vmul.f32 %v592, %v1009
  %v1058 = vmul.f32 %v595, %v1009
  %v1059 = vmul.f32 %v600, %v1009
  %v1060 = vmul.f32 %v603, %v1009
  %v1061 = vmul.f32 %v608, %v1009
  %v1062 = vmul.f32 %v611, %v1009
  %v1063 = vmul.f32 %v616, %v1009
  %v1064 = vmul.f32 %v619, %v1009
  %v1065 = vmul.f32 %v624, %v1009
  %v1066 = vmul.f32 %v627, %v1009
  %v1067 = vmul.f32 %v632, %v1009
  %v1068 = vmul.f32 %v635, %v1009
  %v1069 = vmul.f32 %v640, %v1009
  %v1070 = vmul.f32 %v643, %v1009
  %v1071 = vmul.f32 %v648, %v1009
  %v1072 = vmul.f32 %v651, %v1009
  %v1073 = vmul.f32 %v656, %v1009
  %v1074 = vmul.f32 %v659, %v1009
  %v1076 = vlaneseq
  %v1077 = vshrl.u32 %v1076, 7
  %v1078 = vsub.s32 0, %v1077
  %v1079 = vrot.slane %v1004, %v1078
  %v1081 = vadd.f32 %v1011, %v1079
  %v1082 = vadd.f32 %v1012, %v1079
  %v1083 = vadd.f32 %v1013, %v1079
  %v1084 = vadd.f32 %v1014, %v1079
  %v1085 = vadd.f32 %v1015, %v1079
  %v1086 = vadd.f32 %v1016, %v1079
  %v1087 = vadd.f32 %v1017, %v1079
  %v1088 = vadd.f32 %v1018, %v1079
  %v1089 = vadd.f32 %v1019, %v1079
  %v1090 = vadd.f32 %v1020, %v1079
  %v1091 = vadd.f32 %v1021, %v1079
  %v1092 = vadd.f32 %v1022, %v1079
  %v1093 = vadd.f32 %v1023, %v1079
  %v1094 = vadd.f32 %v1024, %v1079
  %v1095 = vadd.f32 %v1025, %v1079
  %v1096 = vadd.f32 %v1026, %v1079
  %v1097 = vadd.f32 %v1027, %v1079
  %v1098 = vadd.f32 %v1028, %v1079
  %v1099 = vadd.f32 %v1029, %v1079
  %v1100 = vadd.f32 %v1030, %v1079
  %v1101 = vadd.f32 %v1031, %v1079
  %v1102 = vadd.f32 %v1032, %v1079
  %v1103 = vadd.f32 %v1033, %v1079
  %v1104 = vadd.f32 %v1034, %v1079
  %v1105 = vadd.f32 %v1035, %v1079
  %v1106 = vadd.f32 %v1036, %v1079
  %v1107 = vadd.f32 %v1037, %v1079
  %v1108 = vadd.f32 %v1038, %v1079
  %v1109 = vadd.f32 %v1039, %v1079
  %v1110 = vadd.f32 %v1040, %v1079
  %v1111 = vadd.f32 %v1041, %v1079
  %v1112 = vadd.f32 %v1042, %v1079
  %v1113 = vadd.f32 %v1043, %v1079
  %v1114 = vadd.f32 %v1044, %v1079
  %v1115 = vadd.f32 %v1045, %v1079
  %v1116 = vadd.f32 %v1046, %v1079
  %v1117 = vadd.f32 %v1047, %v1079
  %v1118 = vadd.f32 %v1048, %v1079
  %v1119 = vadd.f32 %v1049, %v1079
  %v1120 = vadd.f32 %v1050, %v1079
  %v1121 = vadd.f32 %v1051, %v1079
  %v1122 = vadd.f32 %v1052, %v1079
  %v1123 = vadd.f32 %v1053, %v1079
  %v1124 = vadd.f32 %v1054, %v1079
  %v1125 = vadd.f32 %v1055, %v1079
  %v1126 = vadd.f32 %v1056, %v1079
  %v1127 = vadd.f32 %v1057, %v1079
  %v1128 = vadd.f32 %v1058, %v1079
  %v1129 = vadd.f32 %v1059, %v1079
  %v1130 = vadd.f32 %v1060, %v1079
  %v1131 = vadd.f32 %v1061, %v1079
  %v1132 = vadd.f32 %v1062, %v1079
  %v1133 = vadd.f32 %v1063, %v1079
  %v1134 = vadd.f32 %v1064, %v1079
  %v1135 = vadd.f32 %v1065, %v1079
  %v1136 = vadd.f32 %v1066, %v1079
  %v1137 = vadd.f32 %v1067, %v1079
  %v1138 = vadd.f32 %v1068, %v1079
  %v1139 = vadd.f32 %v1069, %v1079
  %v1140 = vadd.f32 %v1070, %v1079
  %v1141 = vadd.f32 %v1071, %v1079
  %v1142 = vadd.f32 %v1072, %v1079
  %v1143 = vadd.f32 %v1073, %v1079
  %v1144 = vadd.f32 %v1074, %v1079
  %v1145 = vmax.f32 %v1081, 0.0
  %v1146 = vmax.f32 %v1082, 0.0
  %v1147 = vmax.f32 %v1083, 0.0
  %v1148 = vmax.f32 %v1084, 0.0
  %v1149 = vmax.f32 %v1085, 0.0
  %v1150 = vmax.f32 %v1086, 0.0
  %v1151 = vmax.f32 %v1087, 0.0
  %v1152 = vmax.f32 %v1088, 0.0
  %v1153 = vmax.f32 %v1089, 0.0
  %v1154 = vmax.f32 %v1090, 0.0
  %v1155 = vmax.f32 %v1091, 0.0
  %v1156 = vmax.f32 %v1092, 0.0
  %v1157 = vmax.f32 %v1093, 0.0
  %v1158 = vmax.f32 %v1094, 0.0
  %v1159 = vmax.f32 %v1095, 0.0
  %v1160 = vmax.f32 %v1096, 0.0
  %v1161 = vmax.f32 %v1097, 0.0
  %v1162 = vmax.f32 %v1098, 0.0
  %v1163 = vmax.f32 %v1099, 0.0
  %v1164 = vmax.f32 %v1100, 0.0
  %v1165 = vmax.f32 %v1101, 0.0
  %v1166 = vmax.f32 %v1102, 0.0
  %v1167 = vmax.f32 %v1103, 0.0
  %v1168 = vmax.f32 %v1104, 0.0
  %v1169 = vmax.f32 %v1105, 0.0
  %v1170 = vmax.f32 %v1106, 0.0
  %v1171 = vmax.f32 %v1107, 0.0
  %v1172 = vmax.f32 %v1108, 0.0
  %v1173 = vmax.f32 %v1109, 0.0
  %v1174 = vmax.f32 %v1110, 0.0
  %v1175 = vmax.f32 %v1111, 0.0
  %v1176 = vmax.f32 %v1112, 0.0
  %v1177 = vmax.f32 %v1113, 0.0
  %v1178 = vmax.f32 %v1114, 0.0
  %v1179 = vmax.f32 %v1115, 0.0
  %v1180 = vmax.f32 %v1116, 0.0
  %v1181 = vmax.f32 %v1117, 0.0
  %v1182 = vmax.f32 %v1118, 0.0
  %v1183 = vmax.f32 %v1119, 0.0
  %v1184 = vmax.f32 %v1120, 0.0
  %v1185 = vmax.f32 %v1121, 0.0
  %v1186 = vmax.f32 %v1122, 0.0
  %v1187 = vmax.f32 %v1123, 0.0
  %v1188 = vmax.f32 %v1124, 0.0
  %v1189 = vmax.f32 %v1125, 0.0
  %v1190 = vmax.f32 %v1126, 0.0
  %v1191 = vmax.f32 %v1127, 0.0
  %v1192 = vmax.f32 %v1128, 0.0
  %v1193 = vmax.f32 %v1129, 0.0
  %v1194 = vmax.f32 %v1130, 0.0
  %v1195 = vmax.f32 %v1131, 0.0
  %v1196 = vmax.f32 %v1132, 0.0
  %v1197 = vmax.f32 %v1133, 0.0
  %v1198 = vmax.f32 %v1134, 0.0
  %v1199 = vmax.f32 %v1135, 0.0
  %v1200 = vmax.f32 %v1136, 0.0
  %v1201 = vmax.f32 %v1137, 0.0
  %v1202 = vmax.f32 %v1138, 0.0
  %v1203 = vmax.f32 %v1139, 0.0
  %v1204 = vmax.f32 %v1140, 0.0
  %v1205 = vmax.f32 %v1141, 0.0
  %v1206 = vmax.f32 %v1142, 0.0
  %v1207 = vmax.f32 %v1143, 0.0
  %v1208 = vmax.f32 %v1144, 0.0
  %v1209 = vpack.c.bf16 %v1146, %v1145
  %v1210 = vpack.c.bf16 %v1148, %v1147
  %v1211 = vpack.c.bf16 %v1150, %v1149
  %v1212 = vpack.c.bf16 %v1152, %v1151
  %v1213 = vpack.c.bf16 %v1154, %v1153
  %v1214 = vpack.c.bf16 %v1156, %v1155
  %v1215 = vpack.c.bf16 %v1158, %v1157
  %v1216 = vpack.c.bf16 %v1160, %v1159
  %v1217 = vpack.c.bf16 %v1162, %v1161
  %v1218 = vpack.c.bf16 %v1164, %v1163
  %v1219 = vpack.c.bf16 %v1166, %v1165
  %v1220 = vpack.c.bf16 %v1168, %v1167
  %v1221 = vpack.c.bf16 %v1170, %v1169
  %v1222 = vpack.c.bf16 %v1172, %v1171
  %v1223 = vpack.c.bf16 %v1174, %v1173
  %v1224 = vpack.c.bf16 %v1176, %v1175
  %v1225 = vpack.c.bf16 %v1178, %v1177
  %v1226 = vpack.c.bf16 %v1180, %v1179
  %v1227 = vpack.c.bf16 %v1182, %v1181
  %v1228 = vpack.c.bf16 %v1184, %v1183
  %v1229 = vpack.c.bf16 %v1186, %v1185
  %v1230 = vpack.c.bf16 %v1188, %v1187
  %v1231 = vpack.c.bf16 %v1190, %v1189
  %v1232 = vpack.c.bf16 %v1192, %v1191
  %v1233 = vpack.c.bf16 %v1194, %v1193
  %v1234 = vpack.c.bf16 %v1196, %v1195
  %v1235 = vpack.c.bf16 %v1198, %v1197
  %v1236 = vpack.c.bf16 %v1200, %v1199
  %v1237 = vpack.c.bf16 %v1202, %v1201
  %v1238 = vpack.c.bf16 %v1204, %v1203
  %v1239 = vpack.c.bf16 %v1206, %v1205
  %v1240 = vpack.c.bf16 %v1208, %v1207
  %v1273 = vunpack.c.l.b16 %v1209
  %v1274 = vunpack.c.h.b16 %v1209
  %v1275 = vunpack.c.l.b16 %v1210
  %v1276 = vunpack.c.h.b16 %v1210
  %v1277 = vunpack.c.l.b16 %v1211
  %v1278 = vunpack.c.h.b16 %v1211
  %v1279 = vunpack.c.l.b16 %v1212
  %v1280 = vunpack.c.h.b16 %v1212
  %v1281 = vunpack.c.l.b16 %v1213
  %v1282 = vunpack.c.h.b16 %v1213
  %v1283 = vunpack.c.l.b16 %v1214
  %v1284 = vunpack.c.h.b16 %v1214
  %v1285 = vunpack.c.l.b16 %v1215
  %v1286 = vunpack.c.h.b16 %v1215
  %v1287 = vunpack.c.l.b16 %v1216
  %v1288 = vunpack.c.h.b16 %v1216
  %v1289 = vunpack.c.l.b16 %v1217
  %v1290 = vunpack.c.h.b16 %v1217
  %v1291 = vunpack.c.l.b16 %v1218
  %v1292 = vunpack.c.h.b16 %v1218
  %v1293 = vunpack.c.l.b16 %v1219
  %v1294 = vunpack.c.h.b16 %v1219
  %v1295 = vunpack.c.l.b16 %v1220
  %v1296 = vunpack.c.h.b16 %v1220
  %v1297 = vunpack.c.l.b16 %v1221
  %v1298 = vunpack.c.h.b16 %v1221
  %v1299 = vunpack.c.l.b16 %v1222
  %v1300 = vunpack.c.h.b16 %v1222
  %v1301 = vunpack.c.l.b16 %v1223
  %v1302 = vunpack.c.h.b16 %v1223
  %v1303 = vunpack.c.l.b16 %v1224
  %v1304 = vunpack.c.h.b16 %v1224
  %v1305 = vunpack.c.l.b16 %v1225
  %v1306 = vunpack.c.h.b16 %v1225
  %v1307 = vunpack.c.l.b16 %v1226
  %v1308 = vunpack.c.h.b16 %v1226
  %v1309 = vunpack.c.l.b16 %v1227
  %v1310 = vunpack.c.h.b16 %v1227
  %v1311 = vunpack.c.l.b16 %v1228
  %v1312 = vunpack.c.h.b16 %v1228
  %v1313 = vunpack.c.l.b16 %v1229
  %v1314 = vunpack.c.h.b16 %v1229
  %v1315 = vunpack.c.l.b16 %v1230
  %v1316 = vunpack.c.h.b16 %v1230
  %v1317 = vunpack.c.l.b16 %v1231
  %v1318 = vunpack.c.h.b16 %v1231
  %v1319 = vunpack.c.l.b16 %v1232
  %v1320 = vunpack.c.h.b16 %v1232
  %v1321 = vunpack.c.l.b16 %v1233
  %v1322 = vunpack.c.h.b16 %v1233
  %v1323 = vunpack.c.l.b16 %v1234
  %v1324 = vunpack.c.h.b16 %v1234
  %v1325 = vunpack.c.l.b16 %v1235
  %v1326 = vunpack.c.h.b16 %v1235
  %v1327 = vunpack.c.l.b16 %v1236
  %v1328 = vunpack.c.h.b16 %v1236
  %v1329 = vunpack.c.l.b16 %v1237
  %v1330 = vunpack.c.h.b16 %v1237
  %v1331 = vunpack.c.l.b16 %v1238
  %v1332 = vunpack.c.h.b16 %v1238
  %v1333 = vunpack.c.l.b16 %v1239
  %v1334 = vunpack.c.h.b16 %v1239
  %v1335 = vunpack.c.l.b16 %v1240
  %v1336 = vunpack.c.h.b16 %v1240
  %v1337 = vpack.c.b16 %v1273, %v1273
  %v1338 = vpack.c.b16 %v1274, %v1274
  %v1339 = vpack.c.b16 %v1275, %v1275
  %v1340 = vpack.c.b16 %v1276, %v1276
  %v1341 = vpack.c.b16 %v1277, %v1277
  %v1342 = vpack.c.b16 %v1278, %v1278
  %v1343 = vpack.c.b16 %v1279, %v1279
  %v1344 = vpack.c.b16 %v1280, %v1280
  %v1345 = vpack.c.b16 %v1281, %v1281
  %v1346 = vpack.c.b16 %v1282, %v1282
  %v1347 = vpack.c.b16 %v1283, %v1283
  %v1348 = vpack.c.b16 %v1284, %v1284
  %v1349 = vpack.c.b16 %v1285, %v1285
  %v1350 = vpack.c.b16 %v1286, %v1286
  %v1351 = vpack.c.b16 %v1287, %v1287
  %v1352 = vpack.c.b16 %v1288, %v1288
  %v1353 = vpack.c.b16 %v1289, %v1289
  %v1354 = vpack.c.b16 %v1290, %v1290
  %v1355 = vpack.c.b16 %v1291, %v1291
  %v1356 = vpack.c.b16 %v1292, %v1292
  %v1357 = vpack.c.b16 %v1293, %v1293
  %v1358 = vpack.c.b16 %v1294, %v1294
  %v1359 = vpack.c.b16 %v1295, %v1295
  %v1360 = vpack.c.b16 %v1296, %v1296
  %v1361 = vpack.c.b16 %v1297, %v1297
  %v1362 = vpack.c.b16 %v1298, %v1298
  %v1363 = vpack.c.b16 %v1299, %v1299
  %v1364 = vpack.c.b16 %v1300, %v1300
  %v1365 = vpack.c.b16 %v1301, %v1301
  %v1366 = vpack.c.b16 %v1302, %v1302
  %v1367 = vpack.c.b16 %v1303, %v1303
  %v1368 = vpack.c.b16 %v1304, %v1304
  %v1369 = vpack.c.b16 %v1305, %v1305
  %v1370 = vpack.c.b16 %v1306, %v1306
  %v1371 = vpack.c.b16 %v1307, %v1307
  %v1372 = vpack.c.b16 %v1308, %v1308
  %v1373 = vpack.c.b16 %v1309, %v1309
  %v1374 = vpack.c.b16 %v1310, %v1310
  %v1375 = vpack.c.b16 %v1311, %v1311
  %v1376 = vpack.c.b16 %v1312, %v1312
  %v1377 = vpack.c.b16 %v1313, %v1313
  %v1378 = vpack.c.b16 %v1314, %v1314
  %v1379 = vpack.c.b16 %v1315, %v1315
  %v1380 = vpack.c.b16 %v1316, %v1316
  %v1381 = vpack.c.b16 %v1317, %v1317
  %v1382 = vpack.c.b16 %v1318, %v1318
  %v1383 = vpack.c.b16 %v1319, %v1319
  %v1384 = vpack.c.b16 %v1320, %v1320
  %v1385 = vpack.c.b16 %v1321, %v1321
  %v1386 = vpack.c.b16 %v1322, %v1322
  %v1387 = vpack.c.b16 %v1323, %v1323
  %v1388 = vpack.c.b16 %v1324, %v1324
  %v1389 = vpack.c.b16 %v1325, %v1325
  %v1390 = vpack.c.b16 %v1326, %v1326
  %v1391 = vpack.c.b16 %v1327, %v1327
  %v1392 = vpack.c.b16 %v1328, %v1328
  %v1393 = vpack.c.b16 %v1329, %v1329
  %v1394 = vpack.c.b16 %v1330, %v1330
  %v1395 = vpack.c.b16 %v1331, %v1331
  %v1396 = vpack.c.b16 %v1332, %v1332
  %v1397 = vpack.c.b16 %v1333, %v1333
  %v1398 = vpack.c.b16 %v1334, %v1334
  %v1399 = vpack.c.b16 %v1335, %v1335
  %v1400 = vpack.c.b16 %v1336, %v1336
  %vm1465 = vcmask 125952
  %1466 = vst.msk [vmem:[%s5] sm:$0xf] %vm1465, %v1337
  %1467 = vst.msk [vmem:[%s5 + $0x4] sm:$0xf] %vm1465, %v1338
  %1468 = vst.msk [vmem:[%s5 + $0x8] sm:$0xf] %vm1465, %v1339
  %1469 = vst.msk [vmem:[%s5 + $0xc] sm:$0xf] %vm1465, %v1340
  %1470 = vst.msk [vmem:[%s5 + $0x10] sm:$0xf] %vm1465, %v1341
  %1471 = vst.msk [vmem:[%s5 + $0x14] sm:$0xf] %vm1465, %v1342
  %1472 = vst.msk [vmem:[%s5 + $0x18] sm:$0xf] %vm1465, %v1343
  %1473 = vst.msk [vmem:[%s5 + $0x1c] sm:$0xf] %vm1465, %v1344
  %1474 = vst.msk [vmem:[%s5 + $0x20] sm:$0xf] %vm1465, %v1345
  %1475 = vst.msk [vmem:[%s5 + $0x24] sm:$0xf] %vm1465, %v1346
  %1476 = vst.msk [vmem:[%s5 + $0x28] sm:$0xf] %vm1465, %v1347
  %1477 = vst.msk [vmem:[%s5 + $0x2c] sm:$0xf] %vm1465, %v1348
  %1478 = vst.msk [vmem:[%s5 + $0x30] sm:$0xf] %vm1465, %v1349
  %1479 = vst.msk [vmem:[%s5 + $0x34] sm:$0xf] %vm1465, %v1350
  %1480 = vst.msk [vmem:[%s5 + $0x38] sm:$0xf] %vm1465, %v1351
  %1481 = vst.msk [vmem:[%s5 + $0x3c] sm:$0xf] %vm1465, %v1352
  %1482 = vst.msk [vmem:[%s5 + $0x40] sm:$0xf] %vm1465, %v1353
  %1483 = vst.msk [vmem:[%s5 + $0x44] sm:$0xf] %vm1465, %v1354
  %1484 = vst.msk [vmem:[%s5 + $0x48] sm:$0xf] %vm1465, %v1355
  %1485 = vst.msk [vmem:[%s5 + $0x4c] sm:$0xf] %vm1465, %v1356
  %1486 = vst.msk [vmem:[%s5 + $0x50] sm:$0xf] %vm1465, %v1357
  %1487 = vst.msk [vmem:[%s5 + $0x54] sm:$0xf] %vm1465, %v1358
  %1488 = vst.msk [vmem:[%s5 + $0x58] sm:$0xf] %vm1465, %v1359
  %1489 = vst.msk [vmem:[%s5 + $0x5c] sm:$0xf] %vm1465, %v1360
  %1490 = vst.msk [vmem:[%s5 + $0x60] sm:$0xf] %vm1465, %v1361
  %1491 = vst.msk [vmem:[%s5 + $0x64] sm:$0xf] %vm1465, %v1362
  %1492 = vst.msk [vmem:[%s5 + $0x68] sm:$0xf] %vm1465, %v1363
  %1493 = vst.msk [vmem:[%s5 + $0x6c] sm:$0xf] %vm1465, %v1364
  %1494 = vst.msk [vmem:[%s5 + $0x70] sm:$0xf] %vm1465, %v1365
  %1495 = vst.msk [vmem:[%s5 + $0x74] sm:$0xf] %vm1465, %v1366
  %1496 = vst.msk [vmem:[%s5 + $0x78] sm:$0xf] %vm1465, %v1367
  %1497 = vst.msk [vmem:[%s5 + $0x7c] sm:$0xf] %vm1465, %v1368
  %1498 = vst.msk [vmem:[%s5 + $0x80] sm:$0xf] %vm1465, %v1369
  %1499 = vst.msk [vmem:[%s5 + $0x84] sm:$0xf] %vm1465, %v1370
  %1500 = vst.msk [vmem:[%s5 + $0x88] sm:$0xf] %vm1465, %v1371
  %1501 = vst.msk [vmem:[%s5 + $0x8c] sm:$0xf] %vm1465, %v1372
  %1502 = vst.msk [vmem:[%s5 + $0x90] sm:$0xf] %vm1465, %v1373
  %1503 = vst.msk [vmem:[%s5 + $0x94] sm:$0xf] %vm1465, %v1374
  %1504 = vst.msk [vmem:[%s5 + $0x98] sm:$0xf] %vm1465, %v1375
  %1505 = vst.msk [vmem:[%s5 + $0x9c] sm:$0xf] %vm1465, %v1376
  %1506 = vst.msk [vmem:[%s5 + $0xa0] sm:$0xf] %vm1465, %v1377
  %1507 = vst.msk [vmem:[%s5 + $0xa4] sm:$0xf] %vm1465, %v1378
  %1508 = vst.msk [vmem:[%s5 + $0xa8] sm:$0xf] %vm1465, %v1379
  %1509 = vst.msk [vmem:[%s5 + $0xac] sm:$0xf] %vm1465, %v1380
  %1510 = vst.msk [vmem:[%s5 + $0xb0] sm:$0xf] %vm1465, %v1381
  %1511 = vst.msk [vmem:[%s5 + $0xb4] sm:$0xf] %vm1465, %v1382
  %1512 = vst.msk [vmem:[%s5 + $0xb8] sm:$0xf] %vm1465, %v1383
  %1513 = vst.msk [vmem:[%s5 + $0xbc] sm:$0xf] %vm1465, %v1384
  %1514 = vst.msk [vmem:[%s5 + $0xc0] sm:$0xf] %vm1465, %v1385
  %1515 = vst.msk [vmem:[%s5 + $0xc4] sm:$0xf] %vm1465, %v1386
  %1516 = vst.msk [vmem:[%s5 + $0xc8] sm:$0xf] %vm1465, %v1387
  %1517 = vst.msk [vmem:[%s5 + $0xcc] sm:$0xf] %vm1465, %v1388
  %1518 = vst.msk [vmem:[%s5 + $0xd0] sm:$0xf] %vm1465, %v1389
  %1519 = vst.msk [vmem:[%s5 + $0xd4] sm:$0xf] %vm1465, %v1390
  %1520 = vst.msk [vmem:[%s5 + $0xd8] sm:$0xf] %vm1465, %v1391
  %1521 = vst.msk [vmem:[%s5 + $0xdc] sm:$0xf] %vm1465, %v1392
  %1522 = vst.msk [vmem:[%s5 + $0xe0] sm:$0xf] %vm1465, %v1393
  %1523 = vst.msk [vmem:[%s5 + $0xe4] sm:$0xf] %vm1465, %v1394
  %1524 = vst.msk [vmem:[%s5 + $0xe8] sm:$0xf] %vm1465, %v1395
  %1525 = vst.msk [vmem:[%s5 + $0xec] sm:$0xf] %vm1465, %v1396
  %1526 = vst.msk [vmem:[%s5 + $0xf0] sm:$0xf] %vm1465, %v1397
  %1527 = vst.msk [vmem:[%s5 + $0xf4] sm:$0xf] %vm1465, %v1398
  %1528 = vst.msk [vmem:[%s5 + $0xf8] sm:$0xf] %vm1465, %v1399
  %1529 = vst.msk [vmem:[%s5 + $0xfc] sm:$0xf] %vm1465, %v1400
  // Predicated region
  $region22: #{ae_forward.7} parent=0 // pred_check
    _
  $region23: #{ae_forward.7} parent=0 // pred_check_branch
    %1531 = sbr.rel (0) target = $region25
  $region24: #{ae_forward.7} parent=0 // pred_region
    _
  $region25: #{ae_forward.7} parent=0 // pred_fallthru
    _
  // Predicated region
  $region26: #{ae_forward.7} parent=0 // pred_check
    _
  $region27: #{ae_forward.7} parent=0 // pred_check_branch
    %1533 = sbr.rel (0) target = $region29
  $region28: #{ae_forward.7} parent=0 // pred_region
    _
  $region29: #{ae_forward.7} parent=0 // pred_fallthru
    _

// kernel: ae_forward.8
$region0: #{ae_forward.8}
  #allocation0 [shape = 'u32[]', space=smem, size = 0x4, offset = 0x4, fixed_abs, tag = 'smem constant byte address 0x4 - core index']
  #allocation1 [shape = 'u32[144,128]{1,0:T(1,128)}', space=vmem, size = 0x12000, scoped, tag = 'internal scratch']
  %s0 = inlined_call_operand.vmem [shape: bf16[128,256], index: 0, kind: input, shape index: {}]
  %s1 = inlined_call_operand.vmem [shape: bf16[256,32], index: 1, kind: input, shape index: {}]
  %s2 = inlined_call_operand.vmem [shape: f32[1,32], index: 2, kind: input, shape index: {}]
  %s3 = inlined_call_operand.vmem [shape: f32[1,32], index: 3, kind: input, shape index: {}]
  %s4 = inlined_call_operand.vmem [shape: f32[1,32], index: 4, kind: input, shape index: {}]
  %s5 = inlined_call_operand.vmem [shape: bf16[128,32], index: 5, kind: output, shape index: {}]
  %s6 = sld [smem:[#allocation0]]
  $region30: #{ae_forward.8} parent=0
    _
  %s8 = ssub.s32 1, %s6
  %s9 = scalar_select 0, %s8, %s6
  // Predicated region
  $region2: #{ae_forward.8} parent=0 // pred_check
    _
  $region3: #{ae_forward.8} parent=0 // pred_check_branch
    %11 = sbr.rel (0) target = $region5
  $region4: #{ae_forward.8} parent=0 // pred_region
    _
  $region5: #{ae_forward.8} parent=0 // pred_fallthru
    _
  // Predicated region
  $region6: #{ae_forward.8} parent=0 // pred_check
    _
  $region7: #{ae_forward.8} parent=0 // pred_check_branch
    %13 = sbr.rel (0) target = $region9
  $region8: #{ae_forward.8} parent=0 // pred_region
    _
  $region9: #{ae_forward.8} parent=0 // pred_fallthru
    _
  // Predicated region
  $region10: #{ae_forward.8} parent=0 // pred_check
    _
  $region11: #{ae_forward.8} parent=0 // pred_check_branch
    %15 = sbr.rel (0) target = $region13
  $region12: #{ae_forward.8} parent=0 // pred_region
    _
  $region13: #{ae_forward.8} parent=0 // pred_fallthru
    _
  // Predicated region
  $region14: #{ae_forward.8} parent=0 // pred_check
    _
  $region15: #{ae_forward.8} parent=0 // pred_check_branch
    %17 = sbr.rel (0) target = $region17
  $region16: #{ae_forward.8} parent=0 // pred_region
    _
  $region17: #{ae_forward.8} parent=0 // pred_fallthru
    _
  // Predicated region
  $region18: #{ae_forward.8} parent=0 // pred_check
    _
  $region19: #{ae_forward.8} parent=0 // pred_check_branch
    %19 = sbr.rel (0) target = $region21
  $region20: #{ae_forward.8} parent=0 // pred_region
    _
  $region21: #{ae_forward.8} parent=0 // pred_fallthru
    _
  %v21 = vld [vmem:[%s0] sm:$0xff]
  %v22 = vld [vmem:[%s0 + $0x8] sm:$0xff]
  %v23 = vld [vmem:[%s0 + $0x10] sm:$0xff]
  %v24 = vld [vmem:[%s0 + $0x18] sm:$0xff]
  %v25 = vld [vmem:[%s0 + $0x20] sm:$0xff]
  %v26 = vld [vmem:[%s0 + $0x28] sm:$0xff]
  %v27 = vld [vmem:[%s0 + $0x30] sm:$0xff]
  %v28 = vld [vmem:[%s0 + $0x38] sm:$0xff]
  %v29 = vld [vmem:[%s0 + $0x40] sm:$0xff]
  %v30 = vld [vmem:[%s0 + $0x48] sm:$0xff]
  %v31 = vld [vmem:[%s0 + $0x50] sm:$0xff]
  %v32 = vld [vmem:[%s0 + $0x58] sm:$0xff]
  %v33 = vld [vmem:[%s0 + $0x60] sm:$0xff]
  %v34 = vld [vmem:[%s0 + $0x68] sm:$0xff]
  %v35 = vld [vmem:[%s0 + $0x70] sm:$0xff]
  %v36 = vld [vmem:[%s0 + $0x78] sm:$0xff]
  %v37 = vld [vmem:[%s1] sm:$0xf]
  %v38 = vld [vmem:[%s1 + $0x4] sm:$0xf]
  %v39 = vld [vmem:[%s1 + $0x8] sm:$0xf]
  %v40 = vld [vmem:[%s1 + $0xc] sm:$0xf]
  %v41 = vld [vmem:[%s1 + $0x10] sm:$0xf]
  %v42 = vld [vmem:[%s1 + $0x14] sm:$0xf]
  %v43 = vld [vmem:[%s1 + $0x18] sm:$0xf]
  %v44 = vld [vmem:[%s1 + $0x1c] sm:$0xf]
  %v45 = vld [vmem:[%s1 + $0x20] sm:$0xf]
  %v46 = vld [vmem:[%s1 + $0x24] sm:$0xf]
  %v47 = vld [vmem:[%s1 + $0x28] sm:$0xf]
  %v48 = vld [vmem:[%s1 + $0x2c] sm:$0xf]
  %v49 = vld [vmem:[%s1 + $0x30] sm:$0xf]
  %v50 = vld [vmem:[%s1 + $0x34] sm:$0xf]
  %v51 = vld [vmem:[%s1 + $0x38] sm:$0xf]
  %v52 = vld [vmem:[%s1 + $0x3c] sm:$0xf]
  %v53 = vld [vmem:[%s1 + $0x40] sm:$0xf]
  %v54 = vld [vmem:[%s1 + $0x44] sm:$0xf]
  %v55 = vld [vmem:[%s1 + $0x48] sm:$0xf]
  %v56 = vld [vmem:[%s1 + $0x4c] sm:$0xf]
  %v57 = vld [vmem:[%s1 + $0x50] sm:$0xf]
  %v58 = vld [vmem:[%s1 + $0x54] sm:$0xf]
  %v59 = vld [vmem:[%s1 + $0x58] sm:$0xf]
  %v60 = vld [vmem:[%s1 + $0x5c] sm:$0xf]
  %v61 = vld [vmem:[%s1 + $0x60] sm:$0xf]
  %v62 = vld [vmem:[%s1 + $0x64] sm:$0xf]
  %v63 = vld [vmem:[%s1 + $0x68] sm:$0xf]
  %v64 = vld [vmem:[%s1 + $0x6c] sm:$0xf]
  %v65 = vld [vmem:[%s1 + $0x70] sm:$0xf]
  %v66 = vld [vmem:[%s1 + $0x74] sm:$0xf]
  %v67 = vld [vmem:[%s1 + $0x78] sm:$0xf]
  %v68 = vld [vmem:[%s1 + $0x7c] sm:$0xf]
  %v69 = vld [vmem:[%s2] sm:$0x1]
  %v71 = vlaneseq
  %v72 = vshrl.u32 %v71, 7
  %v73 = vsub.s32 0, %v72
  %v74 = vrot.slane %v69, %v73
  %v92 = vunpack.c.l.b16 %v21
  %v93 = vunpack.c.h.b16 %v21
  %v94 = vunpack.c.l.b16 %v22
  %v95 = vunpack.c.h.b16 %v22
  %v96 = vunpack.c.l.b16 %v23
  %v97 = vunpack.c.h.b16 %v23
  %v98 = vunpack.c.l.b16 %v24
  %v99 = vunpack.c.h.b16 %v24
  %v100 = vunpack.c.l.b16 %v25
  %v101 = vunpack.c.h.b16 %v25
  %v102 = vunpack.c.l.b16 %v26
  %v103 = vunpack.c.h.b16 %v26
  %v104 = vunpack.c.l.b16 %v27
  %v105 = vunpack.c.h.b16 %v27
  %v106 = vunpack.c.l.b16 %v28
  %v107 = vunpack.c.h.b16 %v28
  %v108 = vunpack.c.l.b16 %v29
  %v109 = vunpack.c.h.b16 %v29
  %v110 = vunpack.c.l.b16 %v30
  %v111 = vunpack.c.h.b16 %v30
  %v112 = vunpack.c.l.b16 %v31
  %v113 = vunpack.c.h.b16 %v31
  %v114 = vunpack.c.l.b16 %v32
  %v115 = vunpack.c.h.b16 %v32
  %v116 = vunpack.c.l.b16 %v33
  %v117 = vunpack.c.h.b16 %v33
  %v118 = vunpack.c.l.b16 %v34
  %v119 = vunpack.c.h.b16 %v34
  %v120 = vunpack.c.l.b16 %v35
  %v121 = vunpack.c.h.b16 %v35
  %v122 = vunpack.c.l.b16 %v36
  %v123 = vunpack.c.h.b16 %v36
  %v124 = vpack.c.b16 %v94, %v92
  %v125 = vpack.c.b16 %v95, %v93
  %v126 = vpack.c.b16 %v98, %v96
  %v127 = vpack.c.b16 %v99, %v97
  %v128 = vpack.c.b16 %v102, %v100
  %v129 = vpack.c.b16 %v103, %v101
  %v130 = vpack.c.b16 %v106, %v104
  %v131 = vpack.c.b16 %v107, %v105
  %v132 = vpack.c.b16 %v110, %v108
  %v133 = vpack.c.b16 %v111, %v109
  %v134 = vpack.c.b16 %v114, %v112
  %v135 = vpack.c.b16 %v115, %v113
  %v136 = vpack.c.b16 %v118, %v116
  %v137 = vpack.c.b16 %v119, %v117
  %v138 = vpack.c.b16 %v122, %v120
  %v139 = vpack.c.b16 %v123, %v121
  %v188 = vunpack.c.l.b16 %v37
  %v189 = vunpack.c.l.b16 %v38
  %v190 = vunpack.c.l.b16 %v39
  %v191 = vunpack.c.l.b16 %v40
  %v192 = vunpack.c.l.b16 %v41
  %v193 = vunpack.c.l.b16 %v42
  %v194 = vunpack.c.l.b16 %v43
  %v195 = vunpack.c.l.b16 %v44
  %v196 = vunpack.c.l.b16 %v45
  %v197 = vunpack.c.l.b16 %v46
  %v198 = vunpack.c.l.b16 %v47
  %v199 = vunpack.c.l.b16 %v48
  %v200 = vunpack.c.l.b16 %v49
  %v201 = vunpack.c.l.b16 %v50
  %v202 = vunpack.c.l.b16 %v51
  %v203 = vunpack.c.l.b16 %v52
  %v204 = vunpack.c.l.b16 %v53
  %v205 = vunpack.c.l.b16 %v54
  %v206 = vunpack.c.l.b16 %v55
  %v207 = vunpack.c.l.b16 %v56
  %v208 = vunpack.c.l.b16 %v57
  %v209 = vunpack.c.l.b16 %v58
  %v210 = vunpack.c.l.b16 %v59
  %v211 = vunpack.c.l.b16 %v60
  %v212 = vunpack.c.l.b16 %v61
  %v213 = vunpack.c.l.b16 %v62
  %v214 = vunpack.c.l.b16 %v63
  %v215 = vunpack.c.l.b16 %v64
  %v216 = vunpack.c.l.b16 %v65
  %v217 = vunpack.c.l.b16 %v66
  %v218 = vunpack.c.l.b16 %v67
  %v219 = vunpack.c.l.b16 %v68
  %v220 = vpack.c.b16 %v189, %v188
  %v221 = vpack.c.b16 %v191, %v190
  %v222 = vpack.c.b16 %v193, %v192
  %v223 = vpack.c.b16 %v195, %v194
  %v224 = vpack.c.b16 %v197, %v196
  %v225 = vpack.c.b16 %v199, %v198
  %v226 = vpack.c.b16 %v201, %v200
  %v227 = vpack.c.b16 %v203, %v202
  %v228 = vpack.c.b16 %v205, %v204
  %v229 = vpack.c.b16 %v207, %v206
  %v230 = vpack.c.b16 %v209, %v208
  %v231 = vpack.c.b16 %v211, %v210
  %v232 = vpack.c.b16 %v213, %v212
  %v233 = vpack.c.b16 %v215, %v214
  %v234 = vpack.c.b16 %v217, %v216
  %v235 = vpack.c.b16 %v219, %v218
  %252 = vmatprep.subr.bf16.mxu0 0
  %253 = vmatpush1.bf16.msra.mxu0 %v220
  %254 = vmatprep.subr.bf16.mxu0 0
  %255 = vmatpush1.bf16.msra.mxu0 %v221
  %256 = vmatprep.subr.bf16.mxu0 0
  %257 = vmatpush1.bf16.msra.mxu0 %v222
  %258 = vmatprep.subr.bf16.mxu0 0
  %259 = vmatpush1.bf16.msra.mxu0 %v223
  %260 = vmatprep.subr.bf16.mxu0 0
  %261 = vmatpush1.bf16.msra.mxu0 %v224
  %262 = vmatprep.subr.bf16.mxu0 0
  %263 = vmatpush1.bf16.msra.mxu0 %v225
  %264 = vmatprep.subr.bf16.mxu0 0
  %265 = vmatpush1.bf16.msra.mxu0 %v226
  %266 = vmatprep.subr.bf16.mxu0 0
  %267 = vmatpush1.bf16.msra.mxu0 %v227
  %268 = vmatprep.subr.bf16.mxu0 0
  %269 = vmatpush1.bf16.msra.mxu0 %v228
  %270 = vmatprep.subr.bf16.mxu0 0
  %271 = vmatpush1.bf16.msra.mxu0 %v229
  %272 = vmatprep.subr.bf16.mxu0 0
  %273 = vmatpush1.bf16.msra.mxu0 %v230
  %274 = vmatprep.subr.bf16.mxu0 0
  %275 = vmatpush1.bf16.msra.mxu0 %v231
  %276 = vmatprep.subr.bf16.mxu0 0
  %277 = vmatpush1.bf16.msra.mxu0 %v232
  %278 = vmatprep.subr.bf16.mxu0 0
  %279 = vmatpush1.bf16.msra.mxu0 %v233
  %280 = vmatprep.subr.bf16.mxu0 0
  %281 = vmatpush1.bf16.msra.mxu0 %v234
  %282 = vmatprep.subr.bf16.mxu0 0
  %283 = vmatpush1.bf16.msra.mxu0 %v235
  %284 = vmatprep.mubr.bf16.mxu0 %v125
  %285 = vmatmul.mubr.bf16.gmra.mrb[0].mxu0 %v124
  %v286 = vpop.f32.mrb[0].mxu0
  %v287 = vadd.f32 %v74, %v286
  %v288 = vpop.f32.mrb[0].mxu0
  %v289 = vpop.f32.mrb[0].mxu0
  %v290 = vadd.f32 %v74, %v289
  %v291 = vpop.f32.mrb[0].mxu0
  %292 = vmatprep.mubr.bf16.mxu0 %v127
  %293 = vmatmul.mubr.bf16.gmra.mrb[0].mxu0 %v126
  %v294 = vpop.f32.mrb[0].mxu0
  %v295 = vadd.f32 %v74, %v294
  %v296 = vpop.f32.mrb[0].mxu0
  %v297 = vpop.f32.mrb[0].mxu0
  %v298 = vadd.f32 %v74, %v297
  %v299 = vpop.f32.mrb[0].mxu0
  %300 = vmatprep.mubr.bf16.mxu0 %v129
  %301 = vmatmul.mubr.bf16.gmra.mrb[0].mxu0 %v128
  %v302 = vpop.f32.mrb[0].mxu0
  %v303 = vadd.f32 %v74, %v302
  %v304 = vpop.f32.mrb[0].mxu0
  %v305 = vpop.f32.mrb[0].mxu0
  %v306 = vadd.f32 %v74, %v305
  %v307 = vpop.f32.mrb[0].mxu0
  %308 = vmatprep.mubr.bf16.mxu0 %v131
  %309 = vmatmul.mubr.bf16.gmra.mrb[0].mxu0 %v130
  %v310 = vpop.f32.mrb[0].mxu0
  %v311 = vadd.f32 %v74, %v310
  %v312 = vpop.f32.mrb[0].mxu0
  %v313 = vpop.f32.mrb[0].mxu0
  %v314 = vadd.f32 %v74, %v313
  %v315 = vpop.f32.mrb[0].mxu0
  %316 = vmatprep.mubr.bf16.mxu0 %v133
  %317 = vmatmul.mubr.bf16.gmra.mrb[0].mxu0 %v132
  %v318 = vpop.f32.mrb[0].mxu0
  %v319 = vadd.f32 %v74, %v318
  %v320 = vpop.f32.mrb[0].mxu0
  %v321 = vpop.f32.mrb[0].mxu0
  %v322 = vadd.f32 %v74, %v321
  %v323 = vpop.f32.mrb[0].mxu0
  %324 = vmatprep.mubr.bf16.mxu0 %v135
  %325 = vmatmul.mubr.bf16.gmra.mrb[0].mxu0 %v134
  %v326 = vpop.f32.mrb[0].mxu0
  %v327 = vadd.f32 %v74, %v326
  %v328 = vpop.f32.mrb[0].mxu0
  %v329 = vpop.f32.mrb[0].mxu0
  %v330 = vadd.f32 %v74, %v329
  %v331 = vpop.f32.mrb[0].mxu0
  %332 = vmatprep.mubr.bf16.mxu0 %v137
  %333 = vmatmul.mubr.bf16.gmra.mrb[0].mxu0 %v136
  %v334 = vpop.f32.mrb[0].mxu0
  %v335 = vadd.f32 %v74, %v334
  %v336 = vpop.f32.mrb[0].mxu0
  %v337 = vpop.f32.mrb[0].mxu0
  %v338 = vadd.f32 %v74, %v337
  %v339 = vpop.f32.mrb[0].mxu0
  %340 = vmatprep.mubr.bf16.mxu0 %v139
  %341 = vmatmul.mubr.bf16.gmra.mrb[0].mxu0 %v138
  %v342 = vpop.f32.mrb[0].mxu0
  %v343 = vadd.f32 %v74, %v342
  %v344 = vpop.f32.mrb[0].mxu0
  %v345 = vpop.f32.mrb[0].mxu0
  %v346 = vadd.f32 %v74, %v345
  %v347 = vpop.f32.mrb[0].mxu0
  %348 = vdwg.mxu0
  %vm349 = vcmask 261120
  %v350 = vsel %vm349, %v287, 0.0
  %v351 = vsel %vm349, %v290, 0.0
  %v352 = vadd.f32 %v350, %v351
  %v353 = vsel %vm349, %v295, 0.0
  %v354 = vadd.f32 %v352, %v353
  %v355 = vsel %vm349, %v298, 0.0
  %v356 = vadd.f32 %v354, %v355
  %v357 = vsel %vm349, %v303, 0.0
  %v358 = vadd.f32 %v356, %v357
  %v359 = vsel %vm349, %v306, 0.0
  %v360 = vadd.f32 %v358, %v359
  %v361 = vsel %vm349, %v311, 0.0
  %v362 = vadd.f32 %v360, %v361
  %v363 = vsel %vm349, %v314, 0.0
  %v364 = vadd.f32 %v362, %v363
  %v365 = vsel %vm349, %v319, 0.0
  %v366 = vadd.f32 %v364, %v365
  %v367 = vsel %vm349, %v322, 0.0
  %v368 = vadd.f32 %v366, %v367
  %v369 = vsel %vm349, %v327, 0.0
  %v370 = vadd.f32 %v368, %v369
  %v371 = vsel %vm349, %v330, 0.0
  %v372 = vadd.f32 %v370, %v371
  %v373 = vsel %vm349, %v335, 0.0
  %v374 = vadd.f32 %v372, %v373
  %v375 = vsel %vm349, %v338, 0.0
  %v376 = vadd.f32 %v374, %v375
  %v377 = vsel %vm349, %v343, 0.0
  %v378 = vadd.f32 %v376, %v377
  %v379 = vsel %vm349, %v346, 0.0
  %v380 = vadd.f32 %v378, %v379
  %v381 = vrot.slane %v380, 4
  %v382 = vadd.f32 %v380, %v381
  %v383 = vrot.slane %v382, 2
  %v384 = vadd.f32 %v382, %v383
  %v385 = vrot.slane %v384, 1
  %v386 = vadd.f32 %v384, %v385
  %v387 = vmul.f32 %v287, %v287
  %v388 = vmul.f32 %v290, %v290
  %v389 = vmul.f32 %v295, %v295
  %v390 = vmul.f32 %v298, %v298
  %v391 = vmul.f32 %v303, %v303
  %v392 = vmul.f32 %v306, %v306
  %v393 = vmul.f32 %v311, %v311
  %v394 = vmul.f32 %v314, %v314
  %v395 = vmul.f32 %v319, %v319
  %v396 = vmul.f32 %v322, %v322
  %v397 = vmul.f32 %v327, %v327
  %v398 = vmul.f32 %v330, %v330
  %v399 = vmul.f32 %v335, %v335
  %v400 = vmul.f32 %v338, %v338
  %v401 = vmul.f32 %v343, %v343
  %v402 = vmul.f32 %v346, %v346
  %v403 = vsel %vm349, %v387, 0.0
  %v404 = vsel %vm349, %v388, 0.0
  %v405 = vadd.f32 %v403, %v404
  %v406 = vsel %vm349, %v389, 0.0
  %v407 = vadd.f32 %v405, %v406
  %v408 = vsel %vm349, %v390, 0.0
  %v409 = vadd.f32 %v407, %v408
  %v410 = vsel %vm349, %v391, 0.0
  %v411 = vadd.f32 %v409, %v410
  %v412 = vsel %vm349, %v392, 0.0
  %v413 = vadd.f32 %v411, %v412
  %v414 = vsel %vm349, %v393, 0.0
  %v415 = vadd.f32 %v413, %v414
  %v416 = vsel %vm349, %v394, 0.0
  %v417 = vadd.f32 %v415, %v416
  %v418 = vsel %vm349, %v395, 0.0
  %v419 = vadd.f32 %v417, %v418
  %v420 = vsel %vm349, %v396, 0.0
  %v421 = vadd.f32 %v419, %v420
  %v422 = vsel %vm349, %v397, 0.0
  %v423 = vadd.f32 %v421, %v422
  %v424 = vsel %vm349, %v398, 0.0
  %v425 = vadd.f32 %v423, %v424
  %v426 = vsel %vm349, %v399, 0.0
  %v427 = vadd.f32 %v425, %v426
  %v428 = vsel %vm349, %v400, 0.0
  %v429 = vadd.f32 %v427, %v428
  %v430 = vsel %vm349, %v401, 0.0
  %v431 = vadd.f32 %v429, %v430
  %v432 = vsel %vm349, %v402, 0.0
  %v433 = vadd.f32 %v431, %v432
  %v434 = vrot.slane %v433, 4
  %v435 = vadd.f32 %v433, %v434
  %v436 = vrot.slane %v435, 2
  %v437 = vadd.f32 %v435, %v436
  %v438 = vrot.slane %v437, 1
  %v439 = vadd.f32 %v437, %v438
  %v440 = vmul.f32 %v386, 0.0078125
  %v441 = vmul.f32 %v439, 0.0078125
  %v442 = vmul.f32 %v440, %v440
  %v443 = vsub.f32 %v441, %v442
  %v444 = vmax.f32 %v443, 0.0
  %v445 = vld [vmem:[%s3] sm:$0x1]
  %v446 = vadd.f32 %v444, 1e-05
  %v447 = vrsqrt.pop %v446
  %v448 = vmul.f32 %v445, %v447
  %v449 = vld [vmem:[%s4] sm:$0x1]
  %v450 = vmul.f32 %v440, %v448
  %v451 = vsub.f32 %v449, %v450
  %v453 = vlaneseq
  %v454 = vshrl.u32 %v453, 7
  %v455 = vsub.s32 0, %v454
  %v456 = vrot.slane %v448, %v455
  %v458 = vmul.f32 %v287, %v456
  %v459 = vmul.f32 %v290, %v456
  %v460 = vmul.f32 %v295, %v456
  %v461 = vmul.f32 %v298, %v456
  %v462 = vmul.f32 %v303, %v456
  %v463 = vmul.f32 %v306, %v456
  %v464 = vmul.f32 %v311, %v456
  %v465 = vmul.f32 %v314, %v456
  %v466 = vmul.f32 %v319, %v456
  %v467 = vmul.f32 %v322, %v456
  %v468 = vmul.f32 %v327, %v456
  %v469 = vmul.f32 %v330, %v456
  %v470 = vmul.f32 %v335, %v456
  %v471 = vmul.f32 %v338, %v456
  %v472 = vmul.f32 %v343, %v456
  %v473 = vmul.f32 %v346, %v456
  %v475 = vlaneseq
  %v476 = vshrl.u32 %v475, 7
  %v477 = vsub.s32 0, %v476
  %v478 = vrot.slane %v451, %v477
  %v480 = vadd.f32 %v458, %v478
  %v481 = vadd.f32 %v459, %v478
  %v482 = vadd.f32 %v460, %v478
  %v483 = vadd.f32 %v461, %v478
  %v484 = vadd.f32 %v462, %v478
  %v485 = vadd.f32 %v463, %v478
  %v486 = vadd.f32 %v464, %v478
  %v487 = vadd.f32 %v465, %v478
  %v488 = vadd.f32 %v466, %v478
  %v489 = vadd.f32 %v467, %v478
  %v490 = vadd.f32 %v468, %v478
  %v491 = vadd.f32 %v469, %v478
  %v492 = vadd.f32 %v470, %v478
  %v493 = vadd.f32 %v471, %v478
  %v494 = vadd.f32 %v472, %v478
  %v495 = vadd.f32 %v473, %v478
  %v496 = vmax.f32 %v480, 0.0
  %v497 = vmax.f32 %v481, 0.0
  %v498 = vmax.f32 %v482, 0.0
  %v499 = vmax.f32 %v483, 0.0
  %v500 = vmax.f32 %v484, 0.0
  %v501 = vmax.f32 %v485, 0.0
  %v502 = vmax.f32 %v486, 0.0
  %v503 = vmax.f32 %v487, 0.0
  %v504 = vmax.f32 %v488, 0.0
  %v505 = vmax.f32 %v489, 0.0
  %v506 = vmax.f32 %v490, 0.0
  %v507 = vmax.f32 %v491, 0.0
  %v508 = vmax.f32 %v492, 0.0
  %v509 = vmax.f32 %v493, 0.0
  %v510 = vmax.f32 %v494, 0.0
  %v511 = vmax.f32 %v495, 0.0
  %v512 = vpack.c.bf16 %v497, %v496
  %v513 = vpack.c.bf16 %v499, %v498
  %v514 = vpack.c.bf16 %v501, %v500
  %v515 = vpack.c.bf16 %v503, %v502
  %v516 = vpack.c.bf16 %v505, %v504
  %v517 = vpack.c.bf16 %v507, %v506
  %v518 = vpack.c.bf16 %v509, %v508
  %v519 = vpack.c.bf16 %v511, %v510
  %v528 = vunpack.c.l.b16 %v512
  %v529 = vunpack.c.h.b16 %v512
  %v530 = vunpack.c.l.b16 %v513
  %v531 = vunpack.c.h.b16 %v513
  %v532 = vunpack.c.l.b16 %v514
  %v533 = vunpack.c.h.b16 %v514
  %v534 = vunpack.c.l.b16 %v515
  %v535 = vunpack.c.h.b16 %v515
  %v536 = vunpack.c.l.b16 %v516
  %v537 = vunpack.c.h.b16 %v516
  %v538 = vunpack.c.l.b16 %v517
  %v539 = vunpack.c.h.b16 %v517
  %v540 = vunpack.c.l.b16 %v518
  %v541 = vunpack.c.h.b16 %v518
  %v542 = vunpack.c.l.b16 %v519
  %v543 = vunpack.c.h.b16 %v519
  %v544 = vpack.c.b16 %v528, %v528
  %v545 = vpack.c.b16 %v529, %v529
  %v546 = vpack.c.b16 %v530, %v530
  %v547 = vpack.c.b16 %v531, %v531
  %v548 = vpack.c.b16 %v532, %v532
  %v549 = vpack.c.b16 %v533, %v533
  %v550 = vpack.c.b16 %v534, %v534
  %v551 = vpack.c.b16 %v535, %v535
  %v552 = vpack.c.b16 %v536, %v536
  %v553 = vpack.c.b16 %v537, %v537
  %v554 = vpack.c.b16 %v538, %v538
  %v555 = vpack.c.b16 %v539, %v539
  %v556 = vpack.c.b16 %v540, %v540
  %v557 = vpack.c.b16 %v541, %v541
  %v558 = vpack.c.b16 %v542, %v542
  %v559 = vpack.c.b16 %v543, %v543
  %vm576 = vcmask 257024
  %577 = vst.msk [vmem:[%s5] sm:$0xf] %vm576, %v544
  %578 = vst.msk [vmem:[%s5 + $0x4] sm:$0xf] %vm576, %v545
  %579 = vst.msk [vmem:[%s5 + $0x8] sm:$0xf] %vm576, %v546
  %580 = vst.msk [vmem:[%s5 + $0xc] sm:$0xf] %vm576, %v547
  %581 = vst.msk [vmem:[%s5 + $0x10] sm:$0xf] %vm576, %v548
  %582 = vst.msk [vmem:[%s5 + $0x14] sm:$0xf] %vm576, %v549
  %583 = vst.msk [vmem:[%s5 + $0x18] sm:$0xf] %vm576, %v550
  %584 = vst.msk [vmem:[%s5 + $0x1c] sm:$0xf] %vm576, %v551
  %585 = vst.msk [vmem:[%s5 + $0x20] sm:$0xf] %vm576, %v552
  %586 = vst.msk [vmem:[%s5 + $0x24] sm:$0xf] %vm576, %v553
  %587 = vst.msk [vmem:[%s5 + $0x28] sm:$0xf] %vm576, %v554
  %588 = vst.msk [vmem:[%s5 + $0x2c] sm:$0xf] %vm576, %v555
  %589 = vst.msk [vmem:[%s5 + $0x30] sm:$0xf] %vm576, %v556
  %590 = vst.msk [vmem:[%s5 + $0x34] sm:$0xf] %vm576, %v557
  %591 = vst.msk [vmem:[%s5 + $0x38] sm:$0xf] %vm576, %v558
  %592 = vst.msk [vmem:[%s5 + $0x3c] sm:$0xf] %vm576, %v559
  // Predicated region
  $region22: #{ae_forward.8} parent=0 // pred_check
    _
  $region23: #{ae_forward.8} parent=0 // pred_check_branch
    %594 = sbr.rel (0) target = $region25
  $region24: #{ae_forward.8} parent=0 // pred_region
    _
  $region25: #{ae_forward.8} parent=0 // pred_fallthru
    _
  // Predicated region
  $region26: #{ae_forward.8} parent=0 // pred_check
    _
  $region27: #{ae_forward.8} parent=0 // pred_check_branch
    %596 = sbr.rel (0) target = $region29
  $region28: #{ae_forward.8} parent=0 // pred_region
    _
  $region29: #{ae_forward.8} parent=0 // pred_fallthru
    _

// kernel: ae_forward.9
$region0: #{ae_forward.9}
  #allocation0 [shape = 'u32[]', space=smem, size = 0x4, offset = 0x4, fixed_abs, tag = 'smem constant byte address 0x4 - core index']
  #allocation1 [shape = 'u32[144,128]{1,0:T(1,128)}', space=vmem, size = 0x12000, scoped, tag = 'internal scratch']
  %s0 = inlined_call_operand.vmem [shape: bf16[32,512], index: 0, kind: input, shape index: {}]
  %s1 = inlined_call_operand.vmem [shape: bf16[512,64], index: 1, kind: input, shape index: {}]
  %s2 = inlined_call_operand.vmem [shape: f32[1,64], index: 2, kind: input, shape index: {}]
  %s3 = inlined_call_operand.vmem [shape: f32[1,64], index: 3, kind: input, shape index: {}]
  %s4 = inlined_call_operand.vmem [shape: f32[1,64], index: 4, kind: input, shape index: {}]
  %s5 = inlined_call_operand.vmem [shape: bf16[32,64], index: 5, kind: output, shape index: {}]
  %s6 = sld [smem:[#allocation0]]
  $region30: #{ae_forward.9} parent=0
    _
  %s8 = ssub.s32 1, %s6
  %s9 = scalar_select 0, %s8, %s6
  // Predicated region
  $region2: #{ae_forward.9} parent=0 // pred_check
    _
  $region3: #{ae_forward.9} parent=0 // pred_check_branch
    %11 = sbr.rel (0) target = $region5
  $region4: #{ae_forward.9} parent=0 // pred_region
    _
  $region5: #{ae_forward.9} parent=0 // pred_fallthru
    _
  // Predicated region
  $region6: #{ae_forward.9} parent=0 // pred_check
    _
  $region7: #{ae_forward.9} parent=0 // pred_check_branch
    %13 = sbr.rel (0) target = $region9
  $region8: #{ae_forward.9} parent=0 // pred_region
    _
  $region9: #{ae_forward.9} parent=0 // pred_fallthru
    _
  // Predicated region
  $region10: #{ae_forward.9} parent=0 // pred_check
    _
  $region11: #{ae_forward.9} parent=0 // pred_check_branch
    %15 = sbr.rel (0) target = $region13
  $region12: #{ae_forward.9} parent=0 // pred_region
    _
  $region13: #{ae_forward.9} parent=0 // pred_fallthru
    _
  // Predicated region
  $region14: #{ae_forward.9} parent=0 // pred_check
    _
  $region15: #{ae_forward.9} parent=0 // pred_check_branch
    %17 = sbr.rel (0) target = $region17
  $region16: #{ae_forward.9} parent=0 // pred_region
    _
  $region17: #{ae_forward.9} parent=0 // pred_fallthru
    _
  // Predicated region
  $region18: #{ae_forward.9} parent=0 // pred_check
    _
  $region19: #{ae_forward.9} parent=0 // pred_check_branch
    %19 = sbr.rel (0) target = $region21
  $region20: #{ae_forward.9} parent=0 // pred_region
    _
  $region21: #{ae_forward.9} parent=0 // pred_fallthru
    _
  %v21 = vld [vmem:[%s0] sm:$0xff]
  %v22 = vld [vmem:[%s0 + $0x8] sm:$0xff]
  %v23 = vld [vmem:[%s0 + $0x10] sm:$0xff]
  %v24 = vld [vmem:[%s0 + $0x18] sm:$0xff]
  %v25 = vld [vmem:[%s0 + $0x20] sm:$0xff]
  %v26 = vld [vmem:[%s0 + $0x28] sm:$0xff]
  %v27 = vld [vmem:[%s0 + $0x30] sm:$0xff]
  %v28 = vld [vmem:[%s0 + $0x38] sm:$0xff]
  %v29 = vld [vmem:[%s1] sm:$0xf]
  %v30 = vld [vmem:[%s1 + $0x4] sm:$0xf]
  %v31 = vld [vmem:[%s1 + $0x8] sm:$0xf]
  %v32 = vld [vmem:[%s1 + $0xc] sm:$0xf]
  %v33 = vld [vmem:[%s1 + $0x10] sm:$0xf]
  %v34 = vld [vmem:[%s1 + $0x14] sm:$0xf]
  %v35 = vld [vmem:[%s1 + $0x18] sm:$0xf]
  %v36 = vld [vmem:[%s1 + $0x1c] sm:$0xf]
  %v37 = vld [vmem:[%s1 + $0x20] sm:$0xf]
  %v38 = vld [vmem:[%s1 + $0x24] sm:$0xf]
  %v39 = vld [vmem:[%s1 + $0x28] sm:$0xf]
  %v40 = vld [vmem:[%s1 + $0x2c] sm:$0xf]
  %v41 = vld [vmem:[%s1 + $0x30] sm:$0xf]
  %v42 = vld [vmem:[%s1 + $0x34] sm:$0xf]
  %v43 = vld [vmem:[%s1 + $0x38] sm:$0xf]
  %v44 = vld [vmem:[%s1 + $0x3c] sm:$0xf]
  %v45 = vld [vmem:[%s1 + $0x40] sm:$0xf]
  %v46 = vld [vmem:[%s1 + $0x44] sm:$0xf]
  %v47 = vld [vmem:[%s1 + $0x48] sm:$0xf]
  %v48 = vld [vmem:[%s1 + $0x4c] sm:$0xf]
  %v49 = vld [vmem:[%s1 + $0x50] sm:$0xf]
  %v50 = vld [vmem:[%s1 + $0x54] sm:$0xf]
  %v51 = vld [vmem:[%s1 + $0x58] sm:$0xf]
  %v52 = vld [vmem:[%s1 + $0x5c] sm:$0xf]
  %v53 = vld [vmem:[%s1 + $0x60] sm:$0xf]
  %v54 = vld [vmem:[%s1 + $0x64] sm:$0xf]
  %v55 = vld [vmem:[%s1 + $0x68] sm:$0xf]
  %v56 = vld [vmem:[%s1 + $0x6c] sm:$0xf]
  %v57 = vld [vmem:[%s1 + $0x70] sm:$0xf]
  %v58 = vld [vmem:[%s1 + $0x74] sm:$0xf]
  %v59 = vld [vmem:[%s1 + $0x78] sm:$0xf]
  %v60 = vld [vmem:[%s1 + $0x7c] sm:$0xf]
  %v61 = vld [vmem:[%s1 + $0x80] sm:$0xf]
  %v62 = vld [vmem:[%s1 + $0x84] sm:$0xf]
  %v63 = vld [vmem:[%s1 + $0x88] sm:$0xf]
  %v64 = vld [vmem:[%s1 + $0x8c] sm:$0xf]
  %v65 = vld [vmem:[%s1 + $0x90] sm:$0xf]
  %v66 = vld [vmem:[%s1 + $0x94] sm:$0xf]
  %v67 = vld [vmem:[%s1 + $0x98] sm:$0xf]
  %v68 = vld [vmem:[%s1 + $0x9c] sm:$0xf]
  %v69 = vld [vmem:[%s1 + $0xa0] sm:$0xf]
  %v70 = vld [vmem:[%s1 + $0xa4] sm:$0xf]
  %v71 = vld [vmem:[%s1 + $0xa8] sm:$0xf]
  %v72 = vld [vmem:[%s1 + $0xac] sm:$0xf]
  %v73 = vld [vmem:[%s1 + $0xb0] sm:$0xf]
  %v74 = vld [vmem:[%s1 + $0xb4] sm:$0xf]
  %v75 = vld [vmem:[%s1 + $0xb8] sm:$0xf]
  %v76 = vld [vmem:[%s1 + $0xbc] sm:$0xf]
  %v77 = vld [vmem:[%s1 + $0xc0] sm:$0xf]
  %v78 = vld [vmem:[%s1 + $0xc4] sm:$0xf]
  %v79 = vld [vmem:[%s1 + $0xc8] sm:$0xf]
  %v80 = vld [vmem:[%s1 + $0xcc] sm:$0xf]
  %v81 = vld [vmem:[%s1 + $0xd0] sm:$0xf]
  %v82 = vld [vmem:[%s1 + $0xd4] sm:$0xf]
  %v83 = vld [vmem:[%s1 + $0xd8] sm:$0xf]
  %v84 = vld [vmem:[%s1 + $0xdc] sm:$0xf]
  %v85 = vld [vmem:[%s1 + $0xe0] sm:$0xf]
  %v86 = vld [vmem:[%s1 + $0xe4] sm:$0xf]
  %v87 = vld [vmem:[%s1 + $0xe8] sm:$0xf]
  %v88 = vld [vmem:[%s1 + $0xec] sm:$0xf]
  %v89 = vld [vmem:[%s1 + $0xf0] sm:$0xf]
  %v90 = vld [vmem:[%s1 + $0xf4] sm:$0xf]
  %v91 = vld [vmem:[%s1 + $0xf8] sm:$0xf]
  %v92 = vld [vmem:[%s1 + $0xfc] sm:$0xf]
  %v93 = vld [vmem:[%s2] sm:$0x1]
  %v95 = vlaneseq
  %v96 = vshrl.u32 %v95, 7
  %v97 = vsub.s32 0, %v96
  %v98 = vrot.slane %v93, %v97
  %v108 = vunpack.c.l.b16 %v21
  %v109 = vunpack.c.h.b16 %v21
  %v110 = vunpack.c.l.b16 %v22
  %v111 = vunpack.c.h.b16 %v22
  %v112 = vunpack.c.l.b16 %v23
  %v113 = vunpack.c.h.b16 %v23
  %v114 = vunpack.c.l.b16 %v24
  %v115 = vunpack.c.h.b16 %v24
  %v116 = vunpack.c.l.b16 %v25
  %v117 = vunpack.c.h.b16 %v25
  %v118 = vunpack.c.l.b16 %v26
  %v119 = vunpack.c.h.b16 %v26
  %v120 = vunpack.c.l.b16 %v27
  %v121 = vunpack.c.h.b16 %v27
  %v122 = vunpack.c.l.b16 %v28
  %v123 = vunpack.c.h.b16 %v28
  %v124 = vpack.c.b16 %v112, %v108
  %v125 = vpack.c.b16 %v113, %v109
  %v126 = vpack.c.b16 %v114, %v110
  %v127 = vpack.c.b16 %v115, %v111
  %v128 = vpack.c.b16 %v120, %v116
  %v129 = vpack.c.b16 %v121, %v117
  %v130 = vpack.c.b16 %v122, %v118
  %v131 = vpack.c.b16 %v123, %v119
  %v204 = vunpack.c.l.b16 %v29
  %v205 = vunpack.c.l.b16 %v30
  %v206 = vunpack.c.l.b16 %v31
  %v207 = vunpack.c.l.b16 %v32
  %v208 = vunpack.c.l.b16 %v33
  %v209 = vunpack.c.l.b16 %v34
  %v210 = vunpack.c.l.b16 %v35
  %v211 = vunpack.c.l.b16 %v36
  %v212 = vunpack.c.l.b16 %v37
  %v213 = vunpack.c.l.b16 %v38
  %v214 = vunpack.c.l.b16 %v39
  %v215 = vunpack.c.l.b16 %v40
  %v216 = vunpack.c.l.b16 %v41
  %v217 = vunpack.c.l.b16 %v42
  %v218 = vunpack.c.l.b16 %v43
  %v219 = vunpack.c.l.b16 %v44
  %v220 = vunpack.c.l.b16 %v45
  %v221 = vunpack.c.l.b16 %v46
  %v222 = vunpack.c.l.b16 %v47
  %v223 = vunpack.c.l.b16 %v48
  %v224 = vunpack.c.l.b16 %v49
  %v225 = vunpack.c.l.b16 %v50
  %v226 = vunpack.c.l.b16 %v51
  %v227 = vunpack.c.l.b16 %v52
  %v228 = vunpack.c.l.b16 %v53
  %v229 = vunpack.c.l.b16 %v54
  %v230 = vunpack.c.l.b16 %v55
  %v231 = vunpack.c.l.b16 %v56
  %v232 = vunpack.c.l.b16 %v57
  %v233 = vunpack.c.l.b16 %v58
  %v234 = vunpack.c.l.b16 %v59
  %v235 = vunpack.c.l.b16 %v60
  %v236 = vunpack.c.l.b16 %v61
  %v237 = vunpack.c.l.b16 %v62
  %v238 = vunpack.c.l.b16 %v63
  %v239 = vunpack.c.l.b16 %v64
  %v240 = vunpack.c.l.b16 %v65
  %v241 = vunpack.c.l.b16 %v66
  %v242 = vunpack.c.l.b16 %v67
  %v243 = vunpack.c.l.b16 %v68
  %v244 = vunpack.c.l.b16 %v69
  %v245 = vunpack.c.l.b16 %v70
  %v246 = vunpack.c.l.b16 %v71
  %v247 = vunpack.c.l.b16 %v72
  %v248 = vunpack.c.l.b16 %v73
  %v249 = vunpack.c.l.b16 %v74
  %v250 = vunpack.c.l.b16 %v75
  %v251 = vunpack.c.l.b16 %v76
  %v252 = vunpack.c.l.b16 %v77
  %v253 = vunpack.c.l.b16 %v78
  %v254 = vunpack.c.l.b16 %v79
  %v255 = vunpack.c.l.b16 %v80
  %v256 = vunpack.c.l.b16 %v81
  %v257 = vunpack.c.l.b16 %v82
  %v258 = vunpack.c.l.b16 %v83
  %v259 = vunpack.c.l.b16 %v84
  %v260 = vunpack.c.l.b16 %v85
  %v261 = vunpack.c.l.b16 %v86
  %v262 = vunpack.c.l.b16 %v87
  %v263 = vunpack.c.l.b16 %v88
  %v264 = vunpack.c.l.b16 %v89
  %v265 = vunpack.c.l.b16 %v90
  %v266 = vunpack.c.l.b16 %v91
  %v267 = vunpack.c.l.b16 %v92
  %v268 = vpack.c.b16 %v205, %v204
  %v269 = vpack.c.b16 %v207, %v206
  %v270 = vpack.c.b16 %v209, %v208
  %v271 = vpack.c.b16 %v211, %v210
  %v272 = vpack.c.b16 %v213, %v212
  %v273 = vpack.c.b16 %v215, %v214
  %v274 = vpack.c.b16 %v217, %v216
  %v275 = vpack.c.b16 %v219, %v218
  %v276 = vpack.c.b16 %v221, %v220
  %v277 = vpack.c.b16 %v223, %v222
  %v278 = vpack.c.b16 %v225, %v224
  %v279 = vpack.c.b16 %v227, %v226
  %v280 = vpack.c.b16 %v229, %v228
  %v281 = vpack.c.b16 %v231, %v230
  %v282 = vpack.c.b16 %v233, %v232
  %v283 = vpack.c.b16 %v235, %v234
  %v284 = vpack.c.b16 %v237, %v236
  %v285 = vpack.c.b16 %v239, %v238
  %v286 = vpack.c.b16 %v241, %v240
  %v287 = vpack.c.b16 %v243, %v242
  %v288 = vpack.c.b16 %v245, %v244
  %v289 = vpack.c.b16 %v247, %v246
  %v290 = vpack.c.b16 %v249, %v248
  %v291 = vpack.c.b16 %v251, %v250
  %v292 = vpack.c.b16 %v253, %v252
  %v293 = vpack.c.b16 %v255, %v254
  %v294 = vpack.c.b16 %v257, %v256
  %v295 = vpack.c.b16 %v259, %v258
  %v296 = vpack.c.b16 %v261, %v260
  %v297 = vpack.c.b16 %v263, %v262
  %v298 = vpack.c.b16 %v265, %v264
  %v299 = vpack.c.b16 %v267, %v266
  %332 = vmatprep.subr.bf16.mxu0 0
  %333 = vmatpush1.bf16.msra.mxu0 %v268
  %334 = vmatprep.subr.bf16.mxu0 0
  %335 = vmatpush1.bf16.msra.mxu0 %v269
  %336 = vmatprep.subr.bf16.mxu0 0
  %337 = vmatpush1.bf16.msra.mxu0 %v270
  %338 = vmatprep.subr.bf16.mxu0 0
  %339 = vmatpush1.bf16.msra.mxu0 %v271
  %340 = vmatprep.subr.bf16.mxu0 0
  %341 = vmatpush1.bf16.msra.mxu0 %v272
  %342 = vmatprep.subr.bf16.mxu0 0
  %343 = vmatpush1.bf16.msra.mxu0 %v273
  %344 = vmatprep.subr.bf16.mxu0 0
  %345 = vmatpush1.bf16.msra.mxu0 %v274
  %346 = vmatprep.subr.bf16.mxu0 0
  %347 = vmatpush1.bf16.msra.mxu0 %v275
  %348 = vmatprep.subr.bf16.mxu0 0
  %349 = vmatpush1.bf16.msra.mxu0 %v276
  %350 = vmatprep.subr.bf16.mxu0 0
  %351 = vmatpush1.bf16.msra.mxu0 %v277
  %352 = vmatprep.subr.bf16.mxu0 0
  %353 = vmatpush1.bf16.msra.mxu0 %v278
  %354 = vmatprep.subr.bf16.mxu0 0
  %355 = vmatpush1.bf16.msra.mxu0 %v279
  %356 = vmatprep.subr.bf16.mxu0 0
  %357 = vmatpush1.bf16.msra.mxu0 %v280
  %358 = vmatprep.subr.bf16.mxu0 0
  %359 = vmatpush1.bf16.msra.mxu0 %v281
  %360 = vmatprep.subr.bf16.mxu0 0
  %361 = vmatpush1.bf16.msra.mxu0 %v282
  %362 = vmatprep.subr.bf16.mxu0 0
  %363 = vmatpush1.bf16.msra.mxu0 %v283
  %364 = vmatprep.mubr.bf16.mxu0 %v125
  %365 = vmatmul.mubr.bf16.gmra.mrb[0].mxu0 %v124
  %v366 = vpop.f32.mrb[0].mxu0
  %v367 = vadd.f32 %v98, %v366
  %v368 = vpop.f32.mrb[0].mxu0
  %v369 = vpop.f32.mrb[0].mxu0
  %v370 = vadd.f32 %v98, %v369
  %v371 = vpop.f32.mrb[0].mxu0
  %372 = vmatprep.mubr.bf16.mxu0 %v129
  %373 = vmatmul.mubr.bf16.gmra.mrb[0].mxu0 %v128
  %v374 = vpop.f32.mrb[0].mxu0
  %v375 = vadd.f32 %v98, %v374
  %v376 = vpop.f32.mrb[0].mxu0
  %v377 = vpop.f32.mrb[0].mxu0
  %v378 = vadd.f32 %v98, %v377
  %v379 = vpop.f32.mrb[0].mxu0
  %380 = vdwg.mxu0
  %381 = vmatprep.subr.bf16.mxu0 0
  %382 = vmatpush1.bf16.msra.mxu0 %v284
  %383 = vmatprep.subr.bf16.mxu0 0
  %384 = vmatpush1.bf16.msra.mxu0 %v285
  %385 = vmatprep.subr.bf16.mxu0 0
  %386 = vmatpush1.bf16.msra.mxu0 %v286
  %387 = vmatprep.subr.bf16.mxu0 0
  %388 = vmatpush1.bf16.msra.mxu0 %v287
  %389 = vmatprep.subr.bf16.mxu0 0
  %390 = vmatpush1.bf16.msra.mxu0 %v288
  %391 = vmatprep.subr.bf16.mxu0 0
  %392 = vmatpush1.bf16.msra.mxu0 %v289
  %393 = vmatprep.subr.bf16.mxu0 0
  %394 = vmatpush1.bf16.msra.mxu0 %v290
  %395 = vmatprep.subr.bf16.mxu0 0
  %396 = vmatpush1.bf16.msra.mxu0 %v291
  %397 = vmatprep.subr.bf16.mxu0 0
  %398 = vmatpush1.bf16.msra.mxu0 %v292
  %399 = vmatprep.subr.bf16.mxu0 0
  %400 = vmatpush1.bf16.msra.mxu0 %v293
  %401 = vmatprep.subr.bf16.mxu0 0
  %402 = vmatpush1.bf16.msra.mxu0 %v294
  %403 = vmatprep.subr.bf16.mxu0 0
  %404 = vmatpush1.bf16.msra.mxu0 %v295
  %405 = vmatprep.subr.bf16.mxu0 0
  %406 = vmatpush1.bf16.msra.mxu0 %v296
  %407 = vmatprep.subr.bf16.mxu0 0
  %408 = vmatpush1.bf16.msra.mxu0 %v297
  %409 = vmatprep.subr.bf16.mxu0 0
  %410 = vmatpush1.bf16.msra.mxu0 %v298
  %411 = vmatprep.subr.bf16.mxu0 0
  %412 = vmatpush1.bf16.msra.mxu0 %v299
  %413 = vmatprep.mubr.bf16.mxu0 %v127
  %414 = vmatmul.mubr.bf16.gmra.mrb[0].mxu0 %v126
  %v415 = vpop.f32.mrb[0].mxu0
  %v416 = vadd.f32 %v367, %v415
  %v417 = vpop.f32.mrb[0].mxu0
  %v418 = vpop.f32.mrb[0].mxu0
  %v419 = vadd.f32 %v370, %v418
  %v420 = vpop.f32.mrb[0].mxu0
  %421 = vmatprep.mubr.bf16.mxu0 %v131
  %422 = vmatmul.mubr.bf16.gmra.mrb[0].mxu0 %v130
  %v423 = vpop.f32.mrb[0].mxu0
  %v424 = vadd.f32 %v375, %v423
  %v425 = vpop.f32.mrb[0].mxu0
  %v426 = vpop.f32.mrb[0].mxu0
  %v427 = vadd.f32 %v378, %v426
  %v428 = vpop.f32.mrb[0].mxu0
  %429 = vdwg.mxu0
  %vm430 = vcmask 523264
  %v431 = vsel %vm430, %v416, 0.0
  %v432 = vsel %vm430, %v419, 0.0
  %v433 = vadd.f32 %v431, %v432
  %v434 = vsel %vm430, %v424, 0.0
  %v435 = vadd.f32 %v433, %v434
  %v436 = vsel %vm430, %v427, 0.0
  %v437 = vadd.f32 %v435, %v436
  %v438 = vrot.slane %v437, 4
  %v439 = vadd.f32 %v437, %v438
  %v440 = vrot.slane %v439, 2
  %v441 = vadd.f32 %v439, %v440
  %v442 = vrot.slane %v441, 1
  %v443 = vadd.f32 %v441, %v442
  %v444 = vmul.f32 %v416, %v416
  %v445 = vmul.f32 %v419, %v419
  %v446 = vmul.f32 %v424, %v424
  %v447 = vmul.f32 %v427, %v427
  %v448 = vsel %vm430, %v444, 0.0
  %v449 = vsel %vm430, %v445, 0.0
  %v450 = vadd.f32 %v448, %v449
  %v451 = vsel %vm430, %v446, 0.0
  %v452 = vadd.f32 %v450, %v451
  %v453 = vsel %vm430, %v447, 0.0
  %v454 = vadd.f32 %v452, %v453
  %v455 = vrot.slane %v454, 4
  %v456 = vadd.f32 %v454, %v455
  %v457 = vrot.slane %v456, 2
  %v458 = vadd.f32 %v456, %v457
  %v459 = vrot.slane %v458, 1
  %v460 = vadd.f32 %v458, %v459
  %v461 = vmul.f32 %v443, 0.03125
  %v462 = vmul.f32 %v460, 0.03125
  %v463 = vmul.f32 %v461, %v461
  %v464 = vsub.f32 %v462, %v463
  %v465 = vmax.f32 %v464, 0.0
  %v466 = vld [vmem:[%s3] sm:$0x1]
  %v467 = vadd.f32 %v465, 1e-05
  %v468 = vrsqrt.pop %v467
  %v469 = vmul.f32 %v466, %v468
  %v470 = vld [vmem:[%s4] sm:$0x1]
  %v471 = vmul.f32 %v461, %v469
  %v472 = vsub.f32 %v470, %v471
  %v474 = vlaneseq
  %v475 = vshrl.u32 %v474, 7
  %v476 = vsub.s32 0, %v475
  %v477 = vrot.slane %v469, %v476
  %v479 = vmul.f32 %v416, %v477
  %v480 = vmul.f32 %v419, %v477
  %v481 = vmul.f32 %v424, %v477
  %v482 = vmul.f32 %v427, %v477
  %v484 = vlaneseq
  %v485 = vshrl.u32 %v484, 7
  %v486 = vsub.s32 0, %v485
  %v487 = vrot.slane %v472, %v486
  %v489 = vadd.f32 %v479, %v487
  %v490 = vadd.f32 %v480, %v487
  %v491 = vadd.f32 %v481, %v487
  %v492 = vadd.f32 %v482, %v487
  %v493 = vmax.f32 %v489, 0.0
  %v494 = vmax.f32 %v490, 0.0
  %v495 = vmax.f32 %v491, 0.0
  %v496 = vmax.f32 %v492, 0.0
  %v497 = vpack.c.bf16 %v494, %v493
  %v498 = vpack.c.bf16 %v496, %v495
  %v501 = vunpack.c.l.b16 %v497
  %v502 = vunpack.c.h.b16 %v497
  %v503 = vunpack.c.l.b16 %v498
  %v504 = vunpack.c.h.b16 %v498
  %v505 = vpack.c.b16 %v501, %v501
  %v506 = vpack.c.b16 %v502, %v502
  %v507 = vpack.c.b16 %v503, %v503
  %v508 = vpack.c.b16 %v504, %v504
  %vm513 = vcmask 519168
  %514 = vst.msk [vmem:[%s5] sm:$0xf] %vm513, %v505
  %515 = vst.msk [vmem:[%s5 + $0x4] sm:$0xf] %vm513, %v506
  %516 = vst.msk [vmem:[%s5 + $0x8] sm:$0xf] %vm513, %v507
  %517 = vst.msk [vmem:[%s5 + $0xc] sm:$0xf] %vm513, %v508
  // Predicated region
  $region22: #{ae_forward.9} parent=0 // pred_check
    _
  $region23: #{ae_forward.9} parent=0 // pred_check_branch
    %519 = sbr.rel (0) target = $region25
  $region24: #{ae_forward.9} parent=0 // pred_region
    _
  $region25: #{ae_forward.9} parent=0 // pred_fallthru
    _
  // Predicated region
  $region26: #{ae_forward.9} parent=0 // pred_check
    _
  $region27: #{ae_forward.9} parent=0 // pred_check_branch
    %521 = sbr.rel (0) target = $region29
  $region28: #{ae_forward.9} parent=0 // pred_region
    _
  $region29: #{ae_forward.9} parent=0 // pred_fallthru
    _

// kernel: ae_forward.10
$region0: #{ae_forward.10}
  #allocation0 [shape = 'u32[]', space=smem, size = 0x4, offset = 0x4, fixed_abs, tag = 'smem constant byte address 0x4 - core index']
  #allocation1 [shape = 'u32[144,128]{1,0:T(1,128)}', space=vmem, size = 0x12000, scoped, tag = 'internal scratch']
  %s0 = inlined_call_operand.vmem [shape: f32[2,1024], index: 0, kind: input, shape index: {}]
  %s1 = inlined_call_operand.vmem [shape: f32[1024,32], index: 1, kind: input, shape index: {}]
  %s2 = inlined_call_operand.vmem [shape: f32[1,32], index: 2, kind: input, shape index: {}]
  %s3 = inlined_call_operand.vmem [shape: f32[32,1024], index: 3, kind: input, shape index: {}]
  %s4 = inlined_call_operand.vmem [shape: f32[1,1024], index: 4, kind: input, shape index: {}]
  %s5 = inlined_call_operand.vmem [shape: f32[2,1024], index: 5, kind: output, shape index: {}]
  %s6 = sld [smem:[#allocation0]]
  $region30: #{ae_forward.10} parent=0
    _
  %s8 = ssub.s32 1, %s6
  %s9 = scalar_select 0, %s8, %s6
  // Predicated region
  $region2: #{ae_forward.10} parent=0 // pred_check
    _
  $region3: #{ae_forward.10} parent=0 // pred_check_branch
    %11 = sbr.rel (0) target = $region5
  $region4: #{ae_forward.10} parent=0 // pred_region
    _
  $region5: #{ae_forward.10} parent=0 // pred_fallthru
    _
  // Predicated region
  $region6: #{ae_forward.10} parent=0 // pred_check
    _
  $region7: #{ae_forward.10} parent=0 // pred_check_branch
    %13 = sbr.rel (0) target = $region9
  $region8: #{ae_forward.10} parent=0 // pred_region
    _
  $region9: #{ae_forward.10} parent=0 // pred_fallthru
    _
  // Predicated region
  $region10: #{ae_forward.10} parent=0 // pred_check
    _
  $region11: #{ae_forward.10} parent=0 // pred_check_branch
    %15 = sbr.rel (0) target = $region13
  $region12: #{ae_forward.10} parent=0 // pred_region
    _
  $region13: #{ae_forward.10} parent=0 // pred_fallthru
    _
  // Predicated region
  $region14: #{ae_forward.10} parent=0 // pred_check
    _
  $region15: #{ae_forward.10} parent=0 // pred_check_branch
    %17 = sbr.rel (0) target = $region17
  $region16: #{ae_forward.10} parent=0 // pred_region
    _
  $region17: #{ae_forward.10} parent=0 // pred_fallthru
    _
  // Predicated region
  $region18: #{ae_forward.10} parent=0 // pred_check
    _
  $region19: #{ae_forward.10} parent=0 // pred_check_branch
    %19 = sbr.rel (0) target = $region21
  $region20: #{ae_forward.10} parent=0 // pred_region
    _
  $region21: #{ae_forward.10} parent=0 // pred_fallthru
    _
  %v20 = vld [vmem:[%s0] sm:$0xff]
  %v21 = vld [vmem:[%s0 + $0x8] sm:$0xff]
  %v22 = vld [vmem:[%s1] sm:$0xff]
  %v23 = vld [vmem:[%s1 + $0x8] sm:$0xff]
  %v24 = vld [vmem:[%s1 + $0x10] sm:$0xff]
  %v25 = vld [vmem:[%s1 + $0x18] sm:$0xff]
  %v26 = vld [vmem:[%s1 + $0x20] sm:$0xff]
  %v27 = vld [vmem:[%s1 + $0x28] sm:$0xff]
  %v28 = vld [vmem:[%s1 + $0x30] sm:$0xff]
  %v29 = vld [vmem:[%s1 + $0x38] sm:$0xff]
  %v30 = vld [vmem:[%s1 + $0x40] sm:$0xff]
  %v31 = vld [vmem:[%s1 + $0x48] sm:$0xff]
  %v32 = vld [vmem:[%s1 + $0x50] sm:$0xff]
  %v33 = vld [vmem:[%s1 + $0x58] sm:$0xff]
  %v34 = vld [vmem:[%s1 + $0x60] sm:$0xff]
  %v35 = vld [vmem:[%s1 + $0x68] sm:$0xff]
  %v36 = vld [vmem:[%s1 + $0x70] sm:$0xff]
  %v37 = vld [vmem:[%s1 + $0x78] sm:$0xff]
  %v38 = vld [vmem:[%s1 + $0x80] sm:$0xff]
  %v39 = vld [vmem:[%s1 + $0x88] sm:$0xff]
  %v40 = vld [vmem:[%s1 + $0x90] sm:$0xff]
  %v41 = vld [vmem:[%s1 + $0x98] sm:$0xff]
  %v42 = vld [vmem:[%s1 + $0xa0] sm:$0xff]
  %v43 = vld [vmem:[%s1 + $0xa8] sm:$0xff]
  %v44 = vld [vmem:[%s1 + $0xb0] sm:$0xff]
  %v45 = vld [vmem:[%s1 + $0xb8] sm:$0xff]
  %v46 = vld [vmem:[%s1 + $0xc0] sm:$0xff]
  %v47 = vld [vmem:[%s1 + $0xc8] sm:$0xff]
  %v48 = vld [vmem:[%s1 + $0xd0] sm:$0xff]
  %v49 = vld [vmem:[%s1 + $0xd8] sm:$0xff]
  %v50 = vld [vmem:[%s1 + $0xe0] sm:$0xff]
  %v51 = vld [vmem:[%s1 + $0xe8] sm:$0xff]
  %v52 = vld [vmem:[%s1 + $0xf0] sm:$0xff]
  %v53 = vld [vmem:[%s1 + $0xf8] sm:$0xff]
  %v54 = vld [vmem:[%s1 + $0x100] sm:$0xff]
  %v55 = vld [vmem:[%s1 + $0x108] sm:$0xff]
  %v56 = vld [vmem:[%s1 + $0x110] sm:$0xff]
  %v57 = vld [vmem:[%s1 + $0x118] sm:$0xff]
  %v58 = vld [vmem:[%s1 + $0x120] sm:$0xff]
  %v59 = vld [vmem:[%s1 + $0x128] sm:$0xff]
  %v60 = vld [vmem:[%s1 + $0x130] sm:$0xff]
  %v61 = vld [vmem:[%s1 + $0x138] sm:$0xff]
  %v62 = vld [vmem:[%s1 + $0x140] sm:$0xff]
  %v63 = vld [vmem:[%s1 + $0x148] sm:$0xff]
  %v64 = vld [vmem:[%s1 + $0x150] sm:$0xff]
  %v65 = vld [vmem:[%s1 + $0x158] sm:$0xff]
  %v66 = vld [vmem:[%s1 + $0x160] sm:$0xff]
  %v67 = vld [vmem:[%s1 + $0x168] sm:$0xff]
  %v68 = vld [vmem:[%s1 + $0x170] sm:$0xff]
  %v69 = vld [vmem:[%s1 + $0x178] sm:$0xff]
  %v70 = vld [vmem:[%s1 + $0x180] sm:$0xff]
  %v71 = vld [vmem:[%s1 + $0x188] sm:$0xff]
  %v72 = vld [vmem:[%s1 + $0x190] sm:$0xff]
  %v73 = vld [vmem:[%s1 + $0x198] sm:$0xff]
  %v74 = vld [vmem:[%s1 + $0x1a0] sm:$0xff]
  %v75 = vld [vmem:[%s1 + $0x1a8] sm:$0xff]
  %v76 = vld [vmem:[%s1 + $0x1b0] sm:$0xff]
  %v77 = vld [vmem:[%s1 + $0x1b8] sm:$0xff]
  %v78 = vld [vmem:[%s1 + $0x1c0] sm:$0xff]
  %v79 = vld [vmem:[%s1 + $0x1c8] sm:$0xff]
  %v80 = vld [vmem:[%s1 + $0x1d0] sm:$0xff]
  %v81 = vld [vmem:[%s1 + $0x1d8] sm:$0xff]
  %v82 = vld [vmem:[%s1 + $0x1e0] sm:$0xff]
  %v83 = vld [vmem:[%s1 + $0x1e8] sm:$0xff]
  %v84 = vld [vmem:[%s1 + $0x1f0] sm:$0xff]
  %v85 = vld [vmem:[%s1 + $0x1f8] sm:$0xff]
  %v86 = vld [vmem:[%s1 + $0x200] sm:$0xff]
  %v87 = vld [vmem:[%s1 + $0x208] sm:$0xff]
  %v88 = vld [vmem:[%s1 + $0x210] sm:$0xff]
  %v89 = vld [vmem:[%s1 + $0x218] sm:$0xff]
  %v90 = vld [vmem:[%s1 + $0x220] sm:$0xff]
  %v91 = vld [vmem:[%s1 + $0x228] sm:$0xff]
  %v92 = vld [vmem:[%s1 + $0x230] sm:$0xff]
  %v93 = vld [vmem:[%s1 + $0x238] sm:$0xff]
  %v94 = vld [vmem:[%s1 + $0x240] sm:$0xff]
  %v95 = vld [vmem:[%s1 + $0x248] sm:$0xff]
  %v96 = vld [vmem:[%s1 + $0x250] sm:$0xff]
  %v97 = vld [vmem:[%s1 + $0x258] sm:$0xff]
  %v98 = vld [vmem:[%s1 + $0x260] sm:$0xff]
  %v99 = vld [vmem:[%s1 + $0x268] sm:$0xff]
  %v100 = vld [vmem:[%s1 + $0x270] sm:$0xff]
  %v101 = vld [vmem:[%s1 + $0x278] sm:$0xff]
  %v102 = vld [vmem:[%s1 + $0x280] sm:$0xff]
  %v103 = vld [vmem:[%s1 + $0x288] sm:$0xff]
  %v104 = vld [vmem:[%s1 + $0x290] sm:$0xff]
  %v105 = vld [vmem:[%s1 + $0x298] sm:$0xff]
  %v106 = vld [vmem:[%s1 + $0x2a0] sm:$0xff]
  %v107 = vld [vmem:[%s1 + $0x2a8] sm:$0xff]
  %v108 = vld [vmem:[%s1 + $0x2b0] sm:$0xff]
  %v109 = vld [vmem:[%s1 + $0x2b8] sm:$0xff]
  %v110 = vld [vmem:[%s1 + $0x2c0] sm:$0xff]
  %v111 = vld [vmem:[%s1 + $0x2c8] sm:$0xff]
  %v112 = vld [vmem:[%s1 + $0x2d0] sm:$0xff]
  %v113 = vld [vmem:[%s1 + $0x2d8] sm:$0xff]
  %v114 = vld [vmem:[%s1 + $0x2e0] sm:$0xff]
  %v115 = vld [vmem:[%s1 + $0x2e8] sm:$0xff]
  %v116 = vld [vmem:[%s1 + $0x2f0] sm:$0xff]
  %v117 = vld [vmem:[%s1 + $0x2f8] sm:$0xff]
  %v118 = vld [vmem:[%s1 + $0x300] sm:$0xff]
  %v119 = vld [vmem:[%s1 + $0x308] sm:$0xff]
  %v120 = vld [vmem:[%s1 + $0x310] sm:$0xff]
  %v121 = vld [vmem:[%s1 + $0x318] sm:$0xff]
  %v122 = vld [vmem:[%s1 + $0x320] sm:$0xff]
  %v123 = vld [vmem:[%s1 + $0x328] sm:$0xff]
  %v124 = vld [vmem:[%s1 + $0x330] sm:$0xff]
  %v125 = vld [vmem:[%s1 + $0x338] sm:$0xff]
  %v126 = vld [vmem:[%s1 + $0x340] sm:$0xff]
  %v127 = vld [vmem:[%s1 + $0x348] sm:$0xff]
  %v128 = vld [vmem:[%s1 + $0x350] sm:$0xff]
  %v129 = vld [vmem:[%s1 + $0x358] sm:$0xff]
  %v130 = vld [vmem:[%s1 + $0x360] sm:$0xff]
  %v131 = vld [vmem:[%s1 + $0x368] sm:$0xff]
  %v132 = vld [vmem:[%s1 + $0x370] sm:$0xff]
  %v133 = vld [vmem:[%s1 + $0x378] sm:$0xff]
  %v134 = vld [vmem:[%s1 + $0x380] sm:$0xff]
  %v135 = vld [vmem:[%s1 + $0x388] sm:$0xff]
  %v136 = vld [vmem:[%s1 + $0x390] sm:$0xff]
  %v137 = vld [vmem:[%s1 + $0x398] sm:$0xff]
  %v138 = vld [vmem:[%s1 + $0x3a0] sm:$0xff]
  %v139 = vld [vmem:[%s1 + $0x3a8] sm:$0xff]
  %v140 = vld [vmem:[%s1 + $0x3b0] sm:$0xff]
  %v141 = vld [vmem:[%s1 + $0x3b8] sm:$0xff]
  %v142 = vld [vmem:[%s1 + $0x3c0] sm:$0xff]
  %v143 = vld [vmem:[%s1 + $0x3c8] sm:$0xff]
  %v144 = vld [vmem:[%s1 + $0x3d0] sm:$0xff]
  %v145 = vld [vmem:[%s1 + $0x3d8] sm:$0xff]
  %v146 = vld [vmem:[%s1 + $0x3e0] sm:$0xff]
  %v147 = vld [vmem:[%s1 + $0x3e8] sm:$0xff]
  %v148 = vld [vmem:[%s1 + $0x3f0] sm:$0xff]
  %v149 = vld [vmem:[%s1 + $0x3f8] sm:$0xff]
  %v150 = vld [vmem:[%s2] sm:$0x1]
  %v152 = vlaneseq
  %v153 = vshrl.u32 %v152, 7
  %v154 = vsub.s32 0, %v153
  %v155 = vrot.slane %v150, %v154
  %v159 = vcombine.high %v20, %v20
  %v161 = vunpack.c.l.s4 1983009808
  %v162 = vunpack.c.0.s8 %v161
  %v163 = vlaneseq
  %v164 = vshrl.u32 %v163, 7
  %v165 = vsub.s32 %v162, %v164
  %v166 = vrot.slane %v20, %v165
  %v168 = vunpack.c.l.s4 1983009808
  %v169 = vunpack.c.0.s8 %v168
  %v170 = vlaneseq
  %v171 = vshrl.u32 %v170, 7
  %v172 = vsub.s32 %v169, %v171
  %v173 = vrot.slane %v159, %v172
  %v174 = vcombine.high %v166, %v166
  %v175 = vcombine.high %v173, %v173
  %v176 = vcombine.high %v21, %v21
  %v178 = vunpack.c.l.s4 1983009808
  %v179 = vunpack.c.0.s8 %v178
  %v180 = vlaneseq
  %v181 = vshrl.u32 %v180, 7
  %v182 = vsub.s32 %v179, %v181
  %v183 = vrot.slane %v21, %v182
  %v185 = vunpack.c.l.s4 1983009808
  %v186 = vunpack.c.0.s8 %v185
  %v187 = vlaneseq
  %v188 = vshrl.u32 %v187, 7
  %v189 = vsub.s32 %v186, %v188
  %v190 = vrot.slane %v176, %v189
  %v191 = vcombine.high %v183, %v183
  %v192 = vcombine.high %v190, %v190
  %201 = vmatprep.subr.mxu0 0.0
  %202 = vmatpush1.msra.mxu0 %v22
  %203 = vmatprep.subr.mxu0 0.0
  %204 = vmatpush1.msra.mxu0 %v23
  %205 = vmatprep.subr.mxu0 0.0
  %206 = vmatpush1.msra.mxu0 %v24
  %207 = vmatprep.subr.mxu0 0.0
  %208 = vmatpush1.msra.mxu0 %v25
  %209 = vmatprep.subr.mxu0 0.0
  %210 = vmatpush1.msra.mxu0 %v26
  %211 = vmatprep.subr.mxu0 0.0
  %212 = vmatpush1.msra.mxu0 %v27
  %213 = vmatprep.subr.mxu0 0.0
  %214 = vmatpush1.msra.mxu0 %v28
  %215 = vmatprep.subr.mxu0 0.0
  %216 = vmatpush1.msra.mxu0 %v29
  %217 = vmatprep.subr.mxu0 0.0
  %218 = vmatpush1.msra.mxu0 %v30
  %219 = vmatprep.subr.mxu0 0.0
  %220 = vmatpush1.msra.mxu0 %v31
  %221 = vmatprep.subr.mxu0 0.0
  %222 = vmatpush1.msra.mxu0 %v32
  %223 = vmatprep.subr.mxu0 0.0
  %224 = vmatpush1.msra.mxu0 %v33
  %225 = vmatprep.subr.mxu0 0.0
  %226 = vmatpush1.msra.mxu0 %v34
  %227 = vmatprep.subr.mxu0 0.0
  %228 = vmatpush1.msra.mxu0 %v35
  %229 = vmatprep.subr.mxu0 0.0
  %230 = vmatpush1.msra.mxu0 %v36
  %231 = vmatprep.subr.mxu0 0.0
  %232 = vmatpush1.msra.mxu0 %v37
  %233 = vmatprep.subr.mxu0 0.0
  %234 = vmatpush1.msra.mxu0 %v38
  %235 = vmatprep.subr.mxu0 0.0
  %236 = vmatpush1.msra.mxu0 %v39
  %237 = vmatprep.subr.mxu0 0.0
  %238 = vmatpush1.msra.mxu0 %v40
  %239 = vmatprep.subr.mxu0 0.0
  %240 = vmatpush1.msra.mxu0 %v41
  %241 = vmatprep.subr.mxu0 0.0
  %242 = vmatpush1.msra.mxu0 %v42
  %243 = vmatprep.subr.mxu0 0.0
  %244 = vmatpush1.msra.mxu0 %v43
  %245 = vmatprep.subr.mxu0 0.0
  %246 = vmatpush1.msra.mxu0 %v44
  %247 = vmatprep.subr.mxu0 0.0
  %248 = vmatpush1.msra.mxu0 %v45
  %249 = vmatprep.subr.mxu0 0.0
  %250 = vmatpush1.msra.mxu0 %v46
  %251 = vmatprep.subr.mxu0 0.0
  %252 = vmatpush1.msra.mxu0 %v47
  %253 = vmatprep.subr.mxu0 0.0
  %254 = vmatpush1.msra.mxu0 %v48
  %255 = vmatprep.subr.mxu0 0.0
  %256 = vmatpush1.msra.mxu0 %v49
  %257 = vmatprep.subr.mxu0 0.0
  %258 = vmatpush1.msra.mxu0 %v50
  %259 = vmatprep.subr.mxu0 0.0
  %260 = vmatpush1.msra.mxu0 %v51
  %261 = vmatprep.subr.mxu0 0.0
  %262 = vmatpush1.msra.mxu0 %v52
  %263 = vmatprep.subr.mxu0 0.0
  %264 = vmatpush1.msra.mxu0 %v53
  %265 = vmatprep.mubr.f32.mxu0 %v174
  %266 = vmatmul.mubr.f32.gmra.mrb[0].mxu0 %v166
  %v267 = vpop.f32.mrb[0].mxu0
  %v268 = vadd.f32 %v155, %v267
  %v269 = vpop.f32.mrb[0].mxu0
  %270 = vdwg.mxu0
  %271 = vmatprep.subr.mxu0 0.0
  %272 = vmatpush1.msra.mxu0 %v54
  %273 = vmatprep.subr.mxu0 0.0
  %274 = vmatpush1.msra.mxu0 %v55
  %275 = vmatprep.subr.mxu0 0.0
  %276 = vmatpush1.msra.mxu0 %v56
  %277 = vmatprep.subr.mxu0 0.0
  %278 = vmatpush1.msra.mxu0 %v57
  %279 = vmatprep.subr.mxu0 0.0
  %280 = vmatpush1.msra.mxu0 %v58
  %281 = vmatprep.subr.mxu0 0.0
  %282 = vmatpush1.msra.mxu0 %v59
  %283 = vmatprep.subr.mxu0 0.0
  %284 = vmatpush1.msra.mxu0 %v60
  %285 = vmatprep.subr.mxu0 0.0
  %286 = vmatpush1.msra.mxu0 %v61
  %287 = vmatprep.subr.mxu0 0.0
  %288 = vmatpush1.msra.mxu0 %v62
  %289 = vmatprep.subr.mxu0 0.0
  %290 = vmatpush1.msra.mxu0 %v63
  %291 = vmatprep.subr.mxu0 0.0
  %292 = vmatpush1.msra.mxu0 %v64
  %293 = vmatprep.subr.mxu0 0.0
  %294 = vmatpush1.msra.mxu0 %v65
  %295 = vmatprep.subr.mxu0 0.0
  %296 = vmatpush1.msra.mxu0 %v66
  %297 = vmatprep.subr.mxu0 0.0
  %298 = vmatpush1.msra.mxu0 %v67
  %299 = vmatprep.subr.mxu0 0.0
  %300 = vmatpush1.msra.mxu0 %v68
  %301 = vmatprep.subr.mxu0 0.0
  %302 = vmatpush1.msra.mxu0 %v69
  %303 = vmatprep.subr.mxu0 0.0
  %304 = vmatpush1.msra.mxu0 %v70
  %305 = vmatprep.subr.mxu0 0.0
  %306 = vmatpush1.msra.mxu0 %v71
  %307 = vmatprep.subr.mxu0 0.0
  %308 = vmatpush1.msra.mxu0 %v72
  %309 = vmatprep.subr.mxu0 0.0
  %310 = vmatpush1.msra.mxu0 %v73
  %311 = vmatprep.subr.mxu0 0.0
  %312 = vmatpush1.msra.mxu0 %v74
  %313 = vmatprep.subr.mxu0 0.0
  %314 = vmatpush1.msra.mxu0 %v75
  %315 = vmatprep.subr.mxu0 0.0
  %316 = vmatpush1.msra.mxu0 %v76
  %317 = vmatprep.subr.mxu0 0.0
  %318 = vmatpush1.msra.mxu0 %v77
  %319 = vmatprep.subr.mxu0 0.0
  %320 = vmatpush1.msra.mxu0 %v78
  %321 = vmatprep.subr.mxu0 0.0
  %322 = vmatpush1.msra.mxu0 %v79
  %323 = vmatprep.subr.mxu0 0.0
  %324 = vmatpush1.msra.mxu0 %v80
  %325 = vmatprep.subr.mxu0 0.0
  %326 = vmatpush1.msra.mxu0 %v81
  %327 = vmatprep.subr.mxu0 0.0
  %328 = vmatpush1.msra.mxu0 %v82
  %329 = vmatprep.subr.mxu0 0.0
  %330 = vmatpush1.msra.mxu0 %v83
  %331 = vmatprep.subr.mxu0 0.0
  %332 = vmatpush1.msra.mxu0 %v84
  %333 = vmatprep.subr.mxu0 0.0
  %334 = vmatpush1.msra.mxu0 %v85
  %335 = vmatprep.mubr.f32.mxu0 %v175
  %336 = vmatmul.mubr.f32.gmra.mrb[0].mxu0 %v173
  %v337 = vpop.f32.mrb[0].mxu0
  %v338 = vadd.f32 %v268, %v337
  %v339 = vpop.f32.mrb[0].mxu0
  %340 = vdwg.mxu0
  %341 = vmatprep.subr.mxu0 0.0
  %342 = vmatpush1.msra.mxu0 %v86
  %343 = vmatprep.subr.mxu0 0.0
  %344 = vmatpush1.msra.mxu0 %v87
  %345 = vmatprep.subr.mxu0 0.0
  %346 = vmatpush1.msra.mxu0 %v88
  %347 = vmatprep.subr.mxu0 0.0
  %348 = vmatpush1.msra.mxu0 %v89
  %349 = vmatprep.subr.mxu0 0.0
  %350 = vmatpush1.msra.mxu0 %v90
  %351 = vmatprep.subr.mxu0 0.0
  %352 = vmatpush1.msra.mxu0 %v91
  %353 = vmatprep.subr.mxu0 0.0
  %354 = vmatpush1.msra.mxu0 %v92
  %355 = vmatprep.subr.mxu0 0.0
  %356 = vmatpush1.msra.mxu0 %v93
  %357 = vmatprep.subr.mxu0 0.0
  %358 = vmatpush1.msra.mxu0 %v94
  %359 = vmatprep.subr.mxu0 0.0
  %360 = vmatpush1.msra.mxu0 %v95
  %361 = vmatprep.subr.mxu0 0.0
  %362 = vmatpush1.msra.mxu0 %v96
  %363 = vmatprep.subr.mxu0 0.0
  %364 = vmatpush1.msra.mxu0 %v97
  %365 = vmatprep.subr.mxu0 0.0
  %366 = vmatpush1.msra.mxu0 %v98
  %367 = vmatprep.subr.mxu0 0.0
  %368 = vmatpush1.msra.mxu0 %v99
  %369 = vmatprep.subr.mxu0 0.0
  %370 = vmatpush1.msra.mxu0 %v100
  %371 = vmatprep.subr.mxu0 0.0
  %372 = vmatpush1.msra.mxu0 %v101
  %373 = vmatprep.subr.mxu0 0.0
  %374 = vmatpush1.msra.mxu0 %v102
  %375 = vmatprep.subr.mxu0 0.0
  %376 = vmatpush1.msra.mxu0 %v103
  %377 = vmatprep.subr.mxu0 0.0
  %378 = vmatpush1.msra.mxu0 %v104
  %379 = vmatprep.subr.mxu0 0.0
  %380 = vmatpush1.msra.mxu0 %v105
  %381 = vmatprep.subr.mxu0 0.0
  %382 = vmatpush1.msra.mxu0 %v106
  %383 = vmatprep.subr.mxu0 0.0
  %384 = vmatpush1.msra.mxu0 %v107
  %385 = vmatprep.subr.mxu0 0.0
  %386 = vmatpush1.msra.mxu0 %v108
  %387 = vmatprep.subr.mxu0 0.0
  %388 = vmatpush1.msra.mxu0 %v109
  %389 = vmatprep.subr.mxu0 0.0
  %390 = vmatpush1.msra.mxu0 %v110
  %391 = vmatprep.subr.mxu0 0.0
  %392 = vmatpush1.msra.mxu0 %v111
  %393 = vmatprep.subr.mxu0 0.0
  %394 = vmatpush1.msra.mxu0 %v112
  %395 = vmatprep.subr.mxu0 0.0
  %396 = vmatpush1.msra.mxu0 %v113
  %397 = vmatprep.subr.mxu0 0.0
  %398 = vmatpush1.msra.mxu0 %v114
  %399 = vmatprep.subr.mxu0 0.0
  %400 = vmatpush1.msra.mxu0 %v115
  %401 = vmatprep.subr.mxu0 0.0
  %402 = vmatpush1.msra.mxu0 %v116
  %403 = vmatprep.subr.mxu0 0.0
  %404 = vmatpush1.msra.mxu0 %v117
  %405 = vmatprep.mubr.f32.mxu0 %v191
  %406 = vmatmul.mubr.f32.gmra.mrb[0].mxu0 %v183
  %v407 = vpop.f32.mrb[0].mxu0
  %v408 = vadd.f32 %v338, %v407
  %v409 = vpop.f32.mrb[0].mxu0
  %410 = vdwg.mxu0
  %411 = vmatprep.subr.mxu0 0.0
  %412 = vmatpush1.msra.mxu0 %v118
  %413 = vmatprep.subr.mxu0 0.0
  %414 = vmatpush1.msra.mxu0 %v119
  %415 = vmatprep.subr.mxu0 0.0
  %416 = vmatpush1.msra.mxu0 %v120
  %417 = vmatprep.subr.mxu0 0.0
  %418 = vmatpush1.msra.mxu0 %v121
  %419 = vmatprep.subr.mxu0 0.0
  %420 = vmatpush1.msra.mxu0 %v122
  %421 = vmatprep.subr.mxu0 0.0
  %422 = vmatpush1.msra.mxu0 %v123
  %423 = vmatprep.subr.mxu0 0.0
  %424 = vmatpush1.msra.mxu0 %v124
  %425 = vmatprep.subr.mxu0 0.0
  %426 = vmatpush1.msra.mxu0 %v125
  %427 = vmatprep.subr.mxu0 0.0
  %428 = vmatpush1.msra.mxu0 %v126
  %429 = vmatprep.subr.mxu0 0.0
  %430 = vmatpush1.msra.mxu0 %v127
  %431 = vmatprep.subr.mxu0 0.0
  %432 = vmatpush1.msra.mxu0 %v128
  %433 = vmatprep.subr.mxu0 0.0
  %434 = vmatpush1.msra.mxu0 %v129
  %435 = vmatprep.subr.mxu0 0.0
  %436 = vmatpush1.msra.mxu0 %v130
  %437 = vmatprep.subr.mxu0 0.0
  %438 = vmatpush1.msra.mxu0 %v131
  %439 = vmatprep.subr.mxu0 0.0
  %440 = vmatpush1.msra.mxu0 %v132
  %441 = vmatprep.subr.mxu0 0.0
  %442 = vmatpush1.msra.mxu0 %v133
  %443 = vmatprep.subr.mxu0 0.0
  %444 = vmatpush1.msra.mxu0 %v134
  %445 = vmatprep.subr.mxu0 0.0
  %446 = vmatpush1.msra.mxu0 %v135
  %447 = vmatprep.subr.mxu0 0.0
  %448 = vmatpush1.msra.mxu0 %v136
  %449 = vmatprep.subr.mxu0 0.0
  %450 = vmatpush1.msra.mxu0 %v137
  %451 = vmatprep.subr.mxu0 0.0
  %452 = vmatpush1.msra.mxu0 %v138
  %453 = vmatprep.subr.mxu0 0.0
  %454 = vmatpush1.msra.mxu0 %v139
  %455 = vmatprep.subr.mxu0 0.0
  %456 = vmatpush1.msra.mxu0 %v140
  %457 = vmatprep.subr.mxu0 0.0
  %458 = vmatpush1.msra.mxu0 %v141
  %459 = vmatprep.subr.mxu0 0.0
  %460 = vmatpush1.msra.mxu0 %v142
  %461 = vmatprep.subr.mxu0 0.0
  %462 = vmatpush1.msra.mxu0 %v143
  %463 = vmatprep.subr.mxu0 0.0
  %464 = vmatpush1.msra.mxu0 %v144
  %465 = vmatprep.subr.mxu0 0.0
  %466 = vmatpush1.msra.mxu0 %v145
  %467 = vmatprep.subr.mxu0 0.0
  %468 = vmatpush1.msra.mxu0 %v146
  %469 = vmatprep.subr.mxu0 0.0
  %470 = vmatpush1.msra.mxu0 %v147
  %471 = vmatprep.subr.mxu0 0.0
  %472 = vmatpush1.msra.mxu0 %v148
  %473 = vmatprep.subr.mxu0 0.0
  %474 = vmatpush1.msra.mxu0 %v149
  %475 = vmatprep.mubr.f32.mxu0 %v192
  %476 = vmatmul.mubr.f32.gmra.mrb[0].mxu0 %v190
  %v477 = vpop.f32.mrb[0].mxu0
  %v478 = vadd.f32 %v408, %v477
  %v479 = vpop.f32.mrb[0].mxu0
  %480 = vdwg.mxu0
  %v481 = vld [vmem:[%s3] sm:$0xff]
  %v482 = vld [vmem:[%s3 + $0x8] sm:$0xff]
  %v483 = vld [vmem:[%s3 + $0x10] sm:$0xff]
  %v484 = vld [vmem:[%s3 + $0x18] sm:$0xff]
  %v485 = vld [vmem:[%s3 + $0x20] sm:$0xff]
  %v486 = vld [vmem:[%s3 + $0x28] sm:$0xff]
  %v487 = vld [vmem:[%s3 + $0x30] sm:$0xff]
  %v488 = vld [vmem:[%s3 + $0x38] sm:$0xff]
  %v489 = vld [vmem:[%s3 + $0x40] sm:$0xff]
  %v490 = vld [vmem:[%s3 + $0x48] sm:$0xff]
  %v491 = vld [vmem:[%s3 + $0x50] sm:$0xff]
  %v492 = vld [vmem:[%s3 + $0x58] sm:$0xff]
  %v493 = vld [vmem:[%s3 + $0x60] sm:$0xff]
  %v494 = vld [vmem:[%s3 + $0x68] sm:$0xff]
  %v495 = vld [vmem:[%s3 + $0x70] sm:$0xff]
  %v496 = vld [vmem:[%s3 + $0x78] sm:$0xff]
  %v497 = vld [vmem:[%s3 + $0x80] sm:$0xff]
  %v498 = vld [vmem:[%s3 + $0x88] sm:$0xff]
  %v499 = vld [vmem:[%s3 + $0x90] sm:$0xff]
  %v500 = vld [vmem:[%s3 + $0x98] sm:$0xff]
  %v501 = vld [vmem:[%s3 + $0xa0] sm:$0xff]
  %v502 = vld [vmem:[%s3 + $0xa8] sm:$0xff]
  %v503 = vld [vmem:[%s3 + $0xb0] sm:$0xff]
  %v504 = vld [vmem:[%s3 + $0xb8] sm:$0xff]
  %v505 = vld [vmem:[%s3 + $0xc0] sm:$0xff]
  %v506 = vld [vmem:[%s3 + $0xc8] sm:$0xff]
  %v507 = vld [vmem:[%s3 + $0xd0] sm:$0xff]
  %v508 = vld [vmem:[%s3 + $0xd8] sm:$0xff]
  %v509 = vld [vmem:[%s3 + $0xe0] sm:$0xff]
  %v510 = vld [vmem:[%s3 + $0xe8] sm:$0xff]
  %v511 = vld [vmem:[%s3 + $0xf0] sm:$0xff]
  %v512 = vld [vmem:[%s3 + $0xf8] sm:$0xff]
  %v513 = vld [vmem:[%s4] sm:$0xff]
  %v515 = vlaneseq
  %v516 = vshrl.u32 %v515, 7
  %v517 = vsub.s32 0, %v516
  %v518 = vrot.slane %v513, %v517
  %v519 = vlaneseq
  %v520 = vshrl.u32 %v519, 7
  %v521 = vsub.s32 1, %v520
  %v522 = vrot.slane %v513, %v521
  %v523 = vlaneseq
  %v524 = vshrl.u32 %v523, 7
  %v525 = vsub.s32 2, %v524
  %v526 = vrot.slane %v513, %v525
  %v527 = vlaneseq
  %v528 = vshrl.u32 %v527, 7
  %v529 = vsub.s32 3, %v528
  %v530 = vrot.slane %v513, %v529
  %v531 = vlaneseq
  %v532 = vshrl.u32 %v531, 7
  %v533 = vsub.s32 4, %v532
  %v534 = vrot.slane %v513, %v533
  %v535 = vlaneseq
  %v536 = vshrl.u32 %v535, 7
  %v537 = vsub.s32 5, %v536
  %v538 = vrot.slane %v513, %v537
  %v539 = vlaneseq
  %v540 = vshrl.u32 %v539, 7
  %v541 = vsub.s32 6, %v540
  %v542 = vrot.slane %v513, %v541
  %v543 = vlaneseq
  %v544 = vshrl.u32 %v543, 7
  %v545 = vsub.s32 7, %v544
  %v546 = vrot.slane %v513, %v545
  %vm555 = vcmask 261120
  %v557 = vsel %vm555, %v478, 0
  %559 = vmatprep.subr.mxu0 %v482
  %560 = vmatpush1.msra.mxu0 %v481
  %561 = vmatprep.subr.mxu0 %v490
  %562 = vmatpush1.msra.mxu0 %v489
  %563 = vmatprep.subr.mxu0 %v498
  %564 = vmatpush1.msra.mxu0 %v497
  %565 = vmatprep.subr.mxu0 %v506
  %566 = vmatpush1.msra.mxu0 %v505
  %567 = vmatprep.subr.mxu0 0.0
  %568 = vmatpush1.msra.mxu0 0.0
  %569 = vmatprep.subr.mxu0 0.0
  %570 = vmatpush1.msra.mxu0 0.0
  %571 = vmatprep.subr.mxu0 0.0
  %572 = vmatpush1.msra.mxu0 0.0
  %573 = vmatprep.subr.mxu0 0.0
  %574 = vmatpush1.msra.mxu0 0.0
  %575 = vmatprep.subr.mxu0 0.0
  %576 = vmatpush1.msra.mxu0 0.0
  %577 = vmatprep.subr.mxu0 0.0
  %578 = vmatpush1.msra.mxu0 0.0
  %579 = vmatprep.subr.mxu0 0.0
  %580 = vmatpush1.msra.mxu0 0.0
  %581 = vmatprep.subr.mxu0 0.0
  %582 = vmatpush1.msra.mxu0 0.0
  %583 = vmatprep.subr.mxu0 0.0
  %584 = vmatpush1.msra.mxu0 0.0
  %585 = vmatprep.subr.mxu0 0.0
  %586 = vmatpush1.msra.mxu0 0.0
  %587 = vmatprep.subr.mxu0 0.0
  %588 = vmatpush1.msra.mxu0 0.0
  %589 = vmatprep.subr.mxu0 0.0
  %590 = vmatpush1.msra.mxu0 0.0
  %591 = vmatprep.subr.mxu0 0.0
  %592 = vmatpush1.msra.mxu0 0.0
  %593 = vmatprep.subr.mxu0 0.0
  %594 = vmatpush1.msra.mxu0 0.0
  %595 = vmatprep.subr.mxu0 0.0
  %596 = vmatpush1.msra.mxu0 0.0
  %597 = vmatprep.subr.mxu0 0.0
  %598 = vmatpush1.msra.mxu0 0.0
  %599 = vmatprep.subr.mxu0 0.0
  %600 = vmatpush1.msra.mxu0 0.0
  %601 = vmatprep.subr.mxu0 0.0
  %602 = vmatpush1.msra.mxu0 0.0
  %603 = vmatprep.subr.mxu0 0.0
  %604 = vmatpush1.msra.mxu0 0.0
  %605 = vmatprep.subr.mxu0 0.0
  %606 = vmatpush1.msra.mxu0 0.0
  %607 = vmatprep.subr.mxu0 0.0
  %608 = vmatpush1.msra.mxu0 0.0
  %609 = vmatprep.subr.mxu0 0.0
  %610 = vmatpush1.msra.mxu0 0.0
  %611 = vmatprep.subr.mxu0 0.0
  %612 = vmatpush1.msra.mxu0 0.0
  %613 = vmatprep.subr.mxu0 0.0
  %614 = vmatpush1.msra.mxu0 0.0
  %615 = vmatprep.subr.mxu0 0.0
  %616 = vmatpush1.msra.mxu0 0.0
  %617 = vmatprep.subr.mxu0 0.0
  %618 = vmatpush1.msra.mxu0 0.0
  %619 = vmatprep.subr.mxu0 0.0
  %620 = vmatpush1.msra.mxu0 0.0
  %621 = vmatprep.subr.mxu0 0.0
  %622 = vmatpush1.msra.mxu0 0.0
  %623 = vmatprep.mubr.f32.mxu0 0.0
  %624 = vmatmul.mubr.f32.gmra.mrb[0].mxu0 %v557
  %v625 = vpop.f32.mrb[0].mxu0
  %v626 = vadd.f32 %v518, %v625
  %v627 = vpop.f32.mrb[0].mxu0
  %v628 = vadd.f32 %v522, %v627
  %629 = vdwg.mxu0
  %630 = vmatprep.subr.mxu0 %v484
  %631 = vmatpush1.msra.mxu0 %v483
  %632 = vmatprep.subr.mxu0 %v492
  %633 = vmatpush1.msra.mxu0 %v491
  %634 = vmatprep.subr.mxu0 %v500
  %635 = vmatpush1.msra.mxu0 %v499
  %636 = vmatprep.subr.mxu0 %v508
  %637 = vmatpush1.msra.mxu0 %v507
  %638 = vmatprep.subr.mxu0 0.0
  %639 = vmatpush1.msra.mxu0 0.0
  %640 = vmatprep.subr.mxu0 0.0
  %641 = vmatpush1.msra.mxu0 0.0
  %642 = vmatprep.subr.mxu0 0.0
  %643 = vmatpush1.msra.mxu0 0.0
  %644 = vmatprep.subr.mxu0 0.0
  %645 = vmatpush1.msra.mxu0 0.0
  %646 = vmatprep.subr.mxu0 0.0
  %647 = vmatpush1.msra.mxu0 0.0
  %648 = vmatprep.subr.mxu0 0.0
  %649 = vmatpush1.msra.mxu0 0.0
  %650 = vmatprep.subr.mxu0 0.0
  %651 = vmatpush1.msra.mxu0 0.0
  %652 = vmatprep.subr.mxu0 0.0
  %653 = vmatpush1.msra.mxu0 0.0
  %654 = vmatprep.subr.mxu0 0.0
  %655 = vmatpush1.msra.mxu0 0.0
  %656 = vmatprep.subr.mxu0 0.0
  %657 = vmatpush1.msra.mxu0 0.0
  %658 = vmatprep.subr.mxu0 0.0
  %659 = vmatpush1.msra.mxu0 0.0
  %660 = vmatprep.subr.mxu0 0.0
  %661 = vmatpush1.msra.mxu0 0.0
  %662 = vmatprep.subr.mxu0 0.0
  %663 = vmatpush1.msra.mxu0 0.0
  %664 = vmatprep.subr.mxu0 0.0
  %665 = vmatpush1.msra.mxu0 0.0
  %666 = vmatprep.subr.mxu0 0.0
  %667 = vmatpush1.msra.mxu0 0.0
  %668 = vmatprep.subr.mxu0 0.0
  %669 = vmatpush1.msra.mxu0 0.0
  %670 = vmatprep.subr.mxu0 0.0
  %671 = vmatpush1.msra.mxu0 0.0
  %672 = vmatprep.subr.mxu0 0.0
  %673 = vmatpush1.msra.mxu0 0.0
  %674 = vmatprep.subr.mxu0 0.0
  %675 = vmatpush1.msra.mxu0 0.0
  %676 = vmatprep.subr.mxu0 0.0
  %677 = vmatpush1.msra.mxu0 0.0
  %678 = vmatprep.subr.mxu0 0.0
  %679 = vmatpush1.msra.mxu0 0.0
  %680 = vmatprep.subr.mxu0 0.0
  %681 = vmatpush1.msra.mxu0 0.0
  %682 = vmatprep.subr.mxu0 0.0
  %683 = vmatpush1.msra.mxu0 0.0
  %684 = vmatprep.subr.mxu0 0.0
  %685 = vmatpush1.msra.mxu0 0.0
  %686 = vmatprep.subr.mxu0 0.0
  %687 = vmatpush1.msra.mxu0 0.0
  %688 = vmatprep.subr.mxu0 0.0
  %689 = vmatpush1.msra.mxu0 0.0
  %690 = vmatprep.subr.mxu0 0.0
  %691 = vmatpush1.msra.mxu0 0.0
  %692 = vmatprep.subr.mxu0 0.0
  %693 = vmatpush1.msra.mxu0 0.0
  %694 = vmatprep.mubr.f32.mxu0 0.0
  %695 = vmatmul.mubr.f32.gmra.mrb[0].mxu0 %v557
  %v696 = vpop.f32.mrb[0].mxu0
  %v697 = vadd.f32 %v526, %v696
  %v698 = vpop.f32.mrb[0].mxu0
  %v699 = vadd.f32 %v530, %v698
  %700 = vdwg.mxu0
  %701 = vmatprep.subr.mxu0 %v486
  %702 = vmatpush1.msra.mxu0 %v485
  %703 = vmatprep.subr.mxu0 %v494
  %704 = vmatpush1.msra.mxu0 %v493
  %705 = vmatprep.subr.mxu0 %v502
  %706 = vmatpush1.msra.mxu0 %v501
  %707 = vmatprep.subr.mxu0 %v510
  %708 = vmatpush1.msra.mxu0 %v509
  %709 = vmatprep.subr.mxu0 0.0
  %710 = vmatpush1.msra.mxu0 0.0
  %711 = vmatprep.subr.mxu0 0.0
  %712 = vmatpush1.msra.mxu0 0.0
  %713 = vmatprep.subr.mxu0 0.0
  %714 = vmatpush1.msra.mxu0 0.0
  %715 = vmatprep.subr.mxu0 0.0
  %716 = vmatpush1.msra.mxu0 0.0
  %717 = vmatprep.subr.mxu0 0.0
  %718 = vmatpush1.msra.mxu0 0.0
  %719 = vmatprep.subr.mxu0 0.0
  %720 = vmatpush1.msra.mxu0 0.0
  %721 = vmatprep.subr.mxu0 0.0
  %722 = vmatpush1.msra.mxu0 0.0
  %723 = vmatprep.subr.mxu0 0.0
  %724 = vmatpush1.msra.mxu0 0.0
  %725 = vmatprep.subr.mxu0 0.0
  %726 = vmatpush1.msra.mxu0 0.0
  %727 = vmatprep.subr.mxu0 0.0
  %728 = vmatpush1.msra.mxu0 0.0
  %729 = vmatprep.subr.mxu0 0.0
  %730 = vmatpush1.msra.mxu0 0.0
  %731 = vmatprep.subr.mxu0 0.0
  %732 = vmatpush1.msra.mxu0 0.0
  %733 = vmatprep.subr.mxu0 0.0
  %734 = vmatpush1.msra.mxu0 0.0
  %735 = vmatprep.subr.mxu0 0.0
  %736 = vmatpush1.msra.mxu0 0.0
  %737 = vmatprep.subr.mxu0 0.0
  %738 = vmatpush1.msra.mxu0 0.0
  %739 = vmatprep.subr.mxu0 0.0
  %740 = vmatpush1.msra.mxu0 0.0
  %741 = vmatprep.subr.mxu0 0.0
  %742 = vmatpush1.msra.mxu0 0.0
  %743 = vmatprep.subr.mxu0 0.0
  %744 = vmatpush1.msra.mxu0 0.0
  %745 = vmatprep.subr.mxu0 0.0
  %746 = vmatpush1.msra.mxu0 0.0
  %747 = vmatprep.subr.mxu0 0.0
  %748 = vmatpush1.msra.mxu0 0.0
  %749 = vmatprep.subr.mxu0 0.0
  %750 = vmatpush1.msra.mxu0 0.0
  %751 = vmatprep.subr.mxu0 0.0
  %752 = vmatpush1.msra.mxu0 0.0
  %753 = vmatprep.subr.mxu0 0.0
  %754 = vmatpush1.msra.mxu0 0.0
  %755 = vmatprep.subr.mxu0 0.0
  %756 = vmatpush1.msra.mxu0 0.0
  %757 = vmatprep.subr.mxu0 0.0
  %758 = vmatpush1.msra.mxu0 0.0
  %759 = vmatprep.subr.mxu0 0.0
  %760 = vmatpush1.msra.mxu0 0.0
  %761 = vmatprep.subr.mxu0 0.0
  %762 = vmatpush1.msra.mxu0 0.0
  %763 = vmatprep.subr.mxu0 0.0
  %764 = vmatpush1.msra.mxu0 0.0
  %765 = vmatprep.mubr.f32.mxu0 0.0
  %766 = vmatmul.mubr.f32.gmra.mrb[0].mxu0 %v557
  %v767 = vpop.f32.mrb[0].mxu0
  %v768 = vadd.f32 %v534, %v767
  %v769 = vpop.f32.mrb[0].mxu0
  %v770 = vadd.f32 %v538, %v769
  %771 = vdwg.mxu0
  %772 = vmatprep.subr.mxu0 %v488
  %773 = vmatpush1.msra.mxu0 %v487
  %774 = vmatprep.subr.mxu0 %v496
  %775 = vmatpush1.msra.mxu0 %v495
  %776 = vmatprep.subr.mxu0 %v504
  %777 = vmatpush1.msra.mxu0 %v503
  %778 = vmatprep.subr.mxu0 %v512
  %779 = vmatpush1.msra.mxu0 %v511
  %780 = vmatprep.subr.mxu0 0.0
  %781 = vmatpush1.msra.mxu0 0.0
  %782 = vmatprep.subr.mxu0 0.0
  %783 = vmatpush1.msra.mxu0 0.0
  %784 = vmatprep.subr.mxu0 0.0
  %785 = vmatpush1.msra.mxu0 0.0
  %786 = vmatprep.subr.mxu0 0.0
  %787 = vmatpush1.msra.mxu0 0.0
  %788 = vmatprep.subr.mxu0 0.0
  %789 = vmatpush1.msra.mxu0 0.0
  %790 = vmatprep.subr.mxu0 0.0
  %791 = vmatpush1.msra.mxu0 0.0
  %792 = vmatprep.subr.mxu0 0.0
  %793 = vmatpush1.msra.mxu0 0.0
  %794 = vmatprep.subr.mxu0 0.0
  %795 = vmatpush1.msra.mxu0 0.0
  %796 = vmatprep.subr.mxu0 0.0
  %797 = vmatpush1.msra.mxu0 0.0
  %798 = vmatprep.subr.mxu0 0.0
  %799 = vmatpush1.msra.mxu0 0.0
  %800 = vmatprep.subr.mxu0 0.0
  %801 = vmatpush1.msra.mxu0 0.0
  %802 = vmatprep.subr.mxu0 0.0
  %803 = vmatpush1.msra.mxu0 0.0
  %804 = vmatprep.subr.mxu0 0.0
  %805 = vmatpush1.msra.mxu0 0.0
  %806 = vmatprep.subr.mxu0 0.0
  %807 = vmatpush1.msra.mxu0 0.0
  %808 = vmatprep.subr.mxu0 0.0
  %809 = vmatpush1.msra.mxu0 0.0
  %810 = vmatprep.subr.mxu0 0.0
  %811 = vmatpush1.msra.mxu0 0.0
  %812 = vmatprep.subr.mxu0 0.0
  %813 = vmatpush1.msra.mxu0 0.0
  %814 = vmatprep.subr.mxu0 0.0
  %815 = vmatpush1.msra.mxu0 0.0
  %816 = vmatprep.subr.mxu0 0.0
  %817 = vmatpush1.msra.mxu0 0.0
  %818 = vmatprep.subr.mxu0 0.0
  %819 = vmatpush1.msra.mxu0 0.0
  %820 = vmatprep.subr.mxu0 0.0
  %821 = vmatpush1.msra.mxu0 0.0
  %822 = vmatprep.subr.mxu0 0.0
  %823 = vmatpush1.msra.mxu0 0.0
  %824 = vmatprep.subr.mxu0 0.0
  %825 = vmatpush1.msra.mxu0 0.0
  %826 = vmatprep.subr.mxu0 0.0
  %827 = vmatpush1.msra.mxu0 0.0
  %828 = vmatprep.subr.mxu0 0.0
  %829 = vmatpush1.msra.mxu0 0.0
  %830 = vmatprep.subr.mxu0 0.0
  %831 = vmatpush1.msra.mxu0 0.0
  %832 = vmatprep.subr.mxu0 0.0
  %833 = vmatpush1.msra.mxu0 0.0
  %834 = vmatprep.subr.mxu0 0.0
  %835 = vmatpush1.msra.mxu0 0.0
  %836 = vmatprep.mubr.f32.mxu0 0.0
  %837 = vmatmul.mubr.f32.gmra.mrb[0].mxu0 %v557
  %v838 = vpop.f32.mrb[0].mxu0
  %v839 = vadd.f32 %v542, %v838
  %v840 = vpop.f32.mrb[0].mxu0
  %v841 = vadd.f32 %v546, %v840
  %842 = vdwg.mxu0
  %v851 = vcombine.low %v626, %v628
  %v852 = vcombine.low %v697, %v699
  %v854 = vunpack.c.l.s4 1983009808
  %v855 = vunpack.c.0.s8 %v854
  %v856 = vlaneseq
  %v857 = vshrl.u32 %v856, 7
  %v858 = vsub.s32 %v855, %v857
  %v859 = vrot.slane %v851, %v858
  %v861 = vunpack.c.l.s4 1983009808
  %v862 = vunpack.c.0.s8 %v861
  %v863 = vlaneseq
  %v864 = vshrl.u32 %v863, 7
  %v865 = vsub.s32 %v862, %v864
  %v866 = vrot.slane %v852, %v865
  %v867 = vcombine.low %v859, %v866
  %v868 = vcombine.low %v768, %v770
  %v869 = vcombine.low %v839, %v841
  %v871 = vunpack.c.l.s4 1983009808
  %v872 = vunpack.c.0.s8 %v871
  %v873 = vlaneseq
  %v874 = vshrl.u32 %v873, 7
  %v875 = vsub.s32 %v872, %v874
  %v876 = vrot.slane %v868, %v875
  %v878 = vunpack.c.l.s4 1983009808
  %v879 = vunpack.c.0.s8 %v878
  %v880 = vlaneseq
  %v881 = vshrl.u32 %v880, 7
  %v882 = vsub.s32 %v879, %v881
  %v883 = vrot.slane %v869, %v882
  %v884 = vcombine.low %v876, %v883
  %887 = vst [vmem:[%s5] sm:$0xff] %v867
  %888 = vst [vmem:[%s5 + $0x8] sm:$0xff] %v884
  // Predicated region
  $region22: #{ae_forward.10} parent=0 // pred_check
    _
  $region23: #{ae_forward.10} parent=0 // pred_check_branch
    %890 = sbr.rel (0) target = $region25
  $region24: #{ae_forward.10} parent=0 // pred_region
    _
  $region25: #{ae_forward.10} parent=0 // pred_fallthru
    _
  // Predicated region
  $region26: #{ae_forward.10} parent=0 // pred_check
    _
  $region27: #{ae_forward.10} parent=0 // pred_check_branch
    %892 = sbr.rel (0) target = $region29
  $region28: #{ae_forward.10} parent=0 // pred_region
    _
  $region29: #{ae_forward.10} parent=0 // pred_fallthru
    _

// kernel: ae_forward.11
$region0: #{ae_forward.11}
  #allocation0 [shape = 'u32[]', space=smem, size = 0x4, offset = 0x4, fixed_abs, tag = 'smem constant byte address 0x4 - core index']
  #allocation1 [shape = 'u32[144,128]{1,0:T(1,128)}', space=vmem, size = 0x12000, scoped, tag = 'internal scratch']
  %s0 = inlined_call_operand.vmem [shape: bf16[32,576], index: 0, kind: input, shape index: {}]
  %s1 = inlined_call_operand.vmem [shape: bf16[576,128], index: 1, kind: input, shape index: {}]
  %s2 = inlined_call_operand.vmem [shape: f32[1,128], index: 2, kind: input, shape index: {}]
  %s3 = inlined_call_operand.vmem [shape: f32[1,32], index: 3, kind: input, shape index: {}]
  %s4 = inlined_call_operand.vmem [shape: f32[1,32], index: 4, kind: input, shape index: {}]
  %s5 = inlined_call_operand.vmem [shape: bf16[32,128], index: 5, kind: output, shape index: {}]
  %s6 = sld [smem:[#allocation0]]
  $region30: #{ae_forward.11} parent=0
    _
  %s8 = ssub.s32 1, %s6
  %s9 = scalar_select 0, %s8, %s6
  // Predicated region
  $region2: #{ae_forward.11} parent=0 // pred_check
    _
  $region3: #{ae_forward.11} parent=0 // pred_check_branch
    %11 = sbr.rel (0) target = $region5
  $region4: #{ae_forward.11} parent=0 // pred_region
    _
  $region5: #{ae_forward.11} parent=0 // pred_fallthru
    _
  // Predicated region
  $region6: #{ae_forward.11} parent=0 // pred_check
    _
  $region7: #{ae_forward.11} parent=0 // pred_check_branch
    %13 = sbr.rel (0) target = $region9
  $region8: #{ae_forward.11} parent=0 // pred_region
    _
  $region9: #{ae_forward.11} parent=0 // pred_fallthru
    _
  // Predicated region
  $region10: #{ae_forward.11} parent=0 // pred_check
    _
  $region11: #{ae_forward.11} parent=0 // pred_check_branch
    %15 = sbr.rel (0) target = $region13
  $region12: #{ae_forward.11} parent=0 // pred_region
    _
  $region13: #{ae_forward.11} parent=0 // pred_fallthru
    _
  // Predicated region
  $region14: #{ae_forward.11} parent=0 // pred_check
    _
  $region15: #{ae_forward.11} parent=0 // pred_check_branch
    %17 = sbr.rel (0) target = $region17
  $region16: #{ae_forward.11} parent=0 // pred_region
    _
  $region17: #{ae_forward.11} parent=0 // pred_fallthru
    _
  // Predicated region
  $region18: #{ae_forward.11} parent=0 // pred_check
    _
  $region19: #{ae_forward.11} parent=0 // pred_check_branch
    %19 = sbr.rel (0) target = $region21
  $region20: #{ae_forward.11} parent=0 // pred_region
    _
  $region21: #{ae_forward.11} parent=0 // pred_fallthru
    _
  %v21 = vld [vmem:[%s0] sm:$0xff]
  %v22 = vld [vmem:[%s0 + $0x8] sm:$0xff]
  %v23 = vld [vmem:[%s0 + $0x10] sm:$0xf]
  %v24 = vld [vmem:[%s0 + $0x14] sm:$0xff]
  %v25 = vld [vmem:[%s0 + $0x1c] sm:$0xff]
  %v26 = vld [vmem:[%s0 + $0x24] sm:$0xf]
  %v27 = vld [vmem:[%s0 + $0x28] sm:$0xff]
  %v28 = vld [vmem:[%s0 + $0x30] sm:$0xff]
  %v29 = vld [vmem:[%s0 + $0x38] sm:$0xf]
  %v30 = vld [vmem:[%s0 + $0x3c] sm:$0xff]
  %v31 = vld [vmem:[%s0 + $0x44] sm:$0xff]
  %v32 = vld [vmem:[%s0 + $0x4c] sm:$0xf]
  %v33 = vld [vmem:[%s1] sm:$0xf]
  %v34 = vld [vmem:[%s1 + $0x4] sm:$0xf]
  %v35 = vld [vmem:[%s1 + $0x8] sm:$0xf]
  %v36 = vld [vmem:[%s1 + $0xc] sm:$0xf]
  %v37 = vld [vmem:[%s1 + $0x10] sm:$0xf]
  %v38 = vld [vmem:[%s1 + $0x14] sm:$0xf]
  %v39 = vld [vmem:[%s1 + $0x18] sm:$0xf]
  %v40 = vld [vmem:[%s1 + $0x1c] sm:$0xf]
  %v41 = vld [vmem:[%s1 + $0x20] sm:$0xf]
  %v42 = vld [vmem:[%s1 + $0x24] sm:$0xf]
  %v43 = vld [vmem:[%s1 + $0x28] sm:$0xf]
  %v44 = vld [vmem:[%s1 + $0x2c] sm:$0xf]
  %v45 = vld [vmem:[%s1 + $0x30] sm:$0xf]
  %v46 = vld [vmem:[%s1 + $0x34] sm:$0xf]
  %v47 = vld [vmem:[%s1 + $0x38] sm:$0xf]
  %v48 = vld [vmem:[%s1 + $0x3c] sm:$0xf]
  %v49 = vld [vmem:[%s1 + $0x40] sm:$0xf]
  %v50 = vld [vmem:[%s1 + $0x44] sm:$0xf]
  %v51 = vld [vmem:[%s1 + $0x48] sm:$0xf]
  %v52 = vld [vmem:[%s1 + $0x4c] sm:$0xf]
  %v53 = vld [vmem:[%s1 + $0x50] sm:$0xf]
  %v54 = vld [vmem:[%s1 + $0x54] sm:$0xf]
  %v55 = vld [vmem:[%s1 + $0x58] sm:$0xf]
  %v56 = vld [vmem:[%s1 + $0x5c] sm:$0xf]
  %v57 = vld [vmem:[%s1 + $0x60] sm:$0xf]
  %v58 = vld [vmem:[%s1 + $0x64] sm:$0xf]
  %v59 = vld [vmem:[%s1 + $0x68] sm:$0xf]
  %v60 = vld [vmem:[%s1 + $0x6c] sm:$0xf]
  %v61 = vld [vmem:[%s1 + $0x70] sm:$0xf]
  %v62 = vld [vmem:[%s1 + $0x74] sm:$0xf]
  %v63 = vld [vmem:[%s1 + $0x78] sm:$0xf]
  %v64 = vld [vmem:[%s1 + $0x7c] sm:$0xf]
  %v65 = vld [vmem:[%s1 + $0x80] sm:$0xf]
  %v66 = vld [vmem:[%s1 + $0x84] sm:$0xf]
  %v67 = vld [vmem:[%s1 + $0x88] sm:$0xf]
  %v68 = vld [vmem:[%s1 + $0x8c] sm:$0xf]
  %v69 = vld [vmem:[%s1 + $0x90] sm:$0xf]
  %v70 = vld [vmem:[%s1 + $0x94] sm:$0xf]
  %v71 = vld [vmem:[%s1 + $0x98] sm:$0xf]
  %v72 = vld [vmem:[%s1 + $0x9c] sm:$0xf]
  %v73 = vld [vmem:[%s1 + $0xa0] sm:$0xf]
  %v74 = vld [vmem:[%s1 + $0xa4] sm:$0xf]
  %v75 = vld [vmem:[%s1 + $0xa8] sm:$0xf]
  %v76 = vld [vmem:[%s1 + $0xac] sm:$0xf]
  %v77 = vld [vmem:[%s1 + $0xb0] sm:$0xf]
  %v78 = vld [vmem:[%s1 + $0xb4] sm:$0xf]
  %v79 = vld [vmem:[%s1 + $0xb8] sm:$0xf]
  %v80 = vld [vmem:[%s1 + $0xbc] sm:$0xf]
  %v81 = vld [vmem:[%s1 + $0xc0] sm:$0xf]
  %v82 = vld [vmem:[%s1 + $0xc4] sm:$0xf]
  %v83 = vld [vmem:[%s1 + $0xc8] sm:$0xf]
  %v84 = vld [vmem:[%s1 + $0xcc] sm:$0xf]
  %v85 = vld [vmem:[%s1 + $0xd0] sm:$0xf]
  %v86 = vld [vmem:[%s1 + $0xd4] sm:$0xf]
  %v87 = vld [vmem:[%s1 + $0xd8] sm:$0xf]
  %v88 = vld [vmem:[%s1 + $0xdc] sm:$0xf]
  %v89 = vld [vmem:[%s1 + $0xe0] sm:$0xf]
  %v90 = vld [vmem:[%s1 + $0xe4] sm:$0xf]
  %v91 = vld [vmem:[%s1 + $0xe8] sm:$0xf]
  %v92 = vld [vmem:[%s1 + $0xec] sm:$0xf]
  %v93 = vld [vmem:[%s1 + $0xf0] sm:$0xf]
  %v94 = vld [vmem:[%s1 + $0xf4] sm:$0xf]
  %v95 = vld [vmem:[%s1 + $0xf8] sm:$0xf]
  %v96 = vld [vmem:[%s1 + $0xfc] sm:$0xf]
  %v97 = vld [vmem:[%s1 + $0x100] sm:$0xf]
  %v98 = vld [vmem:[%s1 + $0x104] sm:$0xf]
  %v99 = vld [vmem:[%s1 + $0x108] sm:$0xf]
  %v100 = vld [vmem:[%s1 + $0x10c] sm:$0xf]
  %v101 = vld [vmem:[%s1 + $0x110] sm:$0xf]
  %v102 = vld [vmem:[%s1 + $0x114] sm:$0xf]
  %v103 = vld [vmem:[%s1 + $0x118] sm:$0xf]
  %v104 = vld [vmem:[%s1 + $0x11c] sm:$0xf]
  %v105 = vld [vmem:[%s2] sm:$0x1]
  %v107 = vlaneseq
  %v108 = vshrl.u32 %v107, 7
  %v109 = vsub.s32 0, %v108
  %v110 = vrot.slane %v105, %v109
  %v124 = vunpack.c.l.b16 %v21
  %v125 = vunpack.c.h.b16 %v21
  %v126 = vunpack.c.l.b16 %v22
  %v127 = vunpack.c.h.b16 %v22
  %v128 = vunpack.c.l.b16 %v23
  %v129 = vunpack.c.l.b16 %v24
  %v130 = vunpack.c.h.b16 %v24
  %v131 = vunpack.c.l.b16 %v25
  %v132 = vunpack.c.h.b16 %v25
  %v133 = vunpack.c.l.b16 %v26
  %v134 = vunpack.c.l.b16 %v27
  %v135 = vunpack.c.h.b16 %v27
  %v136 = vunpack.c.l.b16 %v28
  %v137 = vunpack.c.h.b16 %v28
  %v138 = vunpack.c.l.b16 %v29
  %v139 = vunpack.c.l.b16 %v30
  %v140 = vunpack.c.h.b16 %v30
  %v141 = vunpack.c.l.b16 %v31
  %v142 = vunpack.c.h.b16 %v31
  %v143 = vunpack.c.l.b16 %v32
  %v144 = vpack.c.b16 %v129, %v124
  %v145 = vpack.c.b16 %v130, %v125
  %v146 = vpack.c.b16 %v131, %v126
  %v147 = vpack.c.b16 %v132, %v127
  %v148 = vpack.c.b16 %v133, %v128
  %v149 = vpack.c.b16 %v139, %v134
  %v150 = vpack.c.b16 %v140, %v135
  %v151 = vpack.c.b16 %v141, %v136
  %v152 = vpack.c.b16 %v142, %v137
  %v153 = vpack.c.b16 %v143, %v138
  %v234 = vunpack.c.l.b16 %v33
  %v235 = vunpack.c.l.b16 %v34
  %v236 = vunpack.c.l.b16 %v35
  %v237 = vunpack.c.l.b16 %v36
  %v238 = vunpack.c.l.b16 %v37
  %v239 = vunpack.c.l.b16 %v38
  %v240 = vunpack.c.l.b16 %v39
  %v241 = vunpack.c.l.b16 %v40
  %v242 = vunpack.c.l.b16 %v41
  %v243 = vunpack.c.l.b16 %v42
  %v244 = vunpack.c.l.b16 %v43
  %v245 = vunpack.c.l.b16 %v44
  %v246 = vunpack.c.l.b16 %v45
  %v247 = vunpack.c.l.b16 %v46
  %v248 = vunpack.c.l.b16 %v47
  %v249 = vunpack.c.l.b16 %v48
  %v250 = vunpack.c.l.b16 %v49
  %v251 = vunpack.c.l.b16 %v50
  %v252 = vunpack.c.l.b16 %v51
  %v253 = vunpack.c.l.b16 %v52
  %v254 = vunpack.c.l.b16 %v53
  %v255 = vunpack.c.l.b16 %v54
  %v256 = vunpack.c.l.b16 %v55
  %v257 = vunpack.c.l.b16 %v56
  %v258 = vunpack.c.l.b16 %v57
  %v259 = vunpack.c.l.b16 %v58
  %v260 = vunpack.c.l.b16 %v59
  %v261 = vunpack.c.l.b16 %v60
  %v262 = vunpack.c.l.b16 %v61
  %v263 = vunpack.c.l.b16 %v62
  %v264 = vunpack.c.l.b16 %v63
  %v265 = vunpack.c.l.b16 %v64
  %v266 = vunpack.c.l.b16 %v65
  %v267 = vunpack.c.l.b16 %v66
  %v268 = vunpack.c.l.b16 %v67
  %v269 = vunpack.c.l.b16 %v68
  %v270 = vunpack.c.l.b16 %v69
  %v271 = vunpack.c.l.b16 %v70
  %v272 = vunpack.c.l.b16 %v71
  %v273 = vunpack.c.l.b16 %v72
  %v274 = vunpack.c.l.b16 %v73
  %v275 = vunpack.c.l.b16 %v74
  %v276 = vunpack.c.l.b16 %v75
  %v277 = vunpack.c.l.b16 %v76
  %v278 = vunpack.c.l.b16 %v77
  %v279 = vunpack.c.l.b16 %v78
  %v280 = vunpack.c.l.b16 %v79
  %v281 = vunpack.c.l.b16 %v80
  %v282 = vunpack.c.l.b16 %v81
  %v283 = vunpack.c.l.b16 %v82
  %v284 = vunpack.c.l.b16 %v83
  %v285 = vunpack.c.l.b16 %v84
  %v286 = vunpack.c.l.b16 %v85
  %v287 = vunpack.c.l.b16 %v86
  %v288 = vunpack.c.l.b16 %v87
  %v289 = vunpack.c.l.b16 %v88
  %v290 = vunpack.c.l.b16 %v89
  %v291 = vunpack.c.l.b16 %v90
  %v292 = vunpack.c.l.b16 %v91
  %v293 = vunpack.c.l.b16 %v92
  %v294 = vunpack.c.l.b16 %v93
  %v295 = vunpack.c.l.b16 %v94
  %v296 = vunpack.c.l.b16 %v95
  %v297 = vunpack.c.l.b16 %v96
  %v298 = vunpack.c.l.b16 %v97
  %v299 = vunpack.c.l.b16 %v98
  %v300 = vunpack.c.l.b16 %v99
  %v301 = vunpack.c.l.b16 %v100
  %v302 = vunpack.c.l.b16 %v101
  %v303 = vunpack.c.l.b16 %v102
  %v304 = vunpack.c.l.b16 %v103
  %v305 = vunpack.c.l.b16 %v104
  %v306 = vpack.c.b16 %v235, %v234
  %v307 = vpack.c.b16 %v237, %v236
  %v308 = vpack.c.b16 %v239, %v238
  %v309 = vpack.c.b16 %v241, %v240
  %v310 = vpack.c.b16 %v243, %v242
  %v311 = vpack.c.b16 %v245, %v244
  %v312 = vpack.c.b16 %v247, %v246
  %v313 = vpack.c.b16 %v249, %v248
  %v314 = vpack.c.b16 %v251, %v250
  %v315 = vpack.c.b16 %v253, %v252
  %v316 = vpack.c.b16 %v255, %v254
  %v317 = vpack.c.b16 %v257, %v256
  %v318 = vpack.c.b16 %v259, %v258
  %v319 = vpack.c.b16 %v261, %v260
  %v320 = vpack.c.b16 %v263, %v262
  %v321 = vpack.c.b16 %v265, %v264
  %v322 = vpack.c.b16 %v267, %v266
  %v323 = vpack.c.b16 %v269, %v268
  %v324 = vpack.c.b16 %v271, %v270
  %v325 = vpack.c.b16 %v273, %v272
  %v326 = vpack.c.b16 %v275, %v274
  %v327 = vpack.c.b16 %v277, %v276
  %v328 = vpack.c.b16 %v279, %v278
  %v329 = vpack.c.b16 %v281, %v280
  %v330 = vpack.c.b16 %v283, %v282
  %v331 = vpack.c.b16 %v285, %v284
  %v332 = vpack.c.b16 %v287, %v286
  %v333 = vpack.c.b16 %v289, %v288
  %v334 = vpack.c.b16 %v291, %v290
  %v335 = vpack.c.b16 %v293, %v292
  %v336 = vpack.c.b16 %v295, %v294
  %v337 = vpack.c.b16 %v297, %v296
  %v338 = vpack.c.b16 %v299, %v298
  %v339 = vpack.c.b16 %v301, %v300
  %v340 = vpack.c.b16 %v303, %v302
  %v341 = vpack.c.b16 %v305, %v304
  %vm378 = vcmask 523264
  %v380 = vsel %vm378, %v148, 0
  %v383 = vsel %vm378, %v153, 0
  %385 = vmatprep.subr.bf16.mxu0 0
  %386 = vmatpush1.bf16.msra.mxu0 %v306
  %387 = vmatprep.subr.bf16.mxu0 0
  %388 = vmatpush1.bf16.msra.mxu0 %v307
  %389 = vmatprep.subr.bf16.mxu0 0
  %390 = vmatpush1.bf16.msra.mxu0 %v308
  %391 = vmatprep.subr.bf16.mxu0 0
  %392 = vmatpush1.bf16.msra.mxu0 %v309
  %393 = vmatprep.subr.bf16.mxu0 0
  %394 = vmatpush1.bf16.msra.mxu0 %v310
  %395 = vmatprep.subr.bf16.mxu0 0
  %396 = vmatpush1.bf16.msra.mxu0 %v311
  %397 = vmatprep.subr.bf16.mxu0 0
  %398 = vmatpush1.bf16.msra.mxu0 %v312
  %399 = vmatprep.subr.bf16.mxu0 0
  %400 = vmatpush1.bf16.msra.mxu0 %v313
  %401 = vmatprep.subr.bf16.mxu0 0
  %402 = vmatpush1.bf16.msra.mxu0 %v314
  %403 = vmatprep.subr.bf16.mxu0 0
  %404 = vmatpush1.bf16.msra.mxu0 %v315
  %405 = vmatprep.subr.bf16.mxu0 0
  %406 = vmatpush1.bf16.msra.mxu0 %v316
  %407 = vmatprep.subr.bf16.mxu0 0
  %408 = vmatpush1.bf16.msra.mxu0 %v317
  %409 = vmatprep.subr.bf16.mxu0 0
  %410 = vmatpush1.bf16.msra.mxu0 %v318
  %411 = vmatprep.subr.bf16.mxu0 0
  %412 = vmatpush1.bf16.msra.mxu0 %v319
  %413 = vmatprep.subr.bf16.mxu0 0
  %414 = vmatpush1.bf16.msra.mxu0 %v320
  %415 = vmatprep.subr.bf16.mxu0 0
  %416 = vmatpush1.bf16.msra.mxu0 %v321
  %417 = vmatprep.mubr.bf16.mxu0 %v145
  %418 = vmatmul.mubr.bf16.gmra.mrb[0].mxu0 %v144
  %v419 = vpop.f32.mrb[0].mxu0
  %v420 = vadd.f32 %v110, %v419
  %v421 = vpop.f32.mrb[0].mxu0
  %v422 = vpop.f32.mrb[0].mxu0
  %v423 = vadd.f32 %v110, %v422
  %v424 = vpop.f32.mrb[0].mxu0
  %425 = vmatprep.mubr.bf16.mxu0 %v150
  %426 = vmatmul.mubr.bf16.gmra.mrb[0].mxu0 %v149
  %v427 = vpop.f32.mrb[0].mxu0
  %v428 = vadd.f32 %v110, %v427
  %v429 = vpop.f32.mrb[0].mxu0
  %v430 = vpop.f32.mrb[0].mxu0
  %v431 = vadd.f32 %v110, %v430
  %v432 = vpop.f32.mrb[0].mxu0
  %433 = vdwg.mxu0
  %434 = vmatprep.subr.bf16.mxu0 0
  %435 = vmatpush1.bf16.msra.mxu0 %v322
  %436 = vmatprep.subr.bf16.mxu0 0
  %437 = vmatpush1.bf16.msra.mxu0 %v323
  %438 = vmatprep.subr.bf16.mxu0 0
  %439 = vmatpush1.bf16.msra.mxu0 %v324
  %440 = vmatprep.subr.bf16.mxu0 0
  %441 = vmatpush1.bf16.msra.mxu0 %v325
  %442 = vmatprep.subr.bf16.mxu0 0
  %443 = vmatpush1.bf16.msra.mxu0 %v326
  %444 = vmatprep.subr.bf16.mxu0 0
  %445 = vmatpush1.bf16.msra.mxu0 %v327
  %446 = vmatprep.subr.bf16.mxu0 0
  %447 = vmatpush1.bf16.msra.mxu0 %v328
  %448 = vmatprep.subr.bf16.mxu0 0
  %449 = vmatpush1.bf16.msra.mxu0 %v329
  %450 = vmatprep.subr.bf16.mxu0 0
  %451 = vmatpush1.bf16.msra.mxu0 %v330
  %452 = vmatprep.subr.bf16.mxu0 0
  %453 = vmatpush1.bf16.msra.mxu0 %v331
  %454 = vmatprep.subr.bf16.mxu0 0
  %455 = vmatpush1.bf16.msra.mxu0 %v332
  %456 = vmatprep.subr.bf16.mxu0 0
  %457 = vmatpush1.bf16.msra.mxu0 %v333
  %458 = vmatprep.subr.bf16.mxu0 0
  %459 = vmatpush1.bf16.msra.mxu0 %v334
  %460 = vmatprep.subr.bf16.mxu0 0
  %461 = vmatpush1.bf16.msra.mxu0 %v335
  %462 = vmatprep.subr.bf16.mxu0 0
  %463 = vmatpush1.bf16.msra.mxu0 %v336
  %464 = vmatprep.subr.bf16.mxu0 0
  %465 = vmatpush1.bf16.msra.mxu0 %v337
  %466 = vmatprep.mubr.bf16.mxu0 %v147
  %467 = vmatmul.mubr.bf16.gmra.mrb[0].mxu0 %v146
  %v468 = vpop.f32.mrb[0].mxu0
  %v469 = vadd.f32 %v420, %v468
  %v470 = vpop.f32.mrb[0].mxu0
  %v471 = vpop.f32.mrb[0].mxu0
  %v472 = vadd.f32 %v423, %v471
  %v473 = vpop.f32.mrb[0].mxu0
  %474 = vmatprep.mubr.bf16.mxu0 %v152
  %475 = vmatmul.mubr.bf16.gmra.mrb[0].mxu0 %v151
  %v476 = vpop.f32.mrb[0].mxu0
  %v477 = vadd.f32 %v428, %v476
  %v478 = vpop.f32.mrb[0].mxu0
  %v479 = vpop.f32.mrb[0].mxu0
  %v480 = vadd.f32 %v431, %v479
  %v481 = vpop.f32.mrb[0].mxu0
  %482 = vdwg.mxu0
  %483 = vmatprep.subr.bf16.mxu0 0
  %484 = vmatpush1.bf16.msra.mxu0 %v338
  %485 = vmatprep.subr.bf16.mxu0 0
  %486 = vmatpush1.bf16.msra.mxu0 %v339
  %487 = vmatprep.subr.bf16.mxu0 0
  %488 = vmatpush1.bf16.msra.mxu0 %v340
  %489 = vmatprep.subr.bf16.mxu0 0
  %490 = vmatpush1.bf16.msra.mxu0 %v341
  %491 = vmatprep.subr.bf16.mxu0 0
  %492 = vmatpush1.bf16.msra.mxu0 0
  %493 = vmatprep.subr.bf16.mxu0 0
  %494 = vmatpush1.bf16.msra.mxu0 0
  %495 = vmatprep.subr.bf16.mxu0 0
  %496 = vmatpush1.bf16.msra.mxu0 0
  %497 = vmatprep.subr.bf16.mxu0 0
  %498 = vmatpush1.bf16.msra.mxu0 0
  %499 = vmatprep.subr.bf16.mxu0 0
  %500 = vmatpush1.bf16.msra.mxu0 0
  %501 = vmatprep.subr.bf16.mxu0 0
  %502 = vmatpush1.bf16.msra.mxu0 0
  %503 = vmatprep.subr.bf16.mxu0 0
  %504 = vmatpush1.bf16.msra.mxu0 0
  %505 = vmatprep.subr.bf16.mxu0 0
  %506 = vmatpush1.bf16.msra.mxu0 0
  %507 = vmatprep.subr.bf16.mxu0 0
  %508 = vmatpush1.bf16.msra.mxu0 0
  %509 = vmatprep.subr.bf16.mxu0 0
  %510 = vmatpush1.bf16.msra.mxu0 0
  %511 = vmatprep.subr.bf16.mxu0 0
  %512 = vmatpush1.bf16.msra.mxu0 0
  %513 = vmatprep.subr.bf16.mxu0 0
  %514 = vmatpush1.bf16.msra.mxu0 0
  %515 = vmatprep.mubr.bf16.mxu0 0
  %516 = vmatmul.mubr.bf16.gmra.mrb[0].mxu0 %v380
  %v517 = vpop.f32.mrb[0].mxu0
  %v518 = vadd.f32 %v469, %v517
  %v519 = vpop.f32.mrb[0].mxu0
  %v520 = vpop.f32.mrb[0].mxu0
  %v521 = vadd.f32 %v472, %v520
  %v522 = vpop.f32.mrb[0].mxu0
  %523 = vmatprep.mubr.bf16.mxu0 0
  %524 = vmatmul.mubr.bf16.gmra.mrb[0].mxu0 %v383
  %v525 = vpop.f32.mrb[0].mxu0
  %v526 = vadd.f32 %v477, %v525
  %v527 = vpop.f32.mrb[0].mxu0
  %v528 = vpop.f32.mrb[0].mxu0
  %v529 = vadd.f32 %v480, %v528
  %v530 = vpop.f32.mrb[0].mxu0
  %531 = vdwg.mxu0
  %v532 = vadd.f32 %v518, %v521
  %v533 = vadd.f32 %v532, %v526
  %v534 = vadd.f32 %v533, %v529
  %v535 = vrot.slane %v534, 4
  %v536 = vadd.f32 %v534, %v535
  %v537 = vrot.slane %v536, 2
  %v538 = vadd.f32 %v536, %v537
  %v539 = vrot.slane %v538, 1
  %v540 = vadd.f32 %v538, %v539
  %v541 = vmul.f32 %v518, %v518
  %v542 = vmul.f32 %v521, %v521
  %v543 = vmul.f32 %v526, %v526
  %v544 = vmul.f32 %v529, %v529
  %v545 = vadd.f32 %v541, %v542
  %v546 = vadd.f32 %v545, %v543
  %v547 = vadd.f32 %v546, %v544
  %v548 = vrot.slane %v547, 4
  %v549 = vadd.f32 %v547, %v548
  %v550 = vrot.slane %v549, 2
  %v551 = vadd.f32 %v549, %v550
  %v552 = vrot.slane %v551, 1
  %v553 = vadd.f32 %v551, %v552
  %555 = vrot.lane.b32.xlu0 %v540, 96
  %v556 = vpop.permute.xlu0 %555
  %v558 = vadd.f32 %v540, %v556
  %560 = vrot.lane.b32.xlu0 %v553, 96
  %v561 = vpop.permute.xlu0 %560
  %v563 = vadd.f32 %v553, %v561
  %564 = vrot.lane.b32.xlu0 %v540, 64
  %v565 = vpop.permute.xlu0 %564
  %v567 = vadd.f32 %v558, %v565
  %568 = vrot.lane.b32.xlu0 %v553, 64
  %v569 = vpop.permute.xlu0 %568
  %v571 = vadd.f32 %v563, %v569
  %572 = vrot.lane.b32.xlu0 %v540, 32
  %v573 = vpop.permute.xlu0 %572
  %v575 = vadd.f32 %v567, %v573
  %576 = vrot.lane.b32.xlu0 %v553, 32
  %v577 = vpop.permute.xlu0 %576
  %v579 = vadd.f32 %v571, %v577
  %v580 = vmul.f32 %v575, 0.0078125
  %v581 = vmul.f32 %v579, 0.0078125
  %v582 = vmul.f32 %v580, %v580
  %v583 = vsub.f32 %v581, %v582
  %v584 = vmax.f32 %v583, 0.0
  %v585 = vld [vmem:[%s3] sm:$0x1]
  %v586 = vadd.f32 %v584, 1e-05
  %v587 = vrsqrt.pop %v586
  %v588 = vmul.f32 %v585, %v587
  %v589 = vld [vmem:[%s4] sm:$0x1]
  %v590 = vmul.f32 %v580, %v588
  %v591 = vsub.f32 %v589, %v590
  %v593 = vlaneseq
  %v594 = vshrl.u32 %v593, 7
  %v595 = vsub.s32 0, %v594
  %v596 = vrot.slane %v588, %v595
  %597 = vrot.lane.b32.xlu0 %v596, 32
  %v598 = vpop.permute.xlu0 %597
  %600 = vrot.lane.b32.xlu0 %v596, 64
  %v601 = vpop.permute.xlu0 %600
  %603 = vrot.lane.b32.xlu0 %v596, 96
  %v604 = vpop.permute.xlu0 %603
  %vm606 = vcmask 261120
  %v607 = vsel %vm606, %v588, %v598
  %v608 = vsel %vm378, %v607, %v601
  %vm609 = vcmask 785408
  %v610 = vsel %vm609, %v608, %v604
  %v612 = vlaneseq
  %v613 = vshrl.u32 %v612, 7
  %v614 = vsub.s32 0, %v613
  %v615 = vrot.slane %v591, %v614
  %616 = vrot.lane.b32.xlu0 %v615, 32
  %v617 = vpop.permute.xlu0 %616
  %619 = vrot.lane.b32.xlu0 %v615, 64
  %v620 = vpop.permute.xlu0 %619
  %622 = vrot.lane.b32.xlu0 %v615, 96
  %v623 = vpop.permute.xlu0 %622
  %v625 = vsel %vm606, %v591, %v617
  %v626 = vsel %vm378, %v625, %v620
  %v627 = vsel %vm609, %v626, %v623
  %v628 = vlaneseq
  %v629 = vshrl.u32 %v628, 7
  %v630 = vsub.s32 0, %v629
  %v631 = vrot.slane %v610, %v630
  %v632 = vmul.f32 %v518, %v631
  %v633 = vmul.f32 %v521, %v631
  %v634 = vmul.f32 %v526, %v631
  %v635 = vmul.f32 %v529, %v631
  %v636 = vlaneseq
  %v637 = vshrl.u32 %v636, 7
  %v638 = vsub.s32 0, %v637
  %v639 = vrot.slane %v627, %v638
  %v640 = vadd.f32 %v632, %v639
  %v641 = vadd.f32 %v633, %v639
  %v642 = vadd.f32 %v634, %v639
  %v643 = vadd.f32 %v635, %v639
  %v644 = vmax.f32 %v640, 0.0
  %v645 = vmax.f32 %v641, 0.0
  %v646 = vmax.f32 %v642, 0.0
  %v647 = vmax.f32 %v643, 0.0
  %v648 = vpack.c.bf16 %v645, %v644
  %v649 = vpack.c.bf16 %v647, %v646
  %v652 = vunpack.c.l.b16 %v648
  %v653 = vunpack.c.h.b16 %v648
  %v654 = vunpack.c.l.b16 %v649
  %v655 = vunpack.c.h.b16 %v649
  %v656 = vpack.c.b16 %v652, %v652
  %v657 = vpack.c.b16 %v653, %v653
  %v658 = vpack.c.b16 %v654, %v654
  %v659 = vpack.c.b16 %v655, %v655
  %664 = vst [vmem:[%s5] sm:$0xf] %v656
  %665 = vst [vmem:[%s5 + $0x4] sm:$0xf] %v657
  %666 = vst [vmem:[%s5 + $0x8] sm:$0xf] %v658
  %667 = vst [vmem:[%s5 + $0xc] sm:$0xf] %v659
  // Predicated region
  $region22: #{ae_forward.11} parent=0 // pred_check
    _
  $region23: #{ae_forward.11} parent=0 // pred_check_branch
    %669 = sbr.rel (0) target = $region25
  $region24: #{ae_forward.11} parent=0 // pred_region
    _
  $region25: #{ae_forward.11} parent=0 // pred_fallthru
    _
  // Predicated region
  $region26: #{ae_forward.11} parent=0 // pred_check
    _
  $region27: #{ae_forward.11} parent=0 // pred_check_branch
    %671 = sbr.rel (0) target = $region29
  $region28: #{ae_forward.11} parent=0 // pred_region
    _
  $region29: #{ae_forward.11} parent=0 // pred_fallthru
    _

// kernel: ae_forward.12
$region0: #{ae_forward.12}
  #allocation0 [shape = 'u32[]', space=smem, size = 0x4, offset = 0x4, fixed_abs, tag = 'smem constant byte address 0x4 - core index']
  #allocation1 [shape = 'u32[144,128]{1,0:T(1,128)}', space=vmem, size = 0x12000, scoped, tag = 'internal scratch']
  %s0 = inlined_call_operand.vmem [shape: bf16[128,288], index: 0, kind: input, shape index: {}]
  %s1 = inlined_call_operand.vmem [shape: bf16[288,64], index: 1, kind: input, shape index: {}]
  %s2 = inlined_call_operand.vmem [shape: f32[1,64], index: 2, kind: input, shape index: {}]
  %s3 = inlined_call_operand.vmem [shape: f32[1,16], index: 3, kind: input, shape index: {}]
  %s4 = inlined_call_operand.vmem [shape: f32[1,16], index: 4, kind: input, shape index: {}]
  %s5 = inlined_call_operand.vmem [shape: bf16[128,64], index: 5, kind: output, shape index: {}]
  %s6 = sld [smem:[#allocation0]]
  $region30: #{ae_forward.12} parent=0
    _
  %s8 = ssub.s32 1, %s6
  %s9 = scalar_select 0, %s8, %s6
  // Predicated region
  $region2: #{ae_forward.12} parent=0 // pred_check
    _
  $region3: #{ae_forward.12} parent=0 // pred_check_branch
    %11 = sbr.rel (0) target = $region5
  $region4: #{ae_forward.12} parent=0 // pred_region
    _
  $region5: #{ae_forward.12} parent=0 // pred_fallthru
    _
  // Predicated region
  $region6: #{ae_forward.12} parent=0 // pred_check
    _
  $region7: #{ae_forward.12} parent=0 // pred_check_branch
    %13 = sbr.rel (0) target = $region9
  $region8: #{ae_forward.12} parent=0 // pred_region
    _
  $region9: #{ae_forward.12} parent=0 // pred_fallthru
    _
  // Predicated region
  $region10: #{ae_forward.12} parent=0 // pred_check
    _
  $region11: #{ae_forward.12} parent=0 // pred_check_branch
    %15 = sbr.rel (0) target = $region13
  $region12: #{ae_forward.12} parent=0 // pred_region
    _
  $region13: #{ae_forward.12} parent=0 // pred_fallthru
    _
  // Predicated region
  $region14: #{ae_forward.12} parent=0 // pred_check
    _
  $region15: #{ae_forward.12} parent=0 // pred_check_branch
    %17 = sbr.rel (0) target = $region17
  $region16: #{ae_forward.12} parent=0 // pred_region
    _
  $region17: #{ae_forward.12} parent=0 // pred_fallthru
    _
  // Predicated region
  $region18: #{ae_forward.12} parent=0 // pred_check
    _
  $region19: #{ae_forward.12} parent=0 // pred_check_branch
    %19 = sbr.rel (0) target = $region21
  $region20: #{ae_forward.12} parent=0 // pred_region
    _
  $region21: #{ae_forward.12} parent=0 // pred_fallthru
    _
  %v21 = vld [vmem:[%s0] sm:$0xff]
  %v22 = vld [vmem:[%s0 + $0x8] sm:$0xf]
  %v23 = vld [vmem:[%s0 + $0xc] sm:$0xff]
  %v24 = vld [vmem:[%s0 + $0x14] sm:$0xf]
  %v25 = vld [vmem:[%s0 + $0x18] sm:$0xff]
  %v26 = vld [vmem:[%s0 + $0x20] sm:$0xf]
  %v27 = vld [vmem:[%s0 + $0x24] sm:$0xff]
  %v28 = vld [vmem:[%s0 + $0x2c] sm:$0xf]
  %v29 = vld [vmem:[%s0 + $0x30] sm:$0xff]
  %v30 = vld [vmem:[%s0 + $0x38] sm:$0xf]
  %v31 = vld [vmem:[%s0 + $0x3c] sm:$0xff]
  %v32 = vld [vmem:[%s0 + $0x44] sm:$0xf]
  %v33 = vld [vmem:[%s0 + $0x48] sm:$0xff]
  %v34 = vld [vmem:[%s0 + $0x50] sm:$0xf]
  %v35 = vld [vmem:[%s0 + $0x54] sm:$0xff]
  %v36 = vld [vmem:[%s0 + $0x5c] sm:$0xf]
  %v37 = vld [vmem:[%s0 + $0x60] sm:$0xff]
  %v38 = vld [vmem:[%s0 + $0x68] sm:$0xf]
  %v39 = vld [vmem:[%s0 + $0x6c] sm:$0xff]
  %v40 = vld [vmem:[%s0 + $0x74] sm:$0xf]
  %v41 = vld [vmem:[%s0 + $0x78] sm:$0xff]
  %v42 = vld [vmem:[%s0 + $0x80] sm:$0xf]
  %v43 = vld [vmem:[%s0 + $0x84] sm:$0xff]
  %v44 = vld [vmem:[%s0 + $0x8c] sm:$0xf]
  %v45 = vld [vmem:[%s0 + $0x90] sm:$0xff]
  %v46 = vld [vmem:[%s0 + $0x98] sm:$0xf]
  %v47 = vld [vmem:[%s0 + $0x9c] sm:$0xff]
  %v48 = vld [vmem:[%s0 + $0xa4] sm:$0xf]
  %v49 = vld [vmem:[%s0 + $0xa8] sm:$0xff]
  %v50 = vld [vmem:[%s0 + $0xb0] sm:$0xf]
  %v51 = vld [vmem:[%s0 + $0xb4] sm:$0xff]
  %v52 = vld [vmem:[%s0 + $0xbc] sm:$0xf]
  %v53 = vld [vmem:[%s1] sm:$0xf]
  %v54 = vld [vmem:[%s1 + $0x4] sm:$0xf]
  %v55 = vld [vmem:[%s1 + $0x8] sm:$0xf]
  %v56 = vld [vmem:[%s1 + $0xc] sm:$0xf]
  %v57 = vld [vmem:[%s1 + $0x10] sm:$0xf]
  %v58 = vld [vmem:[%s1 + $0x14] sm:$0xf]
  %v59 = vld [vmem:[%s1 + $0x18] sm:$0xf]
  %v60 = vld [vmem:[%s1 + $0x1c] sm:$0xf]
  %v61 = vld [vmem:[%s1 + $0x20] sm:$0xf]
  %v62 = vld [vmem:[%s1 + $0x24] sm:$0xf]
  %v63 = vld [vmem:[%s1 + $0x28] sm:$0xf]
  %v64 = vld [vmem:[%s1 + $0x2c] sm:$0xf]
  %v65 = vld [vmem:[%s1 + $0x30] sm:$0xf]
  %v66 = vld [vmem:[%s1 + $0x34] sm:$0xf]
  %v67 = vld [vmem:[%s1 + $0x38] sm:$0xf]
  %v68 = vld [vmem:[%s1 + $0x3c] sm:$0xf]
  %v69 = vld [vmem:[%s1 + $0x40] sm:$0xf]
  %v70 = vld [vmem:[%s1 + $0x44] sm:$0xf]
  %v71 = vld [vmem:[%s1 + $0x48] sm:$0xf]
  %v72 = vld [vmem:[%s1 + $0x4c] sm:$0xf]
  %v73 = vld [vmem:[%s1 + $0x50] sm:$0xf]
  %v74 = vld [vmem:[%s1 + $0x54] sm:$0xf]
  %v75 = vld [vmem:[%s1 + $0x58] sm:$0xf]
  %v76 = vld [vmem:[%s1 + $0x5c] sm:$0xf]
  %v77 = vld [vmem:[%s1 + $0x60] sm:$0xf]
  %v78 = vld [vmem:[%s1 + $0x64] sm:$0xf]
  %v79 = vld [vmem:[%s1 + $0x68] sm:$0xf]
  %v80 = vld [vmem:[%s1 + $0x6c] sm:$0xf]
  %v81 = vld [vmem:[%s1 + $0x70] sm:$0xf]
  %v82 = vld [vmem:[%s1 + $0x74] sm:$0xf]
  %v83 = vld [vmem:[%s1 + $0x78] sm:$0xf]
  %v84 = vld [vmem:[%s1 + $0x7c] sm:$0xf]
  %v85 = vld [vmem:[%s1 + $0x80] sm:$0xf]
  %v86 = vld [vmem:[%s1 + $0x84] sm:$0xf]
  %v87 = vld [vmem:[%s1 + $0x88] sm:$0xf]
  %v88 = vld [vmem:[%s1 + $0x8c] sm:$0xf]
  %v89 = vld [vmem:[%s2] sm:$0x1]
  %v91 = vlaneseq
  %v92 = vshrl.u32 %v91, 7
  %v93 = vsub.s32 0, %v92
  %v94 = vrot.slane %v89, %v93
  %v128 = vunpack.c.l.b16 %v21
  %v129 = vunpack.c.h.b16 %v21
  %v130 = vunpack.c.l.b16 %v22
  %v131 = vunpack.c.l.b16 %v23
  %v132 = vunpack.c.h.b16 %v23
  %v133 = vunpack.c.l.b16 %v24
  %v134 = vunpack.c.l.b16 %v25
  %v135 = vunpack.c.h.b16 %v25
  %v136 = vunpack.c.l.b16 %v26
  %v137 = vunpack.c.l.b16 %v27
  %v138 = vunpack.c.h.b16 %v27
  %v139 = vunpack.c.l.b16 %v28
  %v140 = vunpack.c.l.b16 %v29
  %v141 = vunpack.c.h.b16 %v29
  %v142 = vunpack.c.l.b16 %v30
  %v143 = vunpack.c.l.b16 %v31
  %v144 = vunpack.c.h.b16 %v31
  %v145 = vunpack.c.l.b16 %v32
  %v146 = vunpack.c.l.b16 %v33
  %v147 = vunpack.c.h.b16 %v33
  %v148 = vunpack.c.l.b16 %v34
  %v149 = vunpack.c.l.b16 %v35
  %v150 = vunpack.c.h.b16 %v35
  %v151 = vunpack.c.l.b16 %v36
  %v152 = vunpack.c.l.b16 %v37
  %v153 = vunpack.c.h.b16 %v37
  %v154 = vunpack.c.l.b16 %v38
  %v155 = vunpack.c.l.b16 %v39
  %v156 = vunpack.c.h.b16 %v39
  %v157 = vunpack.c.l.b16 %v40
  %v158 = vunpack.c.l.b16 %v41
  %v159 = vunpack.c.h.b16 %v41
  %v160 = vunpack.c.l.b16 %v42
  %v161 = vunpack.c.l.b16 %v43
  %v162 = vunpack.c.h.b16 %v43
  %v163 = vunpack.c.l.b16 %v44
  %v164 = vunpack.c.l.b16 %v45
  %v165 = vunpack.c.h.b16 %v45
  %v166 = vunpack.c.l.b16 %v46
  %v167 = vunpack.c.l.b16 %v47
  %v168 = vunpack.c.h.b16 %v47
  %v169 = vunpack.c.l.b16 %v48
  %v170 = vunpack.c.l.b16 %v49
  %v171 = vunpack.c.h.b16 %v49
  %v172 = vunpack.c.l.b16 %v50
  %v173 = vunpack.c.l.b16 %v51
  %v174 = vunpack.c.h.b16 %v51
  %v175 = vunpack.c.l.b16 %v52
  %v176 = vpack.c.b16 %v131, %v128
  %v177 = vpack.c.b16 %v132, %v129
  %v178 = vpack.c.b16 %v133, %v130
  %v179 = vpack.c.b16 %v137, %v134
  %v180 = vpack.c.b16 %v138, %v135
  %v181 = vpack.c.b16 %v139, %v136
  %v182 = vpack.c.b16 %v143, %v140
  %v183 = vpack.c.b16 %v144, %v141
  %v184 = vpack.c.b16 %v145, %v142
  %v185 = vpack.c.b16 %v149, %v146
  %v186 = vpack.c.b16 %v150, %v147
  %v187 = vpack.c.b16 %v151, %v148
  %v188 = vpack.c.b16 %v155, %v152
  %v189 = vpack.c.b16 %v156, %v153
  %v190 = vpack.c.b16 %v157, %v154
  %v191 = vpack.c.b16 %v161, %v158
  %v192 = vpack.c.b16 %v162, %v159
  %v193 = vpack.c.b16 %v163, %v160
  %v194 = vpack.c.b16 %v167, %v164
  %v195 = vpack.c.b16 %v168, %v165
  %v196 = vpack.c.b16 %v169, %v166
  %v197 = vpack.c.b16 %v173, %v170
  %v198 = vpack.c.b16 %v174, %v171
  %v199 = vpack.c.b16 %v175, %v172
  %v252 = vunpack.c.l.b16 %v53
  %v253 = vunpack.c.l.b16 %v54
  %v254 = vunpack.c.l.b16 %v55
  %v255 = vunpack.c.l.b16 %v56
  %v256 = vunpack.c.l.b16 %v57
  %v257 = vunpack.c.l.b16 %v58
  %v258 = vunpack.c.l.b16 %v59
  %v259 = vunpack.c.l.b16 %v60
  %v260 = vunpack.c.l.b16 %v61
  %v261 = vunpack.c.l.b16 %v62
  %v262 = vunpack.c.l.b16 %v63
  %v263 = vunpack.c.l.b16 %v64
  %v264 = vunpack.c.l.b16 %v65
  %v265 = vunpack.c.l.b16 %v66
  %v266 = vunpack.c.l.b16 %v67
  %v267 = vunpack.c.l.b16 %v68
  %v268 = vunpack.c.l.b16 %v69
  %v269 = vunpack.c.l.b16 %v70
  %v270 = vunpack.c.l.b16 %v71
  %v271 = vunpack.c.l.b16 %v72
  %v272 = vunpack.c.l.b16 %v73
  %v273 = vunpack.c.l.b16 %v74
  %v274 = vunpack.c.l.b16 %v75
  %v275 = vunpack.c.l.b16 %v76
  %v276 = vunpack.c.l.b16 %v77
  %v277 = vunpack.c.l.b16 %v78
  %v278 = vunpack.c.l.b16 %v79
  %v279 = vunpack.c.l.b16 %v80
  %v280 = vunpack.c.l.b16 %v81
  %v281 = vunpack.c.l.b16 %v82
  %v282 = vunpack.c.l.b16 %v83
  %v283 = vunpack.c.l.b16 %v84
  %v284 = vunpack.c.l.b16 %v85
  %v285 = vunpack.c.l.b16 %v86
  %v286 = vunpack.c.l.b16 %v87
  %v287 = vunpack.c.l.b16 %v88
  %v288 = vpack.c.b16 %v253, %v252
  %v289 = vpack.c.b16 %v255, %v254
  %v290 = vpack.c.b16 %v257, %v256
  %v291 = vpack.c.b16 %v259, %v258
  %v292 = vpack.c.b16 %v261, %v260
  %v293 = vpack.c.b16 %v263, %v262
  %v294 = vpack.c.b16 %v265, %v264
  %v295 = vpack.c.b16 %v267, %v266
  %v296 = vpack.c.b16 %v269, %v268
  %v297 = vpack.c.b16 %v271, %v270
  %v298 = vpack.c.b16 %v273, %v272
  %v299 = vpack.c.b16 %v275, %v274
  %v300 = vpack.c.b16 %v277, %v276
  %v301 = vpack.c.b16 %v279, %v278
  %v302 = vpack.c.b16 %v281, %v280
  %v303 = vpack.c.b16 %v283, %v282
  %v304 = vpack.c.b16 %v285, %v284
  %v305 = vpack.c.b16 %v287, %v286
  %vm324 = vcmask 261120
  %v326 = vsel %vm324, %v178, 0
  %v329 = vsel %vm324, %v181, 0
  %v332 = vsel %vm324, %v184, 0
  %v335 = vsel %vm324, %v187, 0
  %v338 = vsel %vm324, %v190, 0
  %v341 = vsel %vm324, %v193, 0
  %v344 = vsel %vm324, %v196, 0
  %v347 = vsel %vm324, %v199, 0
  %349 = vmatprep.subr.bf16.mxu0 0
  %350 = vmatpush1.bf16.msra.mxu0 %v288
  %351 = vmatprep.subr.bf16.mxu0 0
  %352 = vmatpush1.bf16.msra.mxu0 %v289
  %353 = vmatprep.subr.bf16.mxu0 0
  %354 = vmatpush1.bf16.msra.mxu0 %v290
  %355 = vmatprep.subr.bf16.mxu0 0
  %356 = vmatpush1.bf16.msra.mxu0 %v291
  %357 = vmatprep.subr.bf16.mxu0 0
  %358 = vmatpush1.bf16.msra.mxu0 %v292
  %359 = vmatprep.subr.bf16.mxu0 0
  %360 = vmatpush1.bf16.msra.mxu0 %v293
  %361 = vmatprep.subr.bf16.mxu0 0
  %362 = vmatpush1.bf16.msra.mxu0 %v294
  %363 = vmatprep.subr.bf16.mxu0 0
  %364 = vmatpush1.bf16.msra.mxu0 %v295
  %365 = vmatprep.subr.bf16.mxu0 0
  %366 = vmatpush1.bf16.msra.mxu0 %v296
  %367 = vmatprep.subr.bf16.mxu0 0
  %368 = vmatpush1.bf16.msra.mxu0 %v297
  %369 = vmatprep.subr.bf16.mxu0 0
  %370 = vmatpush1.bf16.msra.mxu0 %v298
  %371 = vmatprep.subr.bf16.mxu0 0
  %372 = vmatpush1.bf16.msra.mxu0 %v299
  %373 = vmatprep.subr.bf16.mxu0 0
  %374 = vmatpush1.bf16.msra.mxu0 %v300
  %375 = vmatprep.subr.bf16.mxu0 0
  %376 = vmatpush1.bf16.msra.mxu0 %v301
  %377 = vmatprep.subr.bf16.mxu0 0
  %378 = vmatpush1.bf16.msra.mxu0 %v302
  %379 = vmatprep.subr.bf16.mxu0 0
  %380 = vmatpush1.bf16.msra.mxu0 %v303
  %381 = vmatprep.mubr.bf16.mxu0 %v177
  %382 = vmatmul.mubr.bf16.gmra.mrb[0].mxu0 %v176
  %v383 = vpop.f32.mrb[0].mxu0
  %v384 = vadd.f32 %v94, %v383
  %v385 = vpop.f32.mrb[0].mxu0
  %v386 = vpop.f32.mrb[0].mxu0
  %v387 = vadd.f32 %v94, %v386
  %v388 = vpop.f32.mrb[0].mxu0
  %389 = vmatprep.mubr.bf16.mxu0 %v180
  %390 = vmatmul.mubr.bf16.gmra.mrb[0].mxu0 %v179
  %v391 = vpop.f32.mrb[0].mxu0
  %v392 = vadd.f32 %v94, %v391
  %v393 = vpop.f32.mrb[0].mxu0
  %v394 = vpop.f32.mrb[0].mxu0
  %v395 = vadd.f32 %v94, %v394
  %v396 = vpop.f32.mrb[0].mxu0
  %397 = vmatprep.mubr.bf16.mxu0 %v183
  %398 = vmatmul.mubr.bf16.gmra.mrb[0].mxu0 %v182
  %v399 = vpop.f32.mrb[0].mxu0
  %v400 = vadd.f32 %v94, %v399
  %v401 = vpop.f32.mrb[0].mxu0
  %v402 = vpop.f32.mrb[0].mxu0
  %v403 = vadd.f32 %v94, %v402
  %v404 = vpop.f32.mrb[0].mxu0
  %405 = vmatprep.mubr.bf16.mxu0 %v186
  %406 = vmatmul.mubr.bf16.gmra.mrb[0].mxu0 %v185
  %v407 = vpop.f32.mrb[0].mxu0
  %v408 = vadd.f32 %v94, %v407
  %v409 = vpop.f32.mrb[0].mxu0
  %v410 = vpop.f32.mrb[0].mxu0
  %v411 = vadd.f32 %v94, %v410
  %v412 = vpop.f32.mrb[0].mxu0
  %413 = vmatprep.mubr.bf16.mxu0 %v189
  %414 = vmatmul.mubr.bf16.gmra.mrb[0].mxu0 %v188
  %v415 = vpop.f32.mrb[0].mxu0
  %v416 = vadd.f32 %v94, %v415
  %v417 = vpop.f32.mrb[0].mxu0
  %v418 = vpop.f32.mrb[0].mxu0
  %v419 = vadd.f32 %v94, %v418
  %v420 = vpop.f32.mrb[0].mxu0
  %421 = vmatprep.mubr.bf16.mxu0 %v192
  %422 = vmatmul.mubr.bf16.gmra.mrb[0].mxu0 %v191
  %v423 = vpop.f32.mrb[0].mxu0
  %v424 = vadd.f32 %v94, %v423
  %v425 = vpop.f32.mrb[0].mxu0
  %v426 = vpop.f32.mrb[0].mxu0
  %v427 = vadd.f32 %v94, %v426
  %v428 = vpop.f32.mrb[0].mxu0
  %429 = vmatprep.mubr.bf16.mxu0 %v195
  %430 = vmatmul.mubr.bf16.gmra.mrb[0].mxu0 %v194
  %v431 = vpop.f32.mrb[0].mxu0
  %v432 = vadd.f32 %v94, %v431
  %v433 = vpop.f32.mrb[0].mxu0
  %v434 = vpop.f32.mrb[0].mxu0
  %v435 = vadd.f32 %v94, %v434
  %v436 = vpop.f32.mrb[0].mxu0
  %437 = vmatprep.mubr.bf16.mxu0 %v198
  %438 = vmatmul.mubr.bf16.gmra.mrb[0].mxu0 %v197
  %v439 = vpop.f32.mrb[0].mxu0
  %v440 = vadd.f32 %v94, %v439
  %v441 = vpop.f32.mrb[0].mxu0
  %v442 = vpop.f32.mrb[0].mxu0
  %v443 = vadd.f32 %v94, %v442
  %v444 = vpop.f32.mrb[0].mxu0
  %445 = vdwg.mxu0
  %446 = vmatprep.subr.bf16.mxu0 0
  %447 = vmatpush1.bf16.msra.mxu0 %v304
  %448 = vmatprep.subr.bf16.mxu0 0
  %449 = vmatpush1.bf16.msra.mxu0 %v305
  %450 = vmatprep.subr.bf16.mxu0 0
  %451 = vmatpush1.bf16.msra.mxu0 0
  %452 = vmatprep.subr.bf16.mxu0 0
  %453 = vmatpush1.bf16.msra.mxu0 0
  %454 = vmatprep.subr.bf16.mxu0 0
  %455 = vmatpush1.bf16.msra.mxu0 0
  %456 = vmatprep.subr.bf16.mxu0 0
  %457 = vmatpush1.bf16.msra.mxu0 0
  %458 = vmatprep.subr.bf16.mxu0 0
  %459 = vmatpush1.bf16.msra.mxu0 0
  %460 = vmatprep.subr.bf16.mxu0 0
  %461 = vmatpush1.bf16.msra.mxu0 0
  %462 = vmatprep.subr.bf16.mxu0 0
  %463 = vmatpush1.bf16.msra.mxu0 0
  %464 = vmatprep.subr.bf16.mxu0 0
  %465 = vmatpush1.bf16.msra.mxu0 0
  %466 = vmatprep.subr.bf16.mxu0 0
  %467 = vmatpush1.bf16.msra.mxu0 0
  %468 = vmatprep.subr.bf16.mxu0 0
  %469 = vmatpush1.bf16.msra.mxu0 0
  %470 = vmatprep.subr.bf16.mxu0 0
  %471 = vmatpush1.bf16.msra.mxu0 0
  %472 = vmatprep.subr.bf16.mxu0 0
  %473 = vmatpush1.bf16.msra.mxu0 0
  %474 = vmatprep.subr.bf16.mxu0 0
  %475 = vmatpush1.bf16.msra.mxu0 0
  %476 = vmatprep.subr.bf16.mxu0 0
  %477 = vmatpush1.bf16.msra.mxu0 0
  %478 = vmatprep.mubr.bf16.mxu0 0
  %479 = vmatmul.mubr.bf16.gmra.mrb[0].mxu0 %v326
  %v480 = vpop.f32.mrb[0].mxu0
  %v481 = vadd.f32 %v384, %v480
  %v482 = vpop.f32.mrb[0].mxu0
  %v483 = vpop.f32.mrb[0].mxu0
  %v484 = vadd.f32 %v387, %v483
  %v485 = vpop.f32.mrb[0].mxu0
  %486 = vmatprep.mubr.bf16.mxu0 0
  %487 = vmatmul.mubr.bf16.gmra.mrb[0].mxu0 %v329
  %v488 = vpop.f32.mrb[0].mxu0
  %v489 = vadd.f32 %v392, %v488
  %v490 = vpop.f32.mrb[0].mxu0
  %v491 = vpop.f32.mrb[0].mxu0
  %v492 = vadd.f32 %v395, %v491
  %v493 = vpop.f32.mrb[0].mxu0
  %494 = vmatprep.mubr.bf16.mxu0 0
  %495 = vmatmul.mubr.bf16.gmra.mrb[0].mxu0 %v332
  %v496 = vpop.f32.mrb[0].mxu0
  %v497 = vadd.f32 %v400, %v496
  %v498 = vpop.f32.mrb[0].mxu0
  %v499 = vpop.f32.mrb[0].mxu0
  %v500 = vadd.f32 %v403, %v499
  %v501 = vpop.f32.mrb[0].mxu0
  %502 = vmatprep.mubr.bf16.mxu0 0
  %503 = vmatmul.mubr.bf16.gmra.mrb[0].mxu0 %v335
  %v504 = vpop.f32.mrb[0].mxu0
  %v505 = vadd.f32 %v408, %v504
  %v506 = vpop.f32.mrb[0].mxu0
  %v507 = vpop.f32.mrb[0].mxu0
  %v508 = vadd.f32 %v411, %v507
  %v509 = vpop.f32.mrb[0].mxu0
  %510 = vmatprep.mubr.bf16.mxu0 0
  %511 = vmatmul.mubr.bf16.gmra.mrb[0].mxu0 %v338
  %v512 = vpop.f32.mrb[0].mxu0
  %v513 = vadd.f32 %v416, %v512
  %v514 = vpop.f32.mrb[0].mxu0
  %v515 = vpop.f32.mrb[0].mxu0
  %v516 = vadd.f32 %v419, %v515
  %v517 = vpop.f32.mrb[0].mxu0
  %518 = vmatprep.mubr.bf16.mxu0 0
  %519 = vmatmul.mubr.bf16.gmra.mrb[0].mxu0 %v341
  %v520 = vpop.f32.mrb[0].mxu0
  %v521 = vadd.f32 %v424, %v520
  %v522 = vpop.f32.mrb[0].mxu0
  %v523 = vpop.f32.mrb[0].mxu0
  %v524 = vadd.f32 %v427, %v523
  %v525 = vpop.f32.mrb[0].mxu0
  %526 = vmatprep.mubr.bf16.mxu0 0
  %527 = vmatmul.mubr.bf16.gmra.mrb[0].mxu0 %v344
  %v528 = vpop.f32.mrb[0].mxu0
  %v529 = vadd.f32 %v432, %v528
  %v530 = vpop.f32.mrb[0].mxu0
  %v531 = vpop.f32.mrb[0].mxu0
  %v532 = vadd.f32 %v435, %v531
  %v533 = vpop.f32.mrb[0].mxu0
  %534 = vmatprep.mubr.bf16.mxu0 0
  %535 = vmatmul.mubr.bf16.gmra.mrb[0].mxu0 %v347
  %v536 = vpop.f32.mrb[0].mxu0
  %v537 = vadd.f32 %v440, %v536
  %v538 = vpop.f32.mrb[0].mxu0
  %v539 = vpop.f32.mrb[0].mxu0
  %v540 = vadd.f32 %v443, %v539
  %v541 = vpop.f32.mrb[0].mxu0
  %542 = vdwg.mxu0
  %vm543 = vcmask 523264
  %v544 = vsel %vm543, %v481, 0.0
  %v545 = vsel %vm543, %v484, 0.0
  %v546 = vadd.f32 %v544, %v545
  %v547 = vsel %vm543, %v489, 0.0
  %v548 = vadd.f32 %v546, %v547
  %v549 = vsel %vm543, %v492, 0.0
  %v550 = vadd.f32 %v548, %v549
  %v551 = vsel %vm543, %v497, 0.0
  %v552 = vadd.f32 %v550, %v551
  %v553 = vsel %vm543, %v500, 0.0
  %v554 = vadd.f32 %v552, %v553
  %v555 = vsel %vm543, %v505, 0.0
  %v556 = vadd.f32 %v554, %v555
  %v557 = vsel %vm543, %v508, 0.0
  %v558 = vadd.f32 %v556, %v557
  %v559 = vsel %vm543, %v513, 0.0
  %v560 = vadd.f32 %v558, %v559
  %v561 = vsel %vm543, %v516, 0.0
  %v562 = vadd.f32 %v560, %v561
  %v563 = vsel %vm543, %v521, 0.0
  %v564 = vadd.f32 %v562, %v563
  %v565 = vsel %vm543, %v524, 0.0
  %v566 = vadd.f32 %v564, %v565
  %v567 = vsel %vm543, %v529, 0.0
  %v568 = vadd.f32 %v566, %v567
  %v569 = vsel %vm543, %v532, 0.0
  %v570 = vadd.f32 %v568, %v569
  %v571 = vsel %vm543, %v537, 0.0
  %v572 = vadd.f32 %v570, %v571
  %v573 = vsel %vm543, %v540, 0.0
  %v574 = vadd.f32 %v572, %v573
  %v575 = vrot.slane %v574, 4
  %v576 = vadd.f32 %v574, %v575
  %v577 = vrot.slane %v576, 2
  %v578 = vadd.f32 %v576, %v577
  %v579 = vrot.slane %v578, 1
  %v580 = vadd.f32 %v578, %v579
  %v581 = vmul.f32 %v481, %v481
  %v582 = vmul.f32 %v484, %v484
  %v583 = vmul.f32 %v489, %v489
  %v584 = vmul.f32 %v492, %v492
  %v585 = vmul.f32 %v497, %v497
  %v586 = vmul.f32 %v500, %v500
  %v587 = vmul.f32 %v505, %v505
  %v588 = vmul.f32 %v508, %v508
  %v589 = vmul.f32 %v513, %v513
  %v590 = vmul.f32 %v516, %v516
  %v591 = vmul.f32 %v521, %v521
  %v592 = vmul.f32 %v524, %v524
  %v593 = vmul.f32 %v529, %v529
  %v594 = vmul.f32 %v532, %v532
  %v595 = vmul.f32 %v537, %v537
  %v596 = vmul.f32 %v540, %v540
  %v597 = vsel %vm543, %v581, 0.0
  %v598 = vsel %vm543, %v582, 0.0
  %v599 = vadd.f32 %v597, %v598
  %v600 = vsel %vm543, %v583, 0.0
  %v601 = vadd.f32 %v599, %v600
  %v602 = vsel %vm543, %v584, 0.0
  %v603 = vadd.f32 %v601, %v602
  %v604 = vsel %vm543, %v585, 0.0
  %v605 = vadd.f32 %v603, %v604
  %v606 = vsel %vm543, %v586, 0.0
  %v607 = vadd.f32 %v605, %v606
  %v608 = vsel %vm543, %v587, 0.0
  %v609 = vadd.f32 %v607, %v608
  %v610 = vsel %vm543, %v588, 0.0
  %v611 = vadd.f32 %v609, %v610
  %v612 = vsel %vm543, %v589, 0.0
  %v613 = vadd.f32 %v611, %v612
  %v614 = vsel %vm543, %v590, 0.0
  %v615 = vadd.f32 %v613, %v614
  %v616 = vsel %vm543, %v591, 0.0
  %v617 = vadd.f32 %v615, %v616
  %v618 = vsel %vm543, %v592, 0.0
  %v619 = vadd.f32 %v617, %v618
  %v620 = vsel %vm543, %v593, 0.0
  %v621 = vadd.f32 %v619, %v620
  %v622 = vsel %vm543, %v594, 0.0
  %v623 = vadd.f32 %v621, %v622
  %v624 = vsel %vm543, %v595, 0.0
  %v625 = vadd.f32 %v623, %v624
  %v626 = vsel %vm543, %v596, 0.0
  %v627 = vadd.f32 %v625, %v626
  %v628 = vrot.slane %v627, 4
  %v629 = vadd.f32 %v627, %v628
  %v630 = vrot.slane %v629, 2
  %v631 = vadd.f32 %v629, %v630
  %v632 = vrot.slane %v631, 1
  %v633 = vadd.f32 %v631, %v632
  %635 = vrot.lane.b32.xlu0 %v580, 112
  %v636 = vpop.permute.xlu0 %635
  %v638 = vadd.f32 %v580, %v636
  %640 = vrot.lane.b32.xlu0 %v633, 112
  %v641 = vpop.permute.xlu0 %640
  %v643 = vadd.f32 %v633, %v641
  %644 = vrot.lane.b32.xlu0 %v580, 96
  %v645 = vpop.permute.xlu0 %644
  %v647 = vadd.f32 %v638, %v645
  %648 = vrot.lane.b32.xlu0 %v633, 96
  %v649 = vpop.permute.xlu0 %648
  %v651 = vadd.f32 %v643, %v649
  %652 = vrot.lane.b32.xlu0 %v580, 80
  %v653 = vpop.permute.xlu0 %652
  %v655 = vadd.f32 %v647, %v653
  %656 = vrot.lane.b32.xlu0 %v633, 80
  %v657 = vpop.permute.xlu0 %656
  %v659 = vadd.f32 %v651, %v657
  %v660 = vmul.f32 %v655, 0.001953125
  %v661 = vmul.f32 %v659, 0.001953125
  %v662 = vmul.f32 %v660, %v660
  %v663 = vsub.f32 %v661, %v662
  %v664 = vmax.f32 %v663, 0.0
  %v665 = vld [vmem:[%s3] sm:$0x1]
  %v666 = vadd.f32 %v664, 1e-05
  %v667 = vrsqrt.pop %v666
  %v668 = vmul.f32 %v665, %v667
  %v669 = vld [vmem:[%s4] sm:$0x1]
  %v670 = vmul.f32 %v660, %v668
  %v671 = vsub.f32 %v669, %v670
  %v673 = vlaneseq
  %v674 = vshrl.u32 %v673, 7
  %v675 = vsub.s32 0, %v674
  %v676 = vrot.slane %v668, %v675
  %677 = vrot.lane.b32.xlu0 %v676, 16
  %v678 = vpop.permute.xlu0 %677
  %680 = vrot.lane.b32.xlu0 %v676, 32
  %v681 = vpop.permute.xlu0 %680
  %683 = vrot.lane.b32.xlu0 %v676, 48
  %v684 = vpop.permute.xlu0 %683
  %vm686 = vcmask 130048
  %v687 = vsel %vm686, %v668, %v678
  %v688 = vsel %vm324, %v687, %v681
  %vm689 = vcmask 392192
  %v690 = vsel %vm689, %v688, %v684
  %v692 = vlaneseq
  %v693 = vshrl.u32 %v692, 7
  %v694 = vsub.s32 0, %v693
  %v695 = vrot.slane %v671, %v694
  %696 = vrot.lane.b32.xlu0 %v695, 16
  %v697 = vpop.permute.xlu0 %696
  %699 = vrot.lane.b32.xlu0 %v695, 32
  %v700 = vpop.permute.xlu0 %699
  %702 = vrot.lane.b32.xlu0 %v695, 48
  %v703 = vpop.permute.xlu0 %702
  %v705 = vsel %vm686, %v671, %v697
  %v706 = vsel %vm324, %v705, %v700
  %v707 = vsel %vm689, %v706, %v703
  %v708 = vlaneseq
  %v709 = vshrl.u32 %v708, 7
  %v710 = vsub.s32 0, %v709
  %v711 = vrot.slane %v690, %v710
  %v712 = vmul.f32 %v481, %v711
  %v713 = vmul.f32 %v484, %v711
  %v714 = vmul.f32 %v489, %v711
  %v715 = vmul.f32 %v492, %v711
  %v716 = vmul.f32 %v497, %v711
  %v717 = vmul.f32 %v500, %v711
  %v718 = vmul.f32 %v505, %v711
  %v719 = vmul.f32 %v508, %v711
  %v720 = vmul.f32 %v513, %v711
  %v721 = vmul.f32 %v516, %v711
  %v722 = vmul.f32 %v521, %v711
  %v723 = vmul.f32 %v524, %v711
  %v724 = vmul.f32 %v529, %v711
  %v725 = vmul.f32 %v532, %v711
  %v726 = vmul.f32 %v537, %v711
  %v727 = vmul.f32 %v540, %v711
  %v728 = vlaneseq
  %v729 = vshrl.u32 %v728, 7
  %v730 = vsub.s32 0, %v729
  %v731 = vrot.slane %v707, %v730
  %v732 = vadd.f32 %v712, %v731
  %v733 = vadd.f32 %v713, %v731
  %v734 = vadd.f32 %v714, %v731
  %v735 = vadd.f32 %v715, %v731
  %v736 = vadd.f32 %v716, %v731
  %v737 = vadd.f32 %v717, %v731
  %v738 = vadd.f32 %v718, %v731
  %v739 = vadd.f32 %v719, %v731
  %v740 = vadd.f32 %v720, %v731
  %v741 = vadd.f32 %v721, %v731
  %v742 = vadd.f32 %v722, %v731
  %v743 = vadd.f32 %v723, %v731
  %v744 = vadd.f32 %v724, %v731
  %v745 = vadd.f32 %v725, %v731
  %v746 = vadd.f32 %v726, %v731
  %v747 = vadd.f32 %v727, %v731
  %v748 = vmax.f32 %v732, 0.0
  %v749 = vmax.f32 %v733, 0.0
  %v750 = vmax.f32 %v734, 0.0
  %v751 = vmax.f32 %v735, 0.0
  %v752 = vmax.f32 %v736, 0.0
  %v753 = vmax.f32 %v737, 0.0
  %v754 = vmax.f32 %v738, 0.0
  %v755 = vmax.f32 %v739, 0.0
  %v756 = vmax.f32 %v740, 0.0
  %v757 = vmax.f32 %v741, 0.0
  %v758 = vmax.f32 %v742, 0.0
  %v759 = vmax.f32 %v743, 0.0
  %v760 = vmax.f32 %v744, 0.0
  %v761 = vmax.f32 %v745, 0.0
  %v762 = vmax.f32 %v746, 0.0
  %v763 = vmax.f32 %v747, 0.0
  %v764 = vpack.c.bf16 %v749, %v748
  %v765 = vpack.c.bf16 %v751, %v750
  %v766 = vpack.c.bf16 %v753, %v752
  %v767 = vpack.c.bf16 %v755, %v754
  %v768 = vpack.c.bf16 %v757, %v756
  %v769 = vpack.c.bf16 %v759, %v758
  %v770 = vpack.c.bf16 %v761, %v760
  %v771 = vpack.c.bf16 %v763, %v762
  %v780 = vunpack.c.l.b16 %v764
  %v781 = vunpack.c.h.b16 %v764
  %v782 = vunpack.c.l.b16 %v765
  %v783 = vunpack.c.h.b16 %v765
  %v784 = vunpack.c.l.b16 %v766
  %v785 = vunpack.c.h.b16 %v766
  %v786 = vunpack.c.l.b16 %v767
  %v787 = vunpack.c.h.b16 %v767
  %v788 = vunpack.c.l.b16 %v768
  %v789 = vunpack.c.h.b16 %v768
  %v790 = vunpack.c.l.b16 %v769
  %v791 = vunpack.c.h.b16 %v769
  %v792 = vunpack.c.l.b16 %v770
  %v793 = vunpack.c.h.b16 %v770
  %v794 = vunpack.c.l.b16 %v771
  %v795 = vunpack.c.h.b16 %v771
  %v796 = vpack.c.b16 %v780, %v780
  %v797 = vpack.c.b16 %v781, %v781
  %v798 = vpack.c.b16 %v782, %v782
  %v799 = vpack.c.b16 %v783, %v783
  %v800 = vpack.c.b16 %v784, %v784
  %v801 = vpack.c.b16 %v785, %v785
  %v802 = vpack.c.b16 %v786, %v786
  %v803 = vpack.c.b16 %v787, %v787
  %v804 = vpack.c.b16 %v788, %v788
  %v805 = vpack.c.b16 %v789, %v789
  %v806 = vpack.c.b16 %v790, %v790
  %v807 = vpack.c.b16 %v791, %v791
  %v808 = vpack.c.b16 %v792, %v792
  %v809 = vpack.c.b16 %v793, %v793
  %v810 = vpack.c.b16 %v794, %v794
  %v811 = vpack.c.b16 %v795, %v795
  %vm828 = vcmask 519168
  %829 = vst.msk [vmem:[%s5] sm:$0xf] %vm828, %v796
  %830 = vst.msk [vmem:[%s5 + $0x4] sm:$0xf] %vm828, %v797
  %831 = vst.msk [vmem:[%s5 + $0x8] sm:$0xf] %vm828, %v798
  %832 = vst.msk [vmem:[%s5 + $0xc] sm:$0xf] %vm828, %v799
  %833 = vst.msk [vmem:[%s5 + $0x10] sm:$0xf] %vm828, %v800
  %834 = vst.msk [vmem:[%s5 + $0x14] sm:$0xf] %vm828, %v801
  %835 = vst.msk [vmem:[%s5 + $0x18] sm:$0xf] %vm828, %v802
  %836 = vst.msk [vmem:[%s5 + $0x1c] sm:$0xf] %vm828, %v803
  %837 = vst.msk [vmem:[%s5 + $0x20] sm:$0xf] %vm828, %v804
  %838 = vst.msk [vmem:[%s5 + $0x24] sm:$0xf] %vm828, %v805
  %839 = vst.msk [vmem:[%s5 + $0x28] sm:$0xf] %vm828, %v806
  %840 = vst.msk [vmem:[%s5 + $0x2c] sm:$0xf] %vm828, %v807
  %841 = vst.msk [vmem:[%s5 + $0x30] sm:$0xf] %vm828, %v808
  %842 = vst.msk [vmem:[%s5 + $0x34] sm:$0xf] %vm828, %v809
  %843 = vst.msk [vmem:[%s5 + $0x38] sm:$0xf] %vm828, %v810
  %844 = vst.msk [vmem:[%s5 + $0x3c] sm:$0xf] %vm828, %v811
  // Predicated region
  $region22: #{ae_forward.12} parent=0 // pred_check
    _
  $region23: #{ae_forward.12} parent=0 // pred_check_branch
    %846 = sbr.rel (0) target = $region25
  $region24: #{ae_forward.12} parent=0 // pred_region
    _
  $region25: #{ae_forward.12} parent=0 // pred_fallthru
    _
  // Predicated region
  $region26: #{ae_forward.12} parent=0 // pred_check
    _
  $region27: #{ae_forward.12} parent=0 // pred_check_branch
    %848 = sbr.rel (0) target = $region29
  $region28: #{ae_forward.12} parent=0 // pred_region
    _
  $region29: #{ae_forward.12} parent=0 // pred_fallthru
    _

// kernel: ae_forward.13
$region0: #{ae_forward.13}
  #allocation0 [shape = 'u32[]', space=smem, size = 0x4, offset = 0x4, fixed_abs, tag = 'smem constant byte address 0x4 - core index']
  #allocation1 [shape = 'u32[144,128]{1,0:T(1,128)}', space=vmem, size = 0x12000, scoped, tag = 'internal scratch']
  %s0 = inlined_call_operand.vmem [shape: f32[512,144], index: 0, kind: input, shape index: {}]
  %s1 = inlined_call_operand.vmem [shape: f32[144,12], index: 1, kind: input, shape index: {}]
  %s2 = inlined_call_operand.vmem [shape: f32[1,12], index: 2, kind: input, shape index: {}]
  %s3 = inlined_call_operand.vmem [shape: f32[512,12], index: 3, kind: output, shape index: {}]
  %s4 = sld [smem:[#allocation0]]
  $region45: #{ae_forward.13} parent=0
    _
  %s6 = ssub.s32 1, %s4
  %s7 = scalar_select 0, %s6, %s4
  loop: start=0, step=1, limit=4
  $region2: #{ae_forward.13} parent=0 // loop_pre_header
    _
  $region3: #{ae_forward.13} parent=0 // loop_header
    %s9 = sphi 0, %s13
    %p10 = scmp.ge.s32.totalorder %s9, 4
    %s19 = sphi 0, %s21
    %s22 = sphi 0, %s19
    %s23 = sphi 0, %s22
    %s39 = sphi 0, %s23
    %s43 = sphi 0, %s43
    %s45 = sphi 0, %s43
    %s46 = sphi 0, %s45
    %s60 = sphi 0, %s46
    %s64 = sphi 0, %s64
    %s66 = sphi 0, %s64
    %s67 = sphi 0, %s66
    %s81 = sphi 0, %s67
    %s87 = sphi 0, %s89
    %s90 = sphi 0, %s87
    %s91 = sphi 0, %s90
    %s107 = sphi 0, %s91
  $region4: #{ae_forward.13} parent=0 // loop_header_branch
    %12 = sbr.rel (%p10) target = $region8
  $region5: #{ae_forward.13} parent=0 // loop_body
    %s14 = ssub.s32 %s9, 1
    %s15 = ssub.s32 %s9, 2
    %s16 = sadd.s32 %s9, 1
    %s17 = ssub.s32 %s9, %s16
    %p18 = scmp.eq.s32.totalorder %s17, 0
    %s20 = sadd.s32 %s19, 1
    %s21 = scalar_select %p18, %s19, %s20
    %p24 = pneg %p18
    %p25 = scmp.eq.s32.totalorder %s9, 1
    %p26 = por %p24, %p25
    %p27 = scmp.ne.s32.totalorder %s19, %s22
    %p28 = scmp.eq.s32.totalorder %s9, 0
    %p29 = por %p27, %p28
    %p30 = scmp.ne.s32.totalorder %s19, %s22
    %p31 = scmp.eq.s32.totalorder %s14, 1
    %p32 = por %p30, %p31
    %p33 = scmp.ne.s32.totalorder %s22, %s23
    %p34 = scmp.eq.s32.totalorder %s14, 0
    %p35 = por %p33, %p34
    %p36 = scmp.ne.s32.totalorder %s22, %s23
    %p37 = scmp.eq.s32.totalorder %s15, 1
    %p38 = por %p36, %p37
    %p40 = scmp.ne.s32.totalorder %s23, %s39
    %p41 = scmp.eq.s32.totalorder %s15, 0
    %p42 = por %p40, %p41
    %s44 = sadd.s32 %s43, 1
    %p47 = scmp.eq.s32.totalorder %s9, 1
    %p48 = scmp.ne.s32.totalorder %s43, %s45
    %p49 = scmp.eq.s32.totalorder %s9, 0
    %p50 = por %p48, %p49
    %p51 = scmp.ne.s32.totalorder %s43, %s45
    %p52 = scmp.eq.s32.totalorder %s14, 1
    %p53 = por %p51, %p52
    %p54 = scmp.ne.s32.totalorder %s45, %s46
    %p55 = scmp.eq.s32.totalorder %s14, 0
    %p56 = por %p54, %p55
    %p57 = scmp.ne.s32.totalorder %s45, %s46
    %p58 = scmp.eq.s32.totalorder %s15, 1
    %p59 = por %p57, %p58
    %p61 = scmp.ne.s32.totalorder %s46, %s60
    %p62 = scmp.eq.s32.totalorder %s15, 0
    %p63 = por %p61, %p62
    %s65 = sadd.s32 %s64, 1
    %p68 = scmp.eq.s32.totalorder %s9, 1
    %p69 = scmp.ne.s32.totalorder %s64, %s66
    %p70 = scmp.eq.s32.totalorder %s9, 0
    %p71 = por %p69, %p70
    %p72 = scmp.ne.s32.totalorder %s64, %s66
    %p73 = scmp.eq.s32.totalorder %s14, 1
    %p74 = por %p72, %p73
    %p75 = scmp.ne.s32.totalorder %s66, %s67
    %p76 = scmp.eq.s32.totalorder %s14, 0
    %p77 = por %p75, %p76
    %p78 = scmp.ne.s32.totalorder %s66, %s67
    %p79 = scmp.eq.s32.totalorder %s15, 1
    %p80 = por %p78, %p79
    %p82 = scmp.ne.s32.totalorder %s67, %s81
    %p83 = scmp.eq.s32.totalorder %s15, 0
    %p84 = por %p82, %p83
    %s85 = ssub.s32 %s9, %s16
    %p86 = scmp.eq.s32.totalorder %s85, 0
    %s88 = sadd.s32 %s87, 1
    %s89 = scalar_select %p86, %s87, %s88
    %p92 = pneg %p86
    %p93 = scmp.eq.s32.totalorder %s9, 1
    %p94 = por %p92, %p93
    %p95 = scmp.ne.s32.totalorder %s87, %s90
    %p96 = scmp.eq.s32.totalorder %s9, 0
    %p97 = por %p95, %p96
    %p98 = scmp.ne.s32.totalorder %s87, %s90
    %p99 = scmp.eq.s32.totalorder %s14, 1
    %p100 = por %p98, %p99
    %p101 = scmp.ne.s32.totalorder %s90, %s91
    %p102 = scmp.eq.s32.totalorder %s14, 0
    %p103 = por %p101, %p102
    %p104 = scmp.ne.s32.totalorder %s90, %s91
    %p105 = scmp.eq.s32.totalorder %s15, 1
    %p106 = por %p104, %p105
    %p108 = scmp.ne.s32.totalorder %s91, %s107
    %p109 = scmp.eq.s32.totalorder %s15, 0
    %p110 = por %p108, %p109
    %p111 = scmp.le.s32.totalorder 1, %s9
    %p112 = scmp.lt.s32.totalorder %s9, 3
    %p113 = pnand %p111, %p112
    %p114 = pneg %p113
    // Predicated region
    $region9: #{ae_forward.13} parent=5 // pred_check
      _
    $region10: #{ae_forward.13} parent=5 // pred_check_branch
      %116 = sbr.rel (%p113) target = $region12
    $region11: #{ae_forward.13} parent=5 // pred_region
      %s117 = ssub.s32 %s9, 1
      // Predicated region
      $region13: #{ae_forward.13} parent=11 // pred_check
        %p118 = pneg %p56
      $region14: #{ae_forward.13} parent=11 // pred_check_branch
        %120 = sbr.rel (%p118) target = $region16
      $region15: #{ae_forward.13} parent=11 // pred_region
        _
      $region16: #{ae_forward.13} parent=11 // pred_fallthru
        _
      // Predicated region
      $region17: #{ae_forward.13} parent=11 // pred_check
        %p121 = pneg %p77
      $region18: #{ae_forward.13} parent=11 // pred_check_branch
        %123 = sbr.rel (%p121) target = $region20
      $region19: #{ae_forward.13} parent=11 // pred_region
        _
      $region20: #{ae_forward.13} parent=11 // pred_fallthru
        _
    $region12: #{ae_forward.13} parent=5 // pred_fallthru
      _
    %p124 = scmp.lt.s32.totalorder %s9, 2
    // Predicated region
    $region21: #{ae_forward.13} parent=5 // pred_check
      %p125 = pneg %p124
    $region22: #{ae_forward.13} parent=5 // pred_check_branch
      %127 = sbr.rel (%p125) target = $region24
    $region23: #{ae_forward.13} parent=5 // pred_region
      // Predicated region
      $region25: #{ae_forward.13} parent=23 // pred_check
        %p128 = pneg %p29
      $region26: #{ae_forward.13} parent=23 // pred_check_branch
        %130 = sbr.rel (%p128) target = $region28
      $region27: #{ae_forward.13} parent=23 // pred_region
        %s131 = smul.u32 32, %s9
        %p132 = scmp.lt.s32.totalorder %s131, 63
        %s133 = scalar_select %p132, %s131, 63
        %s134 = smul.addr %s133, 2
        %s135 = smul.addr %s134, 8
        %s136 = scalar_lea.vmem %s0, %s135
        %s137 = smul.u32 32, %s9
      $region28: #{ae_forward.13} parent=23 // pred_fallthru
        _
    $region24: #{ae_forward.13} parent=5 // pred_fallthru
      _
    %p138 = scmp.le.s32.totalorder 1, %s9
    %p139 = scmp.lt.s32.totalorder %s9, 3
    %p140 = pnand %p138, %p139
    %p141 = pneg %p140
    // Predicated region
    $region29: #{ae_forward.13} parent=5 // pred_check
      _
    $region30: #{ae_forward.13} parent=5 // pred_check_branch
      %143 = sbr.rel (%p140) target = $region32
    $region31: #{ae_forward.13} parent=5 // pred_region
      %s144 = ssub.s32 %s9, 1
      %s145 = smul.u32 32, %s14
      %p146 = scmp.lt.s32.totalorder %s145, 63
      %s147 = scalar_select %p146, %s145, 63
      %s148 = smul.addr %s147, 2
      %s149 = smul.addr %s148, 8
      %s150 = scalar_lea.vmem %s0, %s149
      %p151 = pneg %p35
      %p152 = pneg %p32
      %p153 = pneg %p56
      %p154 = pneg %p53
      %p155 = pneg %p77
      %p156 = pneg %p74
      %p157 = pneg %p103
      %p158 = pneg %p100
      %s159 = smul.u32 32, %s14
      %p160 = scmp.lt.s32.totalorder %s159, 63
      %s161 = scalar_select %p160, %s159, 63
      %s162 = smul.addr %s161, 8
      %s163 = scalar_lea.vmem %s3, %s162
      %s164 = smul.u32 32, %s14
      %p165 = scmp.lt.s32.totalorder %s164, 63
      %s166 = scalar_select %p165, %s164, 63
      %s167 = smul.addr %s166, 2
      %s168 = smul.addr %s167, 8
      %s169 = scalar_lea.vmem %s0, %s168
      %s170 = smul.u32 32, %s14
      %s171 = smul.u32 32, %s14
      %p172 = scmp.lt.s32.totalorder %s171, 63
      %s173 = scalar_select %p172, %s171, 63
      %s174 = smul.addr %s173, 8
      %s175 = scalar_lea.vmem %s3, %s174
      %s176 = smul.u32 32, %s14
      %v177 = vld [vmem:[%s169] sm:$0xff]
      %v178 = vld [vmem:[%s169 + $0x8] sm:$0xff]
      %v179 = vld [vmem:[%s169 + $0x10] sm:$0xff]
      %v180 = vld [vmem:[%s169 + $0x18] sm:$0xff]
      %v181 = vld [vmem:[%s169 + $0x20] sm:$0xff]
      %v182 = vld [vmem:[%s169 + $0x28] sm:$0xff]
      %v183 = vld [vmem:[%s169 + $0x30] sm:$0xff]
      %v184 = vld [vmem:[%s169 + $0x38] sm:$0xff]
      %v185 = vld [vmem:[%s169 + $0x40] sm:$0xff]
      %v186 = vld [vmem:[%s169 + $0x48] sm:$0xff]
      %v187 = vld [vmem:[%s169 + $0x50] sm:$0xff]
      %v188 = vld [vmem:[%s169 + $0x58] sm:$0xff]
      %v189 = vld [vmem:[%s169 + $0x60] sm:$0xff]
      %v190 = vld [vmem:[%s169 + $0x68] sm:$0xff]
      %v191 = vld [vmem:[%s169 + $0x70] sm:$0xff]
      %v192 = vld [vmem:[%s169 + $0x78] sm:$0xff]
      %v193 = vld [vmem:[%s169 + $0x80] sm:$0xff]
      %v194 = vld [vmem:[%s169 + $0x88] sm:$0xff]
      %v195 = vld [vmem:[%s169 + $0x90] sm:$0xff]
      %v196 = vld [vmem:[%s169 + $0x98] sm:$0xff]
      %v197 = vld [vmem:[%s169 + $0xa0] sm:$0xff]
      %v198 = vld [vmem:[%s169 + $0xa8] sm:$0xff]
      %v199 = vld [vmem:[%s169 + $0xb0] sm:$0xff]
      %v200 = vld [vmem:[%s169 + $0xb8] sm:$0xff]
      %v201 = vld [vmem:[%s169 + $0xc0] sm:$0xff]
      %v202 = vld [vmem:[%s169 + $0xc8] sm:$0xff]
      %v203 = vld [vmem:[%s169 + $0xd0] sm:$0xff]
      %v204 = vld [vmem:[%s169 + $0xd8] sm:$0xff]
      %v205 = vld [vmem:[%s169 + $0xe0] sm:$0xff]
      %v206 = vld [vmem:[%s169 + $0xe8] sm:$0xff]
      %v207 = vld [vmem:[%s169 + $0xf0] sm:$0xff]
      %v208 = vld [vmem:[%s169 + $0xf8] sm:$0xff]
      %v209 = vld [vmem:[%s169 + $0x100] sm:$0xff]
      %v210 = vld [vmem:[%s169 + $0x108] sm:$0xff]
      %v211 = vld [vmem:[%s169 + $0x110] sm:$0xff]
      %v212 = vld [vmem:[%s169 + $0x118] sm:$0xff]
      %v213 = vld [vmem:[%s169 + $0x120] sm:$0xff]
      %v214 = vld [vmem:[%s169 + $0x128] sm:$0xff]
      %v215 = vld [vmem:[%s169 + $0x130] sm:$0xff]
      %v216 = vld [vmem:[%s169 + $0x138] sm:$0xff]
      %v217 = vld [vmem:[%s169 + $0x140] sm:$0xff]
      %v218 = vld [vmem:[%s169 + $0x148] sm:$0xff]
      %v219 = vld [vmem:[%s169 + $0x150] sm:$0xff]
      %v220 = vld [vmem:[%s169 + $0x158] sm:$0xff]
      %v221 = vld [vmem:[%s169 + $0x160] sm:$0xff]
      %v222 = vld [vmem:[%s169 + $0x168] sm:$0xff]
      %v223 = vld [vmem:[%s169 + $0x170] sm:$0xff]
      %v224 = vld [vmem:[%s169 + $0x178] sm:$0xff]
      %v225 = vld [vmem:[%s169 + $0x180] sm:$0xff]
      %v226 = vld [vmem:[%s169 + $0x188] sm:$0xff]
      %v227 = vld [vmem:[%s169 + $0x190] sm:$0xff]
      %v228 = vld [vmem:[%s169 + $0x198] sm:$0xff]
      %v229 = vld [vmem:[%s169 + $0x1a0] sm:$0xff]
      %v230 = vld [vmem:[%s169 + $0x1a8] sm:$0xff]
      %v231 = vld [vmem:[%s169 + $0x1b0] sm:$0xff]
      %v232 = vld [vmem:[%s169 + $0x1b8] sm:$0xff]
      %v233 = vld [vmem:[%s169 + $0x1c0] sm:$0xff]
      %v234 = vld [vmem:[%s169 + $0x1c8] sm:$0xff]
      %v235 = vld [vmem:[%s169 + $0x1d0] sm:$0xff]
      %v236 = vld [vmem:[%s169 + $0x1d8] sm:$0xff]
      %v237 = vld [vmem:[%s169 + $0x1e0] sm:$0xff]
      %v238 = vld [vmem:[%s169 + $0x1e8] sm:$0xff]
      %v239 = vld [vmem:[%s169 + $0x1f0] sm:$0xff]
      %v240 = vld [vmem:[%s169 + $0x1f8] sm:$0xff]
      %v241 = vld [vmem:[%s1] sm:$0xff]
      %v242 = vld [vmem:[%s1 + $0x8] sm:$0xff]
      %v243 = vld [vmem:[%s1 + $0x10] sm:$0xff]
      %v244 = vld [vmem:[%s1 + $0x18] sm:$0xff]
      %v245 = vld [vmem:[%s1 + $0x20] sm:$0xff]
      %v246 = vld [vmem:[%s1 + $0x28] sm:$0xff]
      %v247 = vld [vmem:[%s1 + $0x30] sm:$0xff]
      %v248 = vld [vmem:[%s1 + $0x38] sm:$0xff]
      %v249 = vld [vmem:[%s1 + $0x40] sm:$0xff]
      %v250 = vld [vmem:[%s1 + $0x48] sm:$0xff]
      %v251 = vld [vmem:[%s1 + $0x50] sm:$0xff]
      %v252 = vld [vmem:[%s1 + $0x58] sm:$0xff]
      %v253 = vld [vmem:[%s1 + $0x60] sm:$0xff]
      %v254 = vld [vmem:[%s1 + $0x68] sm:$0xff]
      %v255 = vld [vmem:[%s1 + $0x70] sm:$0xff]
      %v256 = vld [vmem:[%s1 + $0x78] sm:$0xff]
      %v257 = vld [vmem:[%s1 + $0x80] sm:$0xff]
      %v258 = vld [vmem:[%s1 + $0x88] sm:$0xff]
      %v259 = vld [vmem:[%s2] sm:$0x1]
      %v261 = vlaneseq
      %v262 = vshrl.u32 %v261, 7
      %v263 = vsub.s32 0, %v262
      %v264 = vrot.slane %v259, %v263
      %vm266 = vcmask 130048
      %v268 = vsel %vm266, %v178, 0
      %v271 = vsel %vm266, %v180, 0
      %v274 = vsel %vm266, %v182, 0
      %v277 = vsel %vm266, %v184, 0
      %v280 = vsel %vm266, %v186, 0
      %v283 = vsel %vm266, %v188, 0
      %v286 = vsel %vm266, %v190, 0
      %v289 = vsel %vm266, %v192, 0
      %v292 = vsel %vm266, %v194, 0
      %v295 = vsel %vm266, %v196, 0
      %v298 = vsel %vm266, %v198, 0
      %v301 = vsel %vm266, %v200, 0
      %v304 = vsel %vm266, %v202, 0
      %v307 = vsel %vm266, %v204, 0
      %v310 = vsel %vm266, %v206, 0
      %v313 = vsel %vm266, %v208, 0
      %v316 = vsel %vm266, %v210, 0
      %v319 = vsel %vm266, %v212, 0
      %v322 = vsel %vm266, %v214, 0
      %v325 = vsel %vm266, %v216, 0
      %v328 = vsel %vm266, %v218, 0
      %v331 = vsel %vm266, %v220, 0
      %v334 = vsel %vm266, %v222, 0
      %v337 = vsel %vm266, %v224, 0
      %v340 = vsel %vm266, %v226, 0
      %v343 = vsel %vm266, %v228, 0
      %v346 = vsel %vm266, %v230, 0
      %v349 = vsel %vm266, %v232, 0
      %v352 = vsel %vm266, %v234, 0
      %v355 = vsel %vm266, %v236, 0
      %v358 = vsel %vm266, %v238, 0
      %v361 = vsel %vm266, %v240, 0
      %363 = vmatprep.subr.mxu0 0.0
      %364 = vmatpush1.msra.mxu0 %v241
      %365 = vmatprep.subr.mxu0 0.0
      %366 = vmatpush1.msra.mxu0 %v242
      %367 = vmatprep.subr.mxu0 0.0
      %368 = vmatpush1.msra.mxu0 %v243
      %369 = vmatprep.subr.mxu0 0.0
      %370 = vmatpush1.msra.mxu0 %v244
      %371 = vmatprep.subr.mxu0 0.0
      %372 = vmatpush1.msra.mxu0 %v245
      %373 = vmatprep.subr.mxu0 0.0
      %374 = vmatpush1.msra.mxu0 %v246
      %375 = vmatprep.subr.mxu0 0.0
      %376 = vmatpush1.msra.mxu0 %v247
      %377 = vmatprep.subr.mxu0 0.0
      %378 = vmatpush1.msra.mxu0 %v248
      %379 = vmatprep.subr.mxu0 0.0
      %380 = vmatpush1.msra.mxu0 %v249
      %381 = vmatprep.subr.mxu0 0.0
      %382 = vmatpush1.msra.mxu0 %v250
      %383 = vmatprep.subr.mxu0 0.0
      %384 = vmatpush1.msra.mxu0 %v251
      %385 = vmatprep.subr.mxu0 0.0
      %386 = vmatpush1.msra.mxu0 %v252
      %387 = vmatprep.subr.mxu0 0.0
      %388 = vmatpush1.msra.mxu0 %v253
      %389 = vmatprep.subr.mxu0 0.0
      %390 = vmatpush1.msra.mxu0 %v254
      %391 = vmatprep.subr.mxu0 0.0
      %392 = vmatpush1.msra.mxu0 %v255
      %393 = vmatprep.subr.mxu0 0.0
      %394 = vmatpush1.msra.mxu0 %v256
      %395 = vmatprep.subr.mxu0 0.0
      %396 = vmatpush1.msra.mxu0 %v257
      %397 = vmatprep.subr.mxu0 0.0
      %398 = vmatpush1.msra.mxu0 %v258
      %399 = vmatprep.subr.mxu0 0.0
      %400 = vmatpush1.msra.mxu0 0.0
      %401 = vmatprep.subr.mxu0 0.0
      %402 = vmatpush1.msra.mxu0 0.0
      %403 = vmatprep.subr.mxu0 0.0
      %404 = vmatpush1.msra.mxu0 0.0
      %405 = vmatprep.subr.mxu0 0.0
      %406 = vmatpush1.msra.mxu0 0.0
      %407 = vmatprep.subr.mxu0 0.0
      %408 = vmatpush1.msra.mxu0 0.0
      %409 = vmatprep.subr.mxu0 0.0
      %410 = vmatpush1.msra.mxu0 0.0
      %411 = vmatprep.subr.mxu0 0.0
      %412 = vmatpush1.msra.mxu0 0.0
      %413 = vmatprep.subr.mxu0 0.0
      %414 = vmatpush1.msra.mxu0 0.0
      %415 = vmatprep.subr.mxu0 0.0
      %416 = vmatpush1.msra.mxu0 0.0
      %417 = vmatprep.subr.mxu0 0.0
      %418 = vmatpush1.msra.mxu0 0.0
      %419 = vmatprep.subr.mxu0 0.0
      %420 = vmatpush1.msra.mxu0 0.0
      %421 = vmatprep.subr.mxu0 0.0
      %422 = vmatpush1.msra.mxu0 0.0
      %423 = vmatprep.subr.mxu0 0.0
      %424 = vmatpush1.msra.mxu0 0.0
      %425 = vmatprep.subr.mxu0 0.0
      %426 = vmatpush1.msra.mxu0 0.0
      %427 = vmatprep.mubr.f32.mxu0 %v268
      %428 = vmatmul.mubr.f32.gmra.mrb[0].mxu0 %v177
      %v429 = vpop.f32.mrb[0].mxu0
      %v430 = vadd.f32 %v264, %v429
      %v431 = vpop.f32.mrb[0].mxu0
      %432 = vmatprep.mubr.f32.mxu0 %v271
      %433 = vmatmul.mubr.f32.gmra.mrb[0].mxu0 %v179
      %v434 = vpop.f32.mrb[0].mxu0
      %v435 = vadd.f32 %v264, %v434
      %v436 = vpop.f32.mrb[0].mxu0
      %437 = vmatprep.mubr.f32.mxu0 %v274
      %438 = vmatmul.mubr.f32.gmra.mrb[0].mxu0 %v181
      %v439 = vpop.f32.mrb[0].mxu0
      %v440 = vadd.f32 %v264, %v439
      %v441 = vpop.f32.mrb[0].mxu0
      %442 = vmatprep.mubr.f32.mxu0 %v277
      %443 = vmatmul.mubr.f32.gmra.mrb[0].mxu0 %v183
      %v444 = vpop.f32.mrb[0].mxu0
      %v445 = vadd.f32 %v264, %v444
      %v446 = vpop.f32.mrb[0].mxu0
      %447 = vmatprep.mubr.f32.mxu0 %v280
      %448 = vmatmul.mubr.f32.gmra.mrb[0].mxu0 %v185
      %v449 = vpop.f32.mrb[0].mxu0
      %v450 = vadd.f32 %v264, %v449
      %v451 = vpop.f32.mrb[0].mxu0
      %452 = vmatprep.mubr.f32.mxu0 %v283
      %453 = vmatmul.mubr.f32.gmra.mrb[0].mxu0 %v187
      %v454 = vpop.f32.mrb[0].mxu0
      %v455 = vadd.f32 %v264, %v454
      %v456 = vpop.f32.mrb[0].mxu0
      %457 = vmatprep.mubr.f32.mxu0 %v286
      %458 = vmatmul.mubr.f32.gmra.mrb[0].mxu0 %v189
      %v459 = vpop.f32.mrb[0].mxu0
      %v460 = vadd.f32 %v264, %v459
      %v461 = vpop.f32.mrb[0].mxu0
      %462 = vmatprep.mubr.f32.mxu0 %v289
      %463 = vmatmul.mubr.f32.gmra.mrb[0].mxu0 %v191
      %v464 = vpop.f32.mrb[0].mxu0
      %v465 = vadd.f32 %v264, %v464
      %v466 = vpop.f32.mrb[0].mxu0
      %467 = vmatprep.mubr.f32.mxu0 %v292
      %468 = vmatmul.mubr.f32.gmra.mrb[0].mxu0 %v193
      %v469 = vpop.f32.mrb[0].mxu0
      %v470 = vadd.f32 %v264, %v469
      %v471 = vpop.f32.mrb[0].mxu0
      %472 = vmatprep.mubr.f32.mxu0 %v295
      %473 = vmatmul.mubr.f32.gmra.mrb[0].mxu0 %v195
      %v474 = vpop.f32.mrb[0].mxu0
      %v475 = vadd.f32 %v264, %v474
      %v476 = vpop.f32.mrb[0].mxu0
      %477 = vmatprep.mubr.f32.mxu0 %v298
      %478 = vmatmul.mubr.f32.gmra.mrb[0].mxu0 %v197
      %v479 = vpop.f32.mrb[0].mxu0
      %v480 = vadd.f32 %v264, %v479
      %v481 = vpop.f32.mrb[0].mxu0
      %482 = vmatprep.mubr.f32.mxu0 %v301
      %483 = vmatmul.mubr.f32.gmra.mrb[0].mxu0 %v199
      %v484 = vpop.f32.mrb[0].mxu0
      %v485 = vadd.f32 %v264, %v484
      %v486 = vpop.f32.mrb[0].mxu0
      %487 = vmatprep.mubr.f32.mxu0 %v304
      %488 = vmatmul.mubr.f32.gmra.mrb[0].mxu0 %v201
      %v489 = vpop.f32.mrb[0].mxu0
      %v490 = vadd.f32 %v264, %v489
      %v491 = vpop.f32.mrb[0].mxu0
      %492 = vmatprep.mubr.f32.mxu0 %v307
      %493 = vmatmul.mubr.f32.gmra.mrb[0].mxu0 %v203
      %v494 = vpop.f32.mrb[0].mxu0
      %v495 = vadd.f32 %v264, %v494
      %v496 = vpop.f32.mrb[0].mxu0
      %497 = vmatprep.mubr.f32.mxu0 %v310
      %498 = vmatmul.mubr.f32.gmra.mrb[0].mxu0 %v205
      %v499 = vpop.f32.mrb[0].mxu0
      %v500 = vadd.f32 %v264, %v499
      %v501 = vpop.f32.mrb[0].mxu0
      %502 = vmatprep.mubr.f32.mxu0 %v313
      %503 = vmatmul.mubr.f32.gmra.mrb[0].mxu0 %v207
      %v504 = vpop.f32.mrb[0].mxu0
      %v505 = vadd.f32 %v264, %v504
      %v506 = vpop.f32.mrb[0].mxu0
      %507 = vmatprep.mubr.f32.mxu0 %v316
      %508 = vmatmul.mubr.f32.gmra.mrb[0].mxu0 %v209
      %v509 = vpop.f32.mrb[0].mxu0
      %v510 = vadd.f32 %v264, %v509
      %v511 = vpop.f32.mrb[0].mxu0
      %512 = vmatprep.mubr.f32.mxu0 %v319
      %513 = vmatmul.mubr.f32.gmra.mrb[0].mxu0 %v211
      %v514 = vpop.f32.mrb[0].mxu0
      %v515 = vadd.f32 %v264, %v514
      %v516 = vpop.f32.mrb[0].mxu0
      %517 = vmatprep.mubr.f32.mxu0 %v322
      %518 = vmatmul.mubr.f32.gmra.mrb[0].mxu0 %v213
      %v519 = vpop.f32.mrb[0].mxu0
      %v520 = vadd.f32 %v264, %v519
      %v521 = vpop.f32.mrb[0].mxu0
      %522 = vmatprep.mubr.f32.mxu0 %v325
      %523 = vmatmul.mubr.f32.gmra.mrb[0].mxu0 %v215
      %v524 = vpop.f32.mrb[0].mxu0
      %v525 = vadd.f32 %v264, %v524
      %v526 = vpop.f32.mrb[0].mxu0
      %527 = vmatprep.mubr.f32.mxu0 %v328
      %528 = vmatmul.mubr.f32.gmra.mrb[0].mxu0 %v217
      %v529 = vpop.f32.mrb[0].mxu0
      %v530 = vadd.f32 %v264, %v529
      %v531 = vpop.f32.mrb[0].mxu0
      %532 = vmatprep.mubr.f32.mxu0 %v331
      %533 = vmatmul.mubr.f32.gmra.mrb[0].mxu0 %v219
      %v534 = vpop.f32.mrb[0].mxu0
      %v535 = vadd.f32 %v264, %v534
      %v536 = vpop.f32.mrb[0].mxu0
      %537 = vmatprep.mubr.f32.mxu0 %v334
      %538 = vmatmul.mubr.f32.gmra.mrb[0].mxu0 %v221
      %v539 = vpop.f32.mrb[0].mxu0
      %v540 = vadd.f32 %v264, %v539
      %v541 = vpop.f32.mrb[0].mxu0
      %542 = vmatprep.mubr.f32.mxu0 %v337
      %543 = vmatmul.mubr.f32.gmra.mrb[0].mxu0 %v223
      %v544 = vpop.f32.mrb[0].mxu0
      %v545 = vadd.f32 %v264, %v544
      %v546 = vpop.f32.mrb[0].mxu0
      %547 = vmatprep.mubr.f32.mxu0 %v340
      %548 = vmatmul.mubr.f32.gmra.mrb[0].mxu0 %v225
      %v549 = vpop.f32.mrb[0].mxu0
      %v550 = vadd.f32 %v264, %v549
      %v551 = vpop.f32.mrb[0].mxu0
      %552 = vmatprep.mubr.f32.mxu0 %v343
      %553 = vmatmul.mubr.f32.gmra.mrb[0].mxu0 %v227
      %v554 = vpop.f32.mrb[0].mxu0
      %v555 = vadd.f32 %v264, %v554
      %v556 = vpop.f32.mrb[0].mxu0
      %557 = vmatprep.mubr.f32.mxu0 %v346
      %558 = vmatmul.mubr.f32.gmra.mrb[0].mxu0 %v229
      %v559 = vpop.f32.mrb[0].mxu0
      %v560 = vadd.f32 %v264, %v559
      %v561 = vpop.f32.mrb[0].mxu0
      %562 = vmatprep.mubr.f32.mxu0 %v349
      %563 = vmatmul.mubr.f32.gmra.mrb[0].mxu0 %v231
      %v564 = vpop.f32.mrb[0].mxu0
      %v565 = vadd.f32 %v264, %v564
      %v566 = vpop.f32.mrb[0].mxu0
      %567 = vmatprep.mubr.f32.mxu0 %v352
      %568 = vmatmul.mubr.f32.gmra.mrb[0].mxu0 %v233
      %v569 = vpop.f32.mrb[0].mxu0
      %v570 = vadd.f32 %v264, %v569
      %v571 = vpop.f32.mrb[0].mxu0
      %572 = vmatprep.mubr.f32.mxu0 %v355
      %573 = vmatmul.mubr.f32.gmra.mrb[0].mxu0 %v235
      %v574 = vpop.f32.mrb[0].mxu0
      %v575 = vadd.f32 %v264, %v574
      %v576 = vpop.f32.mrb[0].mxu0
      %577 = vmatprep.mubr.f32.mxu0 %v358
      %578 = vmatmul.mubr.f32.gmra.mrb[0].mxu0 %v237
      %v579 = vpop.f32.mrb[0].mxu0
      %v580 = vadd.f32 %v264, %v579
      %v581 = vpop.f32.mrb[0].mxu0
      %582 = vmatprep.mubr.f32.mxu0 %v361
      %583 = vmatmul.mubr.f32.gmra.mrb[0].mxu0 %v239
      %v584 = vpop.f32.mrb[0].mxu0
      %v585 = vadd.f32 %v264, %v584
      %v586 = vpop.f32.mrb[0].mxu0
      %587 = vdwg.mxu0
      %vm588 = vcmask 97280
      %589 = vst.msk [vmem:[%s175] sm:$0xff] %vm588, %v430
      %590 = vst.msk [vmem:[%s175 + $0x8] sm:$0xff] %vm588, %v435
      %591 = vst.msk [vmem:[%s175 + $0x10] sm:$0xff] %vm588, %v440
      %592 = vst.msk [vmem:[%s175 + $0x18] sm:$0xff] %vm588, %v445
      %593 = vst.msk [vmem:[%s175 + $0x20] sm:$0xff] %vm588, %v450
      %594 = vst.msk [vmem:[%s175 + $0x28] sm:$0xff] %vm588, %v455
      %595 = vst.msk [vmem:[%s175 + $0x30] sm:$0xff] %vm588, %v460
      %596 = vst.msk [vmem:[%s175 + $0x38] sm:$0xff] %vm588, %v465
      %597 = vst.msk [vmem:[%s175 + $0x40] sm:$0xff] %vm588, %v470
      %598 = vst.msk [vmem:[%s175 + $0x48] sm:$0xff] %vm588, %v475
      %599 = vst.msk [vmem:[%s175 + $0x50] sm:$0xff] %vm588, %v480
      %600 = vst.msk [vmem:[%s175 + $0x58] sm:$0xff] %vm588, %v485
      %601 = vst.msk [vmem:[%s175 + $0x60] sm:$0xff] %vm588, %v490
      %602 = vst.msk [vmem:[%s175 + $0x68] sm:$0xff] %vm588, %v495
      %603 = vst.msk [vmem:[%s175 + $0x70] sm:$0xff] %vm588, %v500
      %604 = vst.msk [vmem:[%s175 + $0x78] sm:$0xff] %vm588, %v505
      %605 = vst.msk [vmem:[%s175 + $0x80] sm:$0xff] %vm588, %v510
      %606 = vst.msk [vmem:[%s175 + $0x88] sm:$0xff] %vm588, %v515
      %607 = vst.msk [vmem:[%s175 + $0x90] sm:$0xff] %vm588, %v520
      %608 = vst.msk [vmem:[%s175 + $0x98] sm:$0xff] %vm588, %v525
      %609 = vst.msk [vmem:[%s175 + $0xa0] sm:$0xff] %vm588, %v530
      %610 = vst.msk [vmem:[%s175 + $0xa8] sm:$0xff] %vm588, %v535
      %611 = vst.msk [vmem:[%s175 + $0xb0] sm:$0xff] %vm588, %v540
      %612 = vst.msk [vmem:[%s175 + $0xb8] sm:$0xff] %vm588, %v545
      %613 = vst.msk [vmem:[%s175 + $0xc0] sm:$0xff] %vm588, %v550
      %614 = vst.msk [vmem:[%s175 + $0xc8] sm:$0xff] %vm588, %v555
      %615 = vst.msk [vmem:[%s175 + $0xd0] sm:$0xff] %vm588, %v560
      %616 = vst.msk [vmem:[%s175 + $0xd8] sm:$0xff] %vm588, %v565
      %617 = vst.msk [vmem:[%s175 + $0xe0] sm:$0xff] %vm588, %v570
      %618 = vst.msk [vmem:[%s175 + $0xe8] sm:$0xff] %vm588, %v575
      %619 = vst.msk [vmem:[%s175 + $0xf0] sm:$0xff] %vm588, %v580
      %620 = vst.msk [vmem:[%s175 + $0xf8] sm:$0xff] %vm588, %v585
      %s621 = smul.u32 32, %s14
      %p622 = scmp.lt.s32.totalorder %s621, 63
      %s623 = scalar_select %p622, %s621, 63
      %s624 = smul.addr %s623, 8
      %s625 = scalar_lea.vmem %s3, %s624
      // Predicated region
      $region33: #{ae_forward.13} parent=31 // pred_check
        %p626 = pneg %p100
      $region34: #{ae_forward.13} parent=31 // pred_check_branch
        %628 = sbr.rel (%p626) target = $region36
      $region35: #{ae_forward.13} parent=31 // pred_region
        %s629 = smul.u32 32, %s14
      $region36: #{ae_forward.13} parent=31 // pred_fallthru
        _
    $region32: #{ae_forward.13} parent=5 // pred_fallthru
      _
    %p630 = scmp.le.s32.totalorder 2, %s9
    // Predicated region
    $region37: #{ae_forward.13} parent=5 // pred_check
      %p631 = pneg %p630
    $region38: #{ae_forward.13} parent=5 // pred_check_branch
      %633 = sbr.rel (%p631) target = $region40
    $region39: #{ae_forward.13} parent=5 // pred_region
      %s634 = ssub.s32 %s9, 2
      // Predicated region
      $region41: #{ae_forward.13} parent=39 // pred_check
        %p635 = pneg %p106
      $region42: #{ae_forward.13} parent=39 // pred_check_branch
        %637 = sbr.rel (%p635) target = $region44
      $region43: #{ae_forward.13} parent=39 // pred_region
        %s638 = smul.u32 32, %s15
        %p639 = scmp.lt.s32.totalorder %s638, 63
        %s640 = scalar_select %p639, %s638, 63
        %s641 = smul.addr %s640, 8
        %s642 = scalar_lea.vmem %s3, %s641
      $region44: #{ae_forward.13} parent=39 // pred_fallthru
        _
    $region40: #{ae_forward.13} parent=5 // pred_fallthru
      _
  $region6: #{ae_forward.13} parent=0 // loop_footer
    %s13 = sadd.s32 1, %s9
  $region7: #{ae_forward.13} parent=0 // loop_footer_branch
    %8 = sbr.rel target = $region3
  $region8: #{ae_forward.13} parent=0 // loop_exit
    _

</llo_original>
